<compile_context>
chip_gen: v5e
topology: v5e:2x2
jax: 0.10.0
libtpu: 0.0.40
codegen_flags: <defaults>
</compile_context>

<pallas_src>
import functools

import jax
import jax.numpy as jnp
import numpy as np
from jax.experimental import pallas as pl
from jax.experimental.pallas import tpu as pltpu

EPS = 1e-5


# ----------------------------- Pallas kernel --------------------------------
def residual_kernel(xpad_ref, w1_ref, w2_ref, g1_ref, be1_ref, g2_ref, be2_ref,
                    b3_ref, s_ref, st_ref, o_ref, ypad_ref, *,
                    use_1x1conv, n, h, w, cin, c):
    """Whole residual block on one TensorCore, everything resident in VMEM.

    xpad_ref : (N, H+2, W*Cin) f32   input slab, vertically zero-padded (wrapper)
    w1_ref   : (3*W*Cin, W*C) bf16   or (3*W*Cin, 2*W*C) if 1x1 shortcut is fused
    w2_ref   : (3*W*C,   W*C) bf16   block-banded conv2 weights
    g*/be*   : (1, C) f32            BN gamma / beta
    b3_ref   : (1, W*C) f32          1x1-conv bias, lane-expanded (zeros if unused)
    s_ref    : (W*C, C) f32          lane -> channel selector (sum over w positions)
    st_ref   : (C, W*C) f32          channel -> lane broadcaster
    o_ref    : (N*H, W*C) f32        lane-dense output slab
    ypad_ref : (N, H+2, W*C) f32     padded intermediate scratch
    """
    nh = n * h
    wc = w * c
    wcin = w * cin
    inv_cnt = 1.0 / float(n * h * w)

    def conv3x3(src_ref, wts_ref, k_lanes):
        # 3x3 conv as ONE matmul: the 3 vertical taps are folded into K by
        # concatenating the ky-shifted row views along lanes (im2col), then
        # bf16 operands hit the native MXU path with f32 accumulation.
        lhs = jnp.concatenate(
            [src_ref[:, ky:ky + h, :].reshape(nh, k_lanes) for ky in range(3)],
            axis=-1).astype(jnp.bfloat16)                        # (nh, 3*k)
        return jnp.dot(lhs, wts_ref[...],
                       preferred_element_type=jnp.float32)       # (nh, out)

    def batchnorm(ypre, g_ref, be_ref):
        # Single-pass batch stats in f32 (biased var), folded into y*scale+shift.
        # Stats matmuls are batched: one [y ; y*y] dot, one [scale ; shift] dot.
        stacked = jnp.concatenate([ypre, ypre * ypre], axis=0)   # (2*nh, W*C)
        red = jnp.dot(stacked, s_ref[...],
                      preferred_element_type=jnp.float32)        # (2*nh, C)
        mean = jnp.sum(red[:nh], axis=0, keepdims=True) * inv_cnt   # (1, C)
        ey2 = jnp.sum(red[nh:], axis=0, keepdims=True) * inv_cnt    # (1, C)
        var = ey2 - mean * mean
        scale_c = g_ref[...] * jax.lax.rsqrt(var + EPS)          # (1, C)
        shift_c = be_ref[...] - mean * scale_c                   # (1, C)
        ss = jnp.dot(jnp.concatenate([scale_c, shift_c], axis=0),
                     st_ref[...],
                     preferred_element_type=jnp.float32)         # (2, W*C)
        return ypre * ss[0:1] + ss[1:2]

    # --- conv1 (+ fused 1x1 shortcut columns); bias b1 cancelled by BN1 ------
    acc1 = conv3x3(xpad_ref, w1_ref, wcin)                       # f32
    if use_1x1conv:
        y1pre = acc1[:, :wc]
        xr = acc1[:, wc:] + b3_ref[...]
    else:
        y1pre = acc1
        # identity shortcut (requires Cin == C); center rows of the padded slab
        xr = xpad_ref[:, 1:1 + h, :].reshape(nh, wc)

    y1 = jnp.maximum(batchnorm(y1pre, g1_ref, be1_ref), 0.0)

    # --- pad intermediate: zero only the 2*N vertical halo rows --------------
    ypad_ref[:, 0:1, :] = jnp.zeros((n, 1, wc), jnp.float32)
    ypad_ref[:, h + 1:h + 2, :] = jnp.zeros((n, 1, wc), jnp.float32)
    ypad_ref[:, 1:h + 1, :] = y1.reshape(n, h, wc)

    # --- conv2 -> BN2 (bias b2 cancelled by BN2) ------------------------------
    y2 = batchnorm(conv3x3(ypad_ref, w2_ref, wc), g2_ref, be2_ref)

    # --- residual add + relu, lane-dense unmasked store -----------------------
    o_ref[...] = jnp.maximum(y2 + xr, 0.0)


# ----------------------------- wrapper / packing -----------------------------
def _banded_weights(w_oihw, w_img):
    """OIHW (Co, Ci, 3, 3) -> (3, W*Ci, W*Co): one block-tridiagonal matrix per
    vertical tap ky, with the horizontal taps and horizontal zero-padding folded
    into the band structure."""
    taps = jnp.transpose(w_oihw, (2, 3, 1, 0)).astype(jnp.float32)   # (ky,kx,ci,co)
    co = taps.shape[-1]
    ci = taps.shape[-2]
    kx = jnp.arange(3)
    win = jnp.arange(w_img)
    wout = jnp.arange(w_img)
    ind = (win[None, :, None] == (wout[None, None, :] + kx[:, None, None] - 1)
           ).astype(jnp.float32)                                      # (3, W, W)
    big = jnp.einsum('kab,ykio->yaibo', ind, taps)                    # (3,W,ci,W,co)
    return big.reshape(3, w_img * ci, w_img * co)


def _blockdiag(w_mat, w_img):
    """(Ci, Co) -> (W*Ci, W*Co) block-diagonal (per-pixel 1x1 conv)."""
    ci, co = w_mat.shape
    eye = jnp.eye(w_img, dtype=jnp.float32)
    return jnp.einsum('ab,io->aibo', eye, w_mat).reshape(w_img * ci, w_img * co)


@functools.partial(jax.jit, static_argnames=("use_1x1conv",))
def residual_forward(x_nchw, params, *, use_1x1conv):
    """NCHW input -> lane-dense slab layout -> pallas_call -> NCHW output.

    Jitted so the banded-weight construction lives in the same XLA program as
    the kernel (no per-call Python re-packing)."""
    x = jnp.transpose(x_nchw, (0, 2, 3, 1)).astype(jnp.float32)       # NHWC
    N, H, W, Cin = x.shape
    C = params["w1"].shape[0]
    if not use_1x1conv:
        assert Cin == C, "identity shortcut needs input_channels == num_channels"
    # Banded formulation only pays off while W*C is small (MXU K/N underfill);
    # above this switch to per-tap (Cin,Cout) dots / channel-major im2col.
    assert W * C <= 1024, "banded-weight formulation not intended for large W*C"

    # Vertically zero-padded input slab built by XLA (no in-kernel padding pass).
    xpad = jnp.pad(x.reshape(N, H, W * Cin), ((0, 0), (1, 1), (0, 0)))

    big1 = _banded_weights(params["w1"], W)                           # (3,W*Cin,W*C)
    big2 = _banded_weights(params["w2"], W)                           # (3,W*C, W*C)
    w2_full = big2.reshape(3 * W * C, W * C).astype(jnp.bfloat16)

    if use_1x1conv:
        w3_mat = params["w3"].reshape(C, Cin).T.astype(jnp.float32)   # (Cin, C)
        sc_blk = _blockdiag(w3_mat, W)                                # (W*Cin, W*C)
        zeros = jnp.zeros_like(sc_blk)
        w1_full = jnp.stack(
            [jnp.concatenate([big1[k], sc_blk if k == 1 else zeros], axis=1)
             for k in range(3)], axis=0)                              # (3,W*Cin,2W*C)
        w1_full = w1_full.reshape(3 * W * Cin, 2 * W * C).astype(jnp.bfloat16)
        b3_lane = jnp.tile(params["b3"].reshape(-1).astype(jnp.float32),
                           W).reshape(1, W * C)
    else:
        w1_full = big1.reshape(3 * W * Cin, W * C).astype(jnp.bfloat16)
        b3_lane = jnp.zeros((1, W * C), jnp.float32)

    s_mat = jnp.tile(jnp.eye(C, dtype=jnp.float32), (W, 1))           # (W*C, C)
    st_mat = jnp.transpose(s_mat)                                     # (C, W*C)
    row = lambda v: v.reshape(1, -1).astype(jnp.float32)

    # NOTE: b1 / b2 are intentionally NOT passed: they are exactly cancelled by
    # the BatchNorm (batch-stat) mean subtraction that follows each conv.
    args = (xpad, w1_full, w2_full,
            row(params["g1"]), row(params["be1"]),
            row(params["g2"]), row(params["be2"]),
            b3_lane, s_mat, st_mat)

    vmem = pl.BlockSpec(memory_space=pltpu.MemorySpace.VMEM)
    out_slab = pl.pallas_call(
        functools.partial(residual_kernel, use_1x1conv=use_1x1conv,
                          n=N, h=H, w=W, cin=Cin, c=C),
        out_shape=jax.ShapeDtypeStruct((N * H, W * C), jnp.float32),
        in_specs=[vmem] * len(args),
        out_specs=vmem,
        scratch_shapes=[pltpu.VMEM((N, H + 2, W * C), jnp.float32)],
        compiler_params=pltpu.CompilerParams(
            vmem_limit_bytes=32 * 1024 * 1024),
    )(*args)

    return jnp.transpose(out_slab.reshape(N, H, W, C), (0, 3, 1, 2))  # NCHW


# ---------------------------- pure-JAX reference ----------------------------
def _ref_conv(x, w, b, pad):
    y = jax.lax.conv_general_dilated(
        x, w, (1, 1), [(pad, pad), (pad, pad)],
        dimension_numbers=("NCHW", "OIHW", "NCHW"))
    return y + b[None, :, None, None]


def _ref_bn(y, g, b):
    mean = y.mean(axis=(0, 2, 3), keepdims=True)
    var = ((y - mean) ** 2).mean(axis=(0, 2, 3), keepdims=True)
    return (y - mean) / jnp.sqrt(var + EPS) * g[None, :, None, None] \
        + b[None, :, None, None]


def residual_reference(x, p, *, use_1x1conv):
    y = jax.nn.relu(_ref_bn(_ref_conv(x, p["w1"], p["b1"], 1), p["g1"], p["be1"]))
    y = _ref_bn(_ref_conv(y, p["w2"], p["b2"], 1), p["g2"], p["be2"])
    xr = _ref_conv(x, p["w3"], p["b3"], 0) if use_1x1conv else x
    return jax.nn.relu(y + xr)


def _make_params(key, cin, c, with_proj):
    ks = jax.random.split(key, 8)
    p = {
        "w1": 0.1 * jax.random.normal(ks[0], (c, cin, 3, 3), jnp.float32),
        "b1": 0.1 * jax.random.normal(ks[1], (c,), jnp.float32),
        "g1": jnp.ones((c,), jnp.float32), "be1": jnp.zeros((c,), jnp.float32),
        "w2": 0.1 * jax.random.normal(ks[2], (c, c, 3, 3), jnp.float32),
        "b2": 0.1 * jax.random.normal(ks[3], (c,), jnp.float32),
        "g2": jnp.ones((c,), jnp.float32), "be2": jnp.zeros((c,), jnp.float32),
    }
    if with_proj:
        p["w3"] = 0.1 * jax.random.normal(ks[4], (c, cin, 1, 1), jnp.float32)
        p["b3"] = 0.1 * jax.random.normal(ks[5], (c,), jnp.float32)
    return p, ks[6]


if __name__ == "__main__":
    H, W = 16, 16
    key = jax.random.PRNGKey(0)

    # Tolerance: bf16 MXU operands (f32 accumulation) set the accuracy floor of
    # the conv chain; estimated max deviation vs the f32 reference is ~1e-2.
    RTOL = ATOL = 3e-2

    # Case 1: channel change + 1x1 projection shortcut (4 -> 8 channels).
    params, xkey = _make_params(key, cin=4, c=8, with_proj=True)
    x = jax.random.normal(xkey, (2, 4, H, W), jnp.float32)
    out = jax.block_until_ready(residual_forward(x, params, use_1x1conv=True))
    ref = residual_reference(x, params, use_1x1conv=True)
    assert out.shape == (2, 8, H, W), out.shape
    np.testing.assert_allclose(np.asarray(out), np.asarray(ref),
                               rtol=RTOL, atol=ATOL)

    # Case 2: identity shortcut (8 == 8 channels), batched so N*H = 128 rows
    # fill the MXU M dimension (perf-review item: amortize fixed overhead).
    params2, xkey2 = _make_params(jax.random.PRNGKey(1), cin=8, c=8,
                                  with_proj=False)
    x2 = jax.random.normal(xkey2, (8, 8, H, W), jnp.float32)
    out2 = jax.block_until_ready(residual_forward(x2, params2,
                                                  use_1x1conv=False))
    ref2 = residual_reference(x2, params2, use_1x1conv=False)
    assert out2.shape == (8, 8, H, W), out2.shape
    np.testing.assert_allclose(np.asarray(out2), np.asarray(ref2),
                               rtol=RTOL, atol=ATOL)

    print("KERNEL_OK")
</pallas_src>

<mosaic_0001>
module attributes {stable_mosaic.version = 11 : i64} {
  func.func @residual_kernel(%arg0: memref<2x18x64xf32, #tpu.memory_space<vmem>>, %arg1: memref<192x256xbf16, #tpu.memory_space<vmem>>, %arg2: memref<384x128xbf16, #tpu.memory_space<vmem>>, %arg3: memref<1x8xf32, #tpu.memory_space<vmem>>, %arg4: memref<1x8xf32, #tpu.memory_space<vmem>>, %arg5: memref<1x8xf32, #tpu.memory_space<vmem>>, %arg6: memref<1x8xf32, #tpu.memory_space<vmem>>, %arg7: memref<1x128xf32, #tpu.memory_space<vmem>>, %arg8: memref<128x8xf32, #tpu.memory_space<vmem>>, %arg9: memref<8x128xf32, #tpu.memory_space<vmem>>, %arg10: memref<32x128xf32, #tpu.memory_space<vmem>>, %arg11: memref<2x18x128xf32, #tpu.memory_space<vmem>>) attributes {dimension_semantics = [], scalar_prefetch = 0 : i64, scratch_operands = 1 : i64, tpu.core_type = #tpu.core_type<tc>} {
    %c0 = arith.constant 0 : index
    %c0_0 = arith.constant 0 : index
    %c0_1 = arith.constant 0 : index
    %0 = vector.load %arg0[%c0, %c0_0, %c0_1] : memref<2x18x64xf32, #tpu.memory_space<vmem>>, vector<2x16x64xf32>
    %1 = vector.shape_cast %0 : vector<2x16x64xf32> to vector<32x64xf32>
    %c0_2 = arith.constant 0 : index
    %c1 = arith.constant 1 : index
    %c0_3 = arith.constant 0 : index
    %2 = vector.load %arg0[%c0_2, %c1, %c0_3] : memref<2x18x64xf32, #tpu.memory_space<vmem>>, vector<2x16x64xf32>
    %3 = vector.shape_cast %2 : vector<2x16x64xf32> to vector<32x64xf32>
    %c0_4 = arith.constant 0 : index
    %c2 = arith.constant 2 : index
    %c0_5 = arith.constant 0 : index
    %4 = vector.load %arg0[%c0_4, %c2, %c0_5] : memref<2x18x64xf32, #tpu.memory_space<vmem>>, vector<2x16x64xf32>
    %5 = vector.shape_cast %4 : vector<2x16x64xf32> to vector<32x64xf32>
    %6 = tpu.concatenate %1, %3, %5 in 1 : vector<32x64xf32>, vector<32x64xf32>, vector<32x64xf32> -> vector<32x192xf32>
    %7 = arith.truncf %6 : vector<32x192xf32> to vector<32x192xbf16>
    %c0_6 = arith.constant 0 : index
    %c0_7 = arith.constant 0 : index
    %8 = vector.load %arg1[%c0_6, %c0_7] : memref<192x256xbf16, #tpu.memory_space<vmem>>, vector<192x256xbf16>
    %cst = arith.constant dense<0.000000e+00> : vector<32x256xf32>
    %9 = tpu.matmul %7, %8, %cst {dimension_numbers = #tpu.dot_dimension_numbers<[1], [0], [0], [1], [0, 0, 1, 1], [], []>} : vector<32x192xbf16>, vector<192x256xbf16>, vector<32x256xf32> -> vector<32x256xf32>
    %10 = vector.extract_strided_slice %9 {offsets = [0, 0], sizes = [32, 128], strides = [1, 1]} : vector<32x256xf32> to vector<32x128xf32>
    %11 = vector.extract_strided_slice %9 {offsets = [0, 128], sizes = [32, 128], strides = [1, 1]} : vector<32x256xf32> to vector<32x128xf32>
    %c0_8 = arith.constant 0 : index
    %c0_9 = arith.constant 0 : index
    %12 = vector.load %arg7[%c0_8, %c0_9] : memref<1x128xf32, #tpu.memory_space<vmem>>, vector<1x128xf32>
    %13 = vector.broadcast %12 : vector<1x128xf32> to vector<32x128xf32>
    %14 = arith.addf %11, %13 : vector<32x128xf32>
    %15 = arith.mulf %10, %10 : vector<32x128xf32>
    %16 = tpu.concatenate %10, %15 in 0 : vector<32x128xf32>, vector<32x128xf32> -> vector<64x128xf32>
    %c0_10 = arith.constant 0 : index
    %c0_11 = arith.constant 0 : index
    %17 = vector.load %arg8[%c0_10, %c0_11] : memref<128x8xf32, #tpu.memory_space<vmem>>, vector<128x8xf32>
    %cst_12 = arith.constant dense<0.000000e+00> : vector<64x8xf32>
    %18 = tpu.matmul %16, %17, %cst_12 {dimension_numbers = #tpu.dot_dimension_numbers<[1], [0], [0], [1], [0, 0, 1, 1], [], []>} : vector<64x128xf32>, vector<128x8xf32>, vector<64x8xf32> -> vector<64x8xf32>
    %19 = vector.extract_strided_slice %18 {offsets = [0, 0], sizes = [32, 8], strides = [1, 1]} : vector<64x8xf32> to vector<32x8xf32>
    %cst_13 = arith.constant dense<0.000000e+00> : vector<8xf32>
    %20 = vector.multi_reduction <add>, %19, %cst_13 [0] : vector<32x8xf32> to vector<8xf32>
    %21 = vector.shape_cast %20 : vector<8xf32> to vector<1x8xf32>
    %cst_14 = arith.constant 0.001953125 : f32
    %22 = vector.broadcast %cst_14 : f32 to vector<1x8xf32>
    %23 = arith.mulf %21, %22 : vector<1x8xf32>
    %24 = vector.extract_strided_slice %18 {offsets = [32, 0], sizes = [32, 8], strides = [1, 1]} : vector<64x8xf32> to vector<32x8xf32>
    %cst_15 = arith.constant dense<0.000000e+00> : vector<8xf32>
    %25 = vector.multi_reduction <add>, %24, %cst_15 [0] : vector<32x8xf32> to vector<8xf32>
    %26 = vector.shape_cast %25 : vector<8xf32> to vector<1x8xf32>
    %cst_16 = arith.constant 0.001953125 : f32
    %27 = vector.broadcast %cst_16 : f32 to vector<1x8xf32>
    %28 = arith.mulf %26, %27 : vector<1x8xf32>
    %29 = arith.mulf %23, %23 : vector<1x8xf32>
    %30 = arith.subf %28, %29 : vector<1x8xf32>
    %c0_17 = arith.constant 0 : index
    %c0_18 = arith.constant 0 : index
    %31 = vector.load %arg3[%c0_17, %c0_18] : memref<1x8xf32, #tpu.memory_space<vmem>>, vector<1x8xf32>
    %cst_19 = arith.constant 9.99999974E-6 : f32
    %32 = vector.broadcast %cst_19 : f32 to vector<1x8xf32>
    %33 = arith.addf %30, %32 : vector<1x8xf32>
    %34 = math.rsqrt %33 : vector<1x8xf32>
    %35 = arith.mulf %31, %34 : vector<1x8xf32>
    %c0_20 = arith.constant 0 : index
    %c0_21 = arith.constant 0 : index
    %36 = vector.load %arg4[%c0_20, %c0_21] : memref<1x8xf32, #tpu.memory_space<vmem>>, vector<1x8xf32>
    %37 = arith.mulf %23, %35 : vector<1x8xf32>
    %38 = arith.subf %36, %37 : vector<1x8xf32>
    %39 = tpu.concatenate %35, %38 in 0 : vector<1x8xf32>, vector<1x8xf32> -> vector<2x8xf32>
    %c0_22 = arith.constant 0 : index
    %c0_23 = arith.constant 0 : index
    %40 = vector.load %arg9[%c0_22, %c0_23] : memref<8x128xf32, #tpu.memory_space<vmem>>, vector<8x128xf32>
    %cst_24 = arith.constant dense<0.000000e+00> : vector<2x128xf32>
    %41 = tpu.matmul %39, %40, %cst_24 {dimension_numbers = #tpu.dot_dimension_numbers<[1], [0], [0], [1], [0, 0, 1, 1], [], []>} : vector<2x8xf32>, vector<8x128xf32>, vector<2x128xf32> -> vector<2x128xf32>
    %42 = vector.extract_strided_slice %41 {offsets = [0, 0], sizes = [1, 128], strides = [1, 1]} : vector<2x128xf32> to vector<1x128xf32>
    %43 = vector.broadcast %42 : vector<1x128xf32> to vector<32x128xf32>
    %44 = arith.mulf %10, %43 : vector<32x128xf32>
    %45 = vector.extract_strided_slice %41 {offsets = [1, 0], sizes = [1, 128], strides = [1, 1]} : vector<2x128xf32> to vector<1x128xf32>
    %46 = vector.broadcast %45 : vector<1x128xf32> to vector<32x128xf32>
    %47 = arith.addf %44, %46 : vector<32x128xf32>
    %cst_25 = arith.constant 0.000000e+00 : f32
    %48 = vector.broadcast %cst_25 : f32 to vector<32x128xf32>
    %49 = arith.maximumf %47, %48 : vector<32x128xf32>
    %cst_26 = arith.constant 0.000000e+00 : f32
    %50 = vector.broadcast %cst_26 : f32 to vector<2x1x128xf32>
    %c0_27 = arith.constant 0 : index
    %c0_28 = arith.constant 0 : index
    %c0_29 = arith.constant 0 : index
    %51 = vector.load %arg11[%c0_27, %c0_28, %c0_29] : memref<2x18x128xf32, #tpu.memory_space<vmem>>, vector<2x1x128xf32>
    tpu.vector_store %arg11[%c0_27, %c0_28, %c0_29], %50 {strides = array<i32>} : memref<2x18x128xf32, #tpu.memory_space<vmem>>, vector<2x1x128xf32>,
    %cst_30 = arith.constant 0.000000e+00 : f32
    %52 = vector.broadcast %cst_30 : f32 to vector<2x1x128xf32>
    %c0_31 = arith.constant 0 : index
    %c17 = arith.constant 17 : index
    %c0_32 = arith.constant 0 : index
    %53 = vector.load %arg11[%c0_31, %c17, %c0_32] : memref<2x18x128xf32, #tpu.memory_space<vmem>>, vector<2x1x128xf32>
    tpu.vector_store %arg11[%c0_31, %c17, %c0_32], %52 {strides = array<i32>} : memref<2x18x128xf32, #tpu.memory_space<vmem>>, vector<2x1x128xf32>,
    %54 = vector.shape_cast %49 : vector<32x128xf32> to vector<2x16x128xf32>
    %c0_33 = arith.constant 0 : index
    %c1_34 = arith.constant 1 : index
    %c0_35 = arith.constant 0 : index
    %55 = vector.load %arg11[%c0_33, %c1_34, %c0_35] : memref<2x18x128xf32, #tpu.memory_space<vmem>>, vector<2x16x128xf32>
    tpu.vector_store %arg11[%c0_33, %c1_34, %c0_35], %54 {strides = array<i32>} : memref<2x18x128xf32, #tpu.memory_space<vmem>>, vector<2x16x128xf32>,
    %c0_36 = arith.constant 0 : index
    %c0_37 = arith.constant 0 : index
    %c0_38 = arith.constant 0 : index
    %56 = vector.load %arg11[%c0_36, %c0_37, %c0_38] : memref<2x18x128xf32, #tpu.memory_space<vmem>>, vector<2x16x128xf32>
    %57 = vector.shape_cast %56 : vector<2x16x128xf32> to vector<32x128xf32>
    %c0_39 = arith.constant 0 : index
    %c1_40 = arith.constant 1 : index
    %c0_41 = arith.constant 0 : index
    %58 = vector.load %arg11[%c0_39, %c1_40, %c0_41] : memref<2x18x128xf32, #tpu.memory_space<vmem>>, vector<2x16x128xf32>
    %59 = vector.shape_cast %58 : vector<2x16x128xf32> to vector<32x128xf32>
    %c0_42 = arith.constant 0 : index
    %c2_43 = arith.constant 2 : index
    %c0_44 = arith.constant 0 : index
    %60 = vector.load %arg11[%c0_42, %c2_43, %c0_44] : memref<2x18x128xf32, #tpu.memory_space<vmem>>, vector<2x16x128xf32>
    %61 = vector.shape_cast %60 : vector<2x16x128xf32> to vector<32x128xf32>
    %62 = tpu.concatenate %57, %59, %61 in 1 : vector<32x128xf32>, vector<32x128xf32>, vector<32x128xf32> -> vector<32x384xf32>
    %63 = arith.truncf %62 : vector<32x384xf32> to vector<32x384xbf16>
    %c0_45 = arith.constant 0 : index
    %c0_46 = arith.constant 0 : index
    %64 = vector.load %arg2[%c0_45, %c0_46] : memref<384x128xbf16, #tpu.memory_space<vmem>>, vector<384x128xbf16>
    %cst_47 = arith.constant dense<0.000000e+00> : vector<32x128xf32>
    %65 = tpu.matmul %63, %64, %cst_47 {dimension_numbers = #tpu.dot_dimension_numbers<[1], [0], [0], [1], [0, 0, 1, 1], [], []>} : vector<32x384xbf16>, vector<384x128xbf16>, vector<32x128xf32> -> vector<32x128xf32>
    %66 = arith.mulf %65, %65 : vector<32x128xf32>
    %67 = tpu.concatenate %65, %66 in 0 : vector<32x128xf32>, vector<32x128xf32> -> vector<64x128xf32>
    %c0_48 = arith.constant 0 : index
    %c0_49 = arith.constant 0 : index
    %68 = vector.load %arg8[%c0_48, %c0_49] : memref<128x8xf32, #tpu.memory_space<vmem>>, vector<128x8xf32>
    %cst_50 = arith.constant dense<0.000000e+00> : vector<64x8xf32>
    %69 = tpu.matmul %67, %68, %cst_50 {dimension_numbers = #tpu.dot_dimension_numbers<[1], [0], [0], [1], [0, 0, 1, 1], [], []>} : vector<64x128xf32>, vector<128x8xf32>, vector<64x8xf32> -> vector<64x8xf32>
    %70 = vector.extract_strided_slice %69 {offsets = [0, 0], sizes = [32, 8], strides = [1, 1]} : vector<64x8xf32> to vector<32x8xf32>
    %cst_51 = arith.constant dense<0.000000e+00> : vector<8xf32>
    %71 = vector.multi_reduction <add>, %70, %cst_51 [0] : vector<32x8xf32> to vector<8xf32>
    %72 = vector.shape_cast %71 : vector<8xf32> to vector<1x8xf32>
    %cst_52 = arith.constant 0.001953125 : f32
    %73 = vector.broadcast %cst_52 : f32 to vector<1x8xf32>
    %74 = arith.mulf %72, %73 : vector<1x8xf32>
    %75 = vector.extract_strided_slice %69 {offsets = [32, 0], sizes = [32, 8], strides = [1, 1]} : vector<64x8xf32> to vector<32x8xf32>
    %cst_53 = arith.constant dense<0.000000e+00> : vector<8xf32>
    %76 = vector.multi_reduction <add>, %75, %cst_53 [0] : vector<32x8xf32> to vector<8xf32>
    %77 = vector.shape_cast %76 : vector<8xf32> to vector<1x8xf32>
    %cst_54 = arith.constant 0.001953125 : f32
    %78 = vector.broadcast %cst_54 : f32 to vector<1x8xf32>
    %79 = arith.mulf %77, %78 : vector<1x8xf32>
    %80 = arith.mulf %74, %74 : vector<1x8xf32>
    %81 = arith.subf %79, %80 : vector<1x8xf32>
    %c0_55 = arith.constant 0 : index
    %c0_56 = arith.constant 0 : index
    %82 = vector.load %arg5[%c0_55, %c0_56] : memref<1x8xf32, #tpu.memory_space<vmem>>, vector<1x8xf32>
    %cst_57 = arith.constant 9.99999974E-6 : f32
    %83 = vector.broadcast %cst_57 : f32 to vector<1x8xf32>
    %84 = arith.addf %81, %83 : vector<1x8xf32>
    %85 = math.rsqrt %84 : vector<1x8xf32>
    %86 = arith.mulf %82, %85 : vector<1x8xf32>
    %c0_58 = arith.constant 0 : index
    %c0_59 = arith.constant 0 : index
    %87 = vector.load %arg6[%c0_58, %c0_59] : memref<1x8xf32, #tpu.memory_space<vmem>>, vector<1x8xf32>
    %88 = arith.mulf %74, %86 : vector<1x8xf32>
    %89 = arith.subf %87, %88 : vector<1x8xf32>
    %90 = tpu.concatenate %86, %89 in 0 : vector<1x8xf32>, vector<1x8xf32> -> vector<2x8xf32>
    %c0_60 = arith.constant 0 : index
    %c0_61 = arith.constant 0 : index
    %91 = vector.load %arg9[%c0_60, %c0_61] : memref<8x128xf32, #tpu.memory_space<vmem>>, vector<8x128xf32>
    %cst_62 = arith.constant dense<0.000000e+00> : vector<2x128xf32>
    %92 = tpu.matmul %90, %91, %cst_62 {dimension_numbers = #tpu.dot_dimension_numbers<[1], [0], [0], [1], [0, 0, 1, 1], [], []>} : vector<2x8xf32>, vector<8x128xf32>, vector<2x128xf32> -> vector<2x128xf32>
    %93 = vector.extract_strided_slice %92 {offsets = [0, 0], sizes = [1, 128], strides = [1, 1]} : vector<2x128xf32> to vector<1x128xf32>
    %94 = vector.broadcast %93 : vector<1x128xf32> to vector<32x128xf32>
    %95 = arith.mulf %65, %94 : vector<32x128xf32>
    %96 = vector.extract_strided_slice %92 {offsets = [1, 0], sizes = [1, 128], strides = [1, 1]} : vector<2x128xf32> to vector<1x128xf32>
    %97 = vector.broadcast %96 : vector<1x128xf32> to vector<32x128xf32>
    %98 = arith.addf %95, %97 : vector<32x128xf32>
    %99 = arith.addf %98, %14 : vector<32x128xf32>
    %cst_63 = arith.constant 0.000000e+00 : f32
    %100 = vector.broadcast %cst_63 : f32 to vector<32x128xf32>
    %101 = arith.maximumf %99, %100 : vector<32x128xf32>
    %c0_64 = arith.constant 0 : index
    %c0_65 = arith.constant 0 : index
    %102 = vector.load %arg10[%c0_64, %c0_65] : memref<32x128xf32, #tpu.memory_space<vmem>>, vector<32x128xf32>
    tpu.vector_store %arg10[%c0_64, %c0_65], %101 {strides = array<i32>} : memref<32x128xf32, #tpu.memory_space<vmem>>, vector<32x128xf32>,
    return
  }
}

</mosaic_0001>

<llo_original>
// kernel: squeeze.2
$region0: #{squeeze.2}
  %s0 = inlined_call_operand.vmem [shape: bf16[1,16,4,16,8], index: 0, kind: input, shape index: {}]
  %s1 = inlined_call_operand.vmem [shape: bf16[64,128], index: 1, kind: output, shape index: {}]
  $region1: #{squeeze.2} parent=0
    #allocation0 [shape = 'u8[32768]{0}', space=vmem, size = 0x8000, scoped, tag = 'scoped mem for output reshape']
    #allocation1 [shape = 'u8[524288]{0}', space=vmem, size = 0x80000, scoped, tag = 'scoped mem for input reshape']
    %s3 = ssub.s32 256, 1
    %s4 = scalar_lea.vmem %s0, 508
    %s5 = sshrl.u32 %s3, 1
    %s6 = sor.u32 %s3, %s5
    %s7 = sand.u32 %s6, 85
    %s8 = sshrl.u32 %s7, 1
    %s9 = sor.u32 %s7, %s8
    %s10 = sand.u32 51, %s9
    %s11 = sshrl.u32 %s10, 2
    %s12 = sor.u32 %s10, %s11
    %s13 = sand.u32 15, %s12
    %v14 = vld [vmem:[%s4] sm:%s13]
    %v15 = vunpack.c.l.bf16 %v14
    %v16 = vunpack.c.h.bf16 %v14
    %s17 = scalar_lea.vmem [#allocation1], 1016
    %18 = vst [vmem:[%s17] sm:%s3] %v15
    %s19 = scalar_lea.vmem %s0, 504
    %s20 = sshrl.u32 %s3, 1
    %s21 = sor.u32 %s3, %s20
    %s22 = sand.u32 %s21, 85
    %s23 = sshrl.u32 %s22, 1
    %s24 = sor.u32 %s22, %s23
    %s25 = sand.u32 51, %s24
    %s26 = sshrl.u32 %s25, 2
    %s27 = sor.u32 %s25, %s26
    %s28 = sand.u32 15, %s27
    %v29 = vld [vmem:[%s19] sm:%s28]
    %v30 = vunpack.c.l.bf16 %v29
    %v31 = vunpack.c.h.bf16 %v29
    %s32 = scalar_lea.vmem [#allocation1], 1008
    %33 = vst [vmem:[%s32] sm:%s3] %v30
    %s34 = scalar_lea.vmem %s0, 500
    %s35 = sshrl.u32 %s3, 1
    %s36 = sor.u32 %s3, %s35
    %s37 = sand.u32 %s36, 85
    %s38 = sshrl.u32 %s37, 1
    %s39 = sor.u32 %s37, %s38
    %s40 = sand.u32 51, %s39
    %s41 = sshrl.u32 %s40, 2
    %s42 = sor.u32 %s40, %s41
    %s43 = sand.u32 15, %s42
    %v44 = vld [vmem:[%s34] sm:%s43]
    %v45 = vunpack.c.l.bf16 %v44
    %v46 = vunpack.c.h.bf16 %v44
    %s47 = scalar_lea.vmem [#allocation1], 1000
    %48 = vst [vmem:[%s47] sm:%s3] %v45
    %s49 = scalar_lea.vmem %s0, 496
    %s50 = sshrl.u32 %s3, 1
    %s51 = sor.u32 %s3, %s50
    %s52 = sand.u32 %s51, 85
    %s53 = sshrl.u32 %s52, 1
    %s54 = sor.u32 %s52, %s53
    %s55 = sand.u32 51, %s54
    %s56 = sshrl.u32 %s55, 2
    %s57 = sor.u32 %s55, %s56
    %s58 = sand.u32 15, %s57
    %v59 = vld [vmem:[%s49] sm:%s58]
    %v60 = vunpack.c.l.bf16 %v59
    %v61 = vunpack.c.h.bf16 %v59
    %s62 = scalar_lea.vmem [#allocation1], 992
    %63 = vst [vmem:[%s62] sm:%s3] %v60
    %s64 = scalar_lea.vmem %s0, 492
    %s65 = sshrl.u32 %s3, 1
    %s66 = sor.u32 %s3, %s65
    %s67 = sand.u32 %s66, 85
    %s68 = sshrl.u32 %s67, 1
    %s69 = sor.u32 %s67, %s68
    %s70 = sand.u32 51, %s69
    %s71 = sshrl.u32 %s70, 2
    %s72 = sor.u32 %s70, %s71
    %s73 = sand.u32 15, %s72
    %v74 = vld [vmem:[%s64] sm:%s73]
    %v75 = vunpack.c.l.bf16 %v74
    %v76 = vunpack.c.h.bf16 %v74
    %s77 = scalar_lea.vmem [#allocation1], 984
    %78 = vst [vmem:[%s77] sm:%s3] %v75
    %s79 = scalar_lea.vmem %s0, 488
    %s80 = sshrl.u32 %s3, 1
    %s81 = sor.u32 %s3, %s80
    %s82 = sand.u32 %s81, 85
    %s83 = sshrl.u32 %s82, 1
    %s84 = sor.u32 %s82, %s83
    %s85 = sand.u32 51, %s84
    %s86 = sshrl.u32 %s85, 2
    %s87 = sor.u32 %s85, %s86
    %s88 = sand.u32 15, %s87
    %v89 = vld [vmem:[%s79] sm:%s88]
    %v90 = vunpack.c.l.bf16 %v89
    %v91 = vunpack.c.h.bf16 %v89
    %s92 = scalar_lea.vmem [#allocation1], 976
    %93 = vst [vmem:[%s92] sm:%s3] %v90
    %s94 = scalar_lea.vmem %s0, 484
    %s95 = sshrl.u32 %s3, 1
    %s96 = sor.u32 %s3, %s95
    %s97 = sand.u32 %s96, 85
    %s98 = sshrl.u32 %s97, 1
    %s99 = sor.u32 %s97, %s98
    %s100 = sand.u32 51, %s99
    %s101 = sshrl.u32 %s100, 2
    %s102 = sor.u32 %s100, %s101
    %s103 = sand.u32 15, %s102
    %v104 = vld [vmem:[%s94] sm:%s103]
    %v105 = vunpack.c.l.bf16 %v104
    %v106 = vunpack.c.h.bf16 %v104
    %s107 = scalar_lea.vmem [#allocation1], 968
    %108 = vst [vmem:[%s107] sm:%s3] %v105
    %s109 = scalar_lea.vmem %s0, 480
    %s110 = sshrl.u32 %s3, 1
    %s111 = sor.u32 %s3, %s110
    %s112 = sand.u32 %s111, 85
    %s113 = sshrl.u32 %s112, 1
    %s114 = sor.u32 %s112, %s113
    %s115 = sand.u32 51, %s114
    %s116 = sshrl.u32 %s115, 2
    %s117 = sor.u32 %s115, %s116
    %s118 = sand.u32 15, %s117
    %v119 = vld [vmem:[%s109] sm:%s118]
    %v120 = vunpack.c.l.bf16 %v119
    %v121 = vunpack.c.h.bf16 %v119
    %s122 = scalar_lea.vmem [#allocation1], 960
    %123 = vst [vmem:[%s122] sm:%s3] %v120
    %s124 = scalar_lea.vmem %s0, 476
    %s125 = sshrl.u32 %s3, 1
    %s126 = sor.u32 %s3, %s125
    %s127 = sand.u32 %s126, 85
    %s128 = sshrl.u32 %s127, 1
    %s129 = sor.u32 %s127, %s128
    %s130 = sand.u32 51, %s129
    %s131 = sshrl.u32 %s130, 2
    %s132 = sor.u32 %s130, %s131
    %s133 = sand.u32 15, %s132
    %v134 = vld [vmem:[%s124] sm:%s133]
    %v135 = vunpack.c.l.bf16 %v134
    %v136 = vunpack.c.h.bf16 %v134
    %s137 = scalar_lea.vmem [#allocation1], 952
    %138 = vst [vmem:[%s137] sm:%s3] %v135
    %s139 = scalar_lea.vmem %s0, 472
    %s140 = sshrl.u32 %s3, 1
    %s141 = sor.u32 %s3, %s140
    %s142 = sand.u32 %s141, 85
    %s143 = sshrl.u32 %s142, 1
    %s144 = sor.u32 %s142, %s143
    %s145 = sand.u32 51, %s144
    %s146 = sshrl.u32 %s145, 2
    %s147 = sor.u32 %s145, %s146
    %s148 = sand.u32 15, %s147
    %v149 = vld [vmem:[%s139] sm:%s148]
    %v150 = vunpack.c.l.bf16 %v149
    %v151 = vunpack.c.h.bf16 %v149
    %s152 = scalar_lea.vmem [#allocation1], 944
    %153 = vst [vmem:[%s152] sm:%s3] %v150
    %s154 = scalar_lea.vmem %s0, 468
    %s155 = sshrl.u32 %s3, 1
    %s156 = sor.u32 %s3, %s155
    %s157 = sand.u32 %s156, 85
    %s158 = sshrl.u32 %s157, 1
    %s159 = sor.u32 %s157, %s158
    %s160 = sand.u32 51, %s159
    %s161 = sshrl.u32 %s160, 2
    %s162 = sor.u32 %s160, %s161
    %s163 = sand.u32 15, %s162
    %v164 = vld [vmem:[%s154] sm:%s163]
    %v165 = vunpack.c.l.bf16 %v164
    %v166 = vunpack.c.h.bf16 %v164
    %s167 = scalar_lea.vmem [#allocation1], 936
    %168 = vst [vmem:[%s167] sm:%s3] %v165
    %s169 = scalar_lea.vmem %s0, 464
    %s170 = sshrl.u32 %s3, 1
    %s171 = sor.u32 %s3, %s170
    %s172 = sand.u32 %s171, 85
    %s173 = sshrl.u32 %s172, 1
    %s174 = sor.u32 %s172, %s173
    %s175 = sand.u32 51, %s174
    %s176 = sshrl.u32 %s175, 2
    %s177 = sor.u32 %s175, %s176
    %s178 = sand.u32 15, %s177
    %v179 = vld [vmem:[%s169] sm:%s178]
    %v180 = vunpack.c.l.bf16 %v179
    %v181 = vunpack.c.h.bf16 %v179
    %s182 = scalar_lea.vmem [#allocation1], 928
    %183 = vst [vmem:[%s182] sm:%s3] %v180
    %s184 = scalar_lea.vmem %s0, 460
    %s185 = sshrl.u32 %s3, 1
    %s186 = sor.u32 %s3, %s185
    %s187 = sand.u32 %s186, 85
    %s188 = sshrl.u32 %s187, 1
    %s189 = sor.u32 %s187, %s188
    %s190 = sand.u32 51, %s189
    %s191 = sshrl.u32 %s190, 2
    %s192 = sor.u32 %s190, %s191
    %s193 = sand.u32 15, %s192
    %v194 = vld [vmem:[%s184] sm:%s193]
    %v195 = vunpack.c.l.bf16 %v194
    %v196 = vunpack.c.h.bf16 %v194
    %s197 = scalar_lea.vmem [#allocation1], 920
    %198 = vst [vmem:[%s197] sm:%s3] %v195
    %s199 = scalar_lea.vmem %s0, 456
    %s200 = sshrl.u32 %s3, 1
    %s201 = sor.u32 %s3, %s200
    %s202 = sand.u32 %s201, 85
    %s203 = sshrl.u32 %s202, 1
    %s204 = sor.u32 %s202, %s203
    %s205 = sand.u32 51, %s204
    %s206 = sshrl.u32 %s205, 2
    %s207 = sor.u32 %s205, %s206
    %s208 = sand.u32 15, %s207
    %v209 = vld [vmem:[%s199] sm:%s208]
    %v210 = vunpack.c.l.bf16 %v209
    %v211 = vunpack.c.h.bf16 %v209
    %s212 = scalar_lea.vmem [#allocation1], 912
    %213 = vst [vmem:[%s212] sm:%s3] %v210
    %s214 = scalar_lea.vmem %s0, 452
    %s215 = sshrl.u32 %s3, 1
    %s216 = sor.u32 %s3, %s215
    %s217 = sand.u32 %s216, 85
    %s218 = sshrl.u32 %s217, 1
    %s219 = sor.u32 %s217, %s218
    %s220 = sand.u32 51, %s219
    %s221 = sshrl.u32 %s220, 2
    %s222 = sor.u32 %s220, %s221
    %s223 = sand.u32 15, %s222
    %v224 = vld [vmem:[%s214] sm:%s223]
    %v225 = vunpack.c.l.bf16 %v224
    %v226 = vunpack.c.h.bf16 %v224
    %s227 = scalar_lea.vmem [#allocation1], 904
    %228 = vst [vmem:[%s227] sm:%s3] %v225
    %s229 = scalar_lea.vmem %s0, 448
    %s230 = sshrl.u32 %s3, 1
    %s231 = sor.u32 %s3, %s230
    %s232 = sand.u32 %s231, 85
    %s233 = sshrl.u32 %s232, 1
    %s234 = sor.u32 %s232, %s233
    %s235 = sand.u32 51, %s234
    %s236 = sshrl.u32 %s235, 2
    %s237 = sor.u32 %s235, %s236
    %s238 = sand.u32 15, %s237
    %v239 = vld [vmem:[%s229] sm:%s238]
    %v240 = vunpack.c.l.bf16 %v239
    %v241 = vunpack.c.h.bf16 %v239
    %s242 = scalar_lea.vmem [#allocation1], 896
    %243 = vst [vmem:[%s242] sm:%s3] %v240
    %s244 = scalar_lea.vmem %s0, 444
    %s245 = sshrl.u32 %s3, 1
    %s246 = sor.u32 %s3, %s245
    %s247 = sand.u32 %s246, 85
    %s248 = sshrl.u32 %s247, 1
    %s249 = sor.u32 %s247, %s248
    %s250 = sand.u32 51, %s249
    %s251 = sshrl.u32 %s250, 2
    %s252 = sor.u32 %s250, %s251
    %s253 = sand.u32 15, %s252
    %v254 = vld [vmem:[%s244] sm:%s253]
    %v255 = vunpack.c.l.bf16 %v254
    %v256 = vunpack.c.h.bf16 %v254
    %s257 = scalar_lea.vmem [#allocation1], 888
    %258 = vst [vmem:[%s257] sm:%s3] %v255
    %s259 = scalar_lea.vmem %s0, 440
    %s260 = sshrl.u32 %s3, 1
    %s261 = sor.u32 %s3, %s260
    %s262 = sand.u32 %s261, 85
    %s263 = sshrl.u32 %s262, 1
    %s264 = sor.u32 %s262, %s263
    %s265 = sand.u32 51, %s264
    %s266 = sshrl.u32 %s265, 2
    %s267 = sor.u32 %s265, %s266
    %s268 = sand.u32 15, %s267
    %v269 = vld [vmem:[%s259] sm:%s268]
    %v270 = vunpack.c.l.bf16 %v269
    %v271 = vunpack.c.h.bf16 %v269
    %s272 = scalar_lea.vmem [#allocation1], 880
    %273 = vst [vmem:[%s272] sm:%s3] %v270
    %s274 = scalar_lea.vmem %s0, 436
    %s275 = sshrl.u32 %s3, 1
    %s276 = sor.u32 %s3, %s275
    %s277 = sand.u32 %s276, 85
    %s278 = sshrl.u32 %s277, 1
    %s279 = sor.u32 %s277, %s278
    %s280 = sand.u32 51, %s279
    %s281 = sshrl.u32 %s280, 2
    %s282 = sor.u32 %s280, %s281
    %s283 = sand.u32 15, %s282
    %v284 = vld [vmem:[%s274] sm:%s283]
    %v285 = vunpack.c.l.bf16 %v284
    %v286 = vunpack.c.h.bf16 %v284
    %s287 = scalar_lea.vmem [#allocation1], 872
    %288 = vst [vmem:[%s287] sm:%s3] %v285
    %s289 = scalar_lea.vmem %s0, 432
    %s290 = sshrl.u32 %s3, 1
    %s291 = sor.u32 %s3, %s290
    %s292 = sand.u32 %s291, 85
    %s293 = sshrl.u32 %s292, 1
    %s294 = sor.u32 %s292, %s293
    %s295 = sand.u32 51, %s294
    %s296 = sshrl.u32 %s295, 2
    %s297 = sor.u32 %s295, %s296
    %s298 = sand.u32 15, %s297
    %v299 = vld [vmem:[%s289] sm:%s298]
    %v300 = vunpack.c.l.bf16 %v299
    %v301 = vunpack.c.h.bf16 %v299
    %s302 = scalar_lea.vmem [#allocation1], 864
    %303 = vst [vmem:[%s302] sm:%s3] %v300
    %s304 = scalar_lea.vmem %s0, 428
    %s305 = sshrl.u32 %s3, 1
    %s306 = sor.u32 %s3, %s305
    %s307 = sand.u32 %s306, 85
    %s308 = sshrl.u32 %s307, 1
    %s309 = sor.u32 %s307, %s308
    %s310 = sand.u32 51, %s309
    %s311 = sshrl.u32 %s310, 2
    %s312 = sor.u32 %s310, %s311
    %s313 = sand.u32 15, %s312
    %v314 = vld [vmem:[%s304] sm:%s313]
    %v315 = vunpack.c.l.bf16 %v314
    %v316 = vunpack.c.h.bf16 %v314
    %s317 = scalar_lea.vmem [#allocation1], 856
    %318 = vst [vmem:[%s317] sm:%s3] %v315
    %s319 = scalar_lea.vmem %s0, 424
    %s320 = sshrl.u32 %s3, 1
    %s321 = sor.u32 %s3, %s320
    %s322 = sand.u32 %s321, 85
    %s323 = sshrl.u32 %s322, 1
    %s324 = sor.u32 %s322, %s323
    %s325 = sand.u32 51, %s324
    %s326 = sshrl.u32 %s325, 2
    %s327 = sor.u32 %s325, %s326
    %s328 = sand.u32 15, %s327
    %v329 = vld [vmem:[%s319] sm:%s328]
    %v330 = vunpack.c.l.bf16 %v329
    %v331 = vunpack.c.h.bf16 %v329
    %s332 = scalar_lea.vmem [#allocation1], 848
    %333 = vst [vmem:[%s332] sm:%s3] %v330
    %s334 = scalar_lea.vmem %s0, 420
    %s335 = sshrl.u32 %s3, 1
    %s336 = sor.u32 %s3, %s335
    %s337 = sand.u32 %s336, 85
    %s338 = sshrl.u32 %s337, 1
    %s339 = sor.u32 %s337, %s338
    %s340 = sand.u32 51, %s339
    %s341 = sshrl.u32 %s340, 2
    %s342 = sor.u32 %s340, %s341
    %s343 = sand.u32 15, %s342
    %v344 = vld [vmem:[%s334] sm:%s343]
    %v345 = vunpack.c.l.bf16 %v344
    %v346 = vunpack.c.h.bf16 %v344
    %s347 = scalar_lea.vmem [#allocation1], 840
    %348 = vst [vmem:[%s347] sm:%s3] %v345
    %s349 = scalar_lea.vmem %s0, 416
    %s350 = sshrl.u32 %s3, 1
    %s351 = sor.u32 %s3, %s350
    %s352 = sand.u32 %s351, 85
    %s353 = sshrl.u32 %s352, 1
    %s354 = sor.u32 %s352, %s353
    %s355 = sand.u32 51, %s354
    %s356 = sshrl.u32 %s355, 2
    %s357 = sor.u32 %s355, %s356
    %s358 = sand.u32 15, %s357
    %v359 = vld [vmem:[%s349] sm:%s358]
    %v360 = vunpack.c.l.bf16 %v359
    %v361 = vunpack.c.h.bf16 %v359
    %s362 = scalar_lea.vmem [#allocation1], 832
    %363 = vst [vmem:[%s362] sm:%s3] %v360
    %s364 = scalar_lea.vmem %s0, 412
    %s365 = sshrl.u32 %s3, 1
    %s366 = sor.u32 %s3, %s365
    %s367 = sand.u32 %s366, 85
    %s368 = sshrl.u32 %s367, 1
    %s369 = sor.u32 %s367, %s368
    %s370 = sand.u32 51, %s369
    %s371 = sshrl.u32 %s370, 2
    %s372 = sor.u32 %s370, %s371
    %s373 = sand.u32 15, %s372
    %v374 = vld [vmem:[%s364] sm:%s373]
    %v375 = vunpack.c.l.bf16 %v374
    %v376 = vunpack.c.h.bf16 %v374
    %s377 = scalar_lea.vmem [#allocation1], 824
    %378 = vst [vmem:[%s377] sm:%s3] %v375
    %s379 = scalar_lea.vmem %s0, 408
    %s380 = sshrl.u32 %s3, 1
    %s381 = sor.u32 %s3, %s380
    %s382 = sand.u32 %s381, 85
    %s383 = sshrl.u32 %s382, 1
    %s384 = sor.u32 %s382, %s383
    %s385 = sand.u32 51, %s384
    %s386 = sshrl.u32 %s385, 2
    %s387 = sor.u32 %s385, %s386
    %s388 = sand.u32 15, %s387
    %v389 = vld [vmem:[%s379] sm:%s388]
    %v390 = vunpack.c.l.bf16 %v389
    %v391 = vunpack.c.h.bf16 %v389
    %s392 = scalar_lea.vmem [#allocation1], 816
    %393 = vst [vmem:[%s392] sm:%s3] %v390
    %s394 = scalar_lea.vmem %s0, 404
    %s395 = sshrl.u32 %s3, 1
    %s396 = sor.u32 %s3, %s395
    %s397 = sand.u32 %s396, 85
    %s398 = sshrl.u32 %s397, 1
    %s399 = sor.u32 %s397, %s398
    %s400 = sand.u32 51, %s399
    %s401 = sshrl.u32 %s400, 2
    %s402 = sor.u32 %s400, %s401
    %s403 = sand.u32 15, %s402
    %v404 = vld [vmem:[%s394] sm:%s403]
    %v405 = vunpack.c.l.bf16 %v404
    %v406 = vunpack.c.h.bf16 %v404
    %s407 = scalar_lea.vmem [#allocation1], 808
    %408 = vst [vmem:[%s407] sm:%s3] %v405
    %s409 = scalar_lea.vmem %s0, 400
    %s410 = sshrl.u32 %s3, 1
    %s411 = sor.u32 %s3, %s410
    %s412 = sand.u32 %s411, 85
    %s413 = sshrl.u32 %s412, 1
    %s414 = sor.u32 %s412, %s413
    %s415 = sand.u32 51, %s414
    %s416 = sshrl.u32 %s415, 2
    %s417 = sor.u32 %s415, %s416
    %s418 = sand.u32 15, %s417
    %v419 = vld [vmem:[%s409] sm:%s418]
    %v420 = vunpack.c.l.bf16 %v419
    %v421 = vunpack.c.h.bf16 %v419
    %s422 = scalar_lea.vmem [#allocation1], 800
    %423 = vst [vmem:[%s422] sm:%s3] %v420
    %s424 = scalar_lea.vmem %s0, 396
    %s425 = sshrl.u32 %s3, 1
    %s426 = sor.u32 %s3, %s425
    %s427 = sand.u32 %s426, 85
    %s428 = sshrl.u32 %s427, 1
    %s429 = sor.u32 %s427, %s428
    %s430 = sand.u32 51, %s429
    %s431 = sshrl.u32 %s430, 2
    %s432 = sor.u32 %s430, %s431
    %s433 = sand.u32 15, %s432
    %v434 = vld [vmem:[%s424] sm:%s433]
    %v435 = vunpack.c.l.bf16 %v434
    %v436 = vunpack.c.h.bf16 %v434
    %s437 = scalar_lea.vmem [#allocation1], 792
    %438 = vst [vmem:[%s437] sm:%s3] %v435
    %s439 = scalar_lea.vmem %s0, 392
    %s440 = sshrl.u32 %s3, 1
    %s441 = sor.u32 %s3, %s440
    %s442 = sand.u32 %s441, 85
    %s443 = sshrl.u32 %s442, 1
    %s444 = sor.u32 %s442, %s443
    %s445 = sand.u32 51, %s444
    %s446 = sshrl.u32 %s445, 2
    %s447 = sor.u32 %s445, %s446
    %s448 = sand.u32 15, %s447
    %v449 = vld [vmem:[%s439] sm:%s448]
    %v450 = vunpack.c.l.bf16 %v449
    %v451 = vunpack.c.h.bf16 %v449
    %s452 = scalar_lea.vmem [#allocation1], 784
    %453 = vst [vmem:[%s452] sm:%s3] %v450
    %s454 = scalar_lea.vmem %s0, 388
    %s455 = sshrl.u32 %s3, 1
    %s456 = sor.u32 %s3, %s455
    %s457 = sand.u32 %s456, 85
    %s458 = sshrl.u32 %s457, 1
    %s459 = sor.u32 %s457, %s458
    %s460 = sand.u32 51, %s459
    %s461 = sshrl.u32 %s460, 2
    %s462 = sor.u32 %s460, %s461
    %s463 = sand.u32 15, %s462
    %v464 = vld [vmem:[%s454] sm:%s463]
    %v465 = vunpack.c.l.bf16 %v464
    %v466 = vunpack.c.h.bf16 %v464
    %s467 = scalar_lea.vmem [#allocation1], 776
    %468 = vst [vmem:[%s467] sm:%s3] %v465
    %s469 = scalar_lea.vmem %s0, 384
    %s470 = sshrl.u32 %s3, 1
    %s471 = sor.u32 %s3, %s470
    %s472 = sand.u32 %s471, 85
    %s473 = sshrl.u32 %s472, 1
    %s474 = sor.u32 %s472, %s473
    %s475 = sand.u32 51, %s474
    %s476 = sshrl.u32 %s475, 2
    %s477 = sor.u32 %s475, %s476
    %s478 = sand.u32 15, %s477
    %v479 = vld [vmem:[%s469] sm:%s478]
    %v480 = vunpack.c.l.bf16 %v479
    %v481 = vunpack.c.h.bf16 %v479
    %s482 = scalar_lea.vmem [#allocation1], 768
    %483 = vst [vmem:[%s482] sm:%s3] %v480
    %s484 = scalar_lea.vmem %s0, 380
    %s485 = sshrl.u32 %s3, 1
    %s486 = sor.u32 %s3, %s485
    %s487 = sand.u32 %s486, 85
    %s488 = sshrl.u32 %s487, 1
    %s489 = sor.u32 %s487, %s488
    %s490 = sand.u32 51, %s489
    %s491 = sshrl.u32 %s490, 2
    %s492 = sor.u32 %s490, %s491
    %s493 = sand.u32 15, %s492
    %v494 = vld [vmem:[%s484] sm:%s493]
    %v495 = vunpack.c.l.bf16 %v494
    %v496 = vunpack.c.h.bf16 %v494
    %s497 = scalar_lea.vmem [#allocation1], 760
    %498 = vst [vmem:[%s497] sm:%s3] %v495
    %s499 = scalar_lea.vmem %s0, 376
    %s500 = sshrl.u32 %s3, 1
    %s501 = sor.u32 %s3, %s500
    %s502 = sand.u32 %s501, 85
    %s503 = sshrl.u32 %s502, 1
    %s504 = sor.u32 %s502, %s503
    %s505 = sand.u32 51, %s504
    %s506 = sshrl.u32 %s505, 2
    %s507 = sor.u32 %s505, %s506
    %s508 = sand.u32 15, %s507
    %v509 = vld [vmem:[%s499] sm:%s508]
    %v510 = vunpack.c.l.bf16 %v509
    %v511 = vunpack.c.h.bf16 %v509
    %s512 = scalar_lea.vmem [#allocation1], 752
    %513 = vst [vmem:[%s512] sm:%s3] %v510
    %s514 = scalar_lea.vmem %s0, 372
    %s515 = sshrl.u32 %s3, 1
    %s516 = sor.u32 %s3, %s515
    %s517 = sand.u32 %s516, 85
    %s518 = sshrl.u32 %s517, 1
    %s519 = sor.u32 %s517, %s518
    %s520 = sand.u32 51, %s519
    %s521 = sshrl.u32 %s520, 2
    %s522 = sor.u32 %s520, %s521
    %s523 = sand.u32 15, %s522
    %v524 = vld [vmem:[%s514] sm:%s523]
    %v525 = vunpack.c.l.bf16 %v524
    %v526 = vunpack.c.h.bf16 %v524
    %s527 = scalar_lea.vmem [#allocation1], 744
    %528 = vst [vmem:[%s527] sm:%s3] %v525
    %s529 = scalar_lea.vmem %s0, 368
    %s530 = sshrl.u32 %s3, 1
    %s531 = sor.u32 %s3, %s530
    %s532 = sand.u32 %s531, 85
    %s533 = sshrl.u32 %s532, 1
    %s534 = sor.u32 %s532, %s533
    %s535 = sand.u32 51, %s534
    %s536 = sshrl.u32 %s535, 2
    %s537 = sor.u32 %s535, %s536
    %s538 = sand.u32 15, %s537
    %v539 = vld [vmem:[%s529] sm:%s538]
    %v540 = vunpack.c.l.bf16 %v539
    %v541 = vunpack.c.h.bf16 %v539
    %s542 = scalar_lea.vmem [#allocation1], 736
    %543 = vst [vmem:[%s542] sm:%s3] %v540
    %s544 = scalar_lea.vmem %s0, 364
    %s545 = sshrl.u32 %s3, 1
    %s546 = sor.u32 %s3, %s545
    %s547 = sand.u32 %s546, 85
    %s548 = sshrl.u32 %s547, 1
    %s549 = sor.u32 %s547, %s548
    %s550 = sand.u32 51, %s549
    %s551 = sshrl.u32 %s550, 2
    %s552 = sor.u32 %s550, %s551
    %s553 = sand.u32 15, %s552
    %v554 = vld [vmem:[%s544] sm:%s553]
    %v555 = vunpack.c.l.bf16 %v554
    %v556 = vunpack.c.h.bf16 %v554
    %s557 = scalar_lea.vmem [#allocation1], 728
    %558 = vst [vmem:[%s557] sm:%s3] %v555
    %s559 = scalar_lea.vmem %s0, 360
    %s560 = sshrl.u32 %s3, 1
    %s561 = sor.u32 %s3, %s560
    %s562 = sand.u32 %s561, 85
    %s563 = sshrl.u32 %s562, 1
    %s564 = sor.u32 %s562, %s563
    %s565 = sand.u32 51, %s564
    %s566 = sshrl.u32 %s565, 2
    %s567 = sor.u32 %s565, %s566
    %s568 = sand.u32 15, %s567
    %v569 = vld [vmem:[%s559] sm:%s568]
    %v570 = vunpack.c.l.bf16 %v569
    %v571 = vunpack.c.h.bf16 %v569
    %s572 = scalar_lea.vmem [#allocation1], 720
    %573 = vst [vmem:[%s572] sm:%s3] %v570
    %s574 = scalar_lea.vmem %s0, 356
    %s575 = sshrl.u32 %s3, 1
    %s576 = sor.u32 %s3, %s575
    %s577 = sand.u32 %s576, 85
    %s578 = sshrl.u32 %s577, 1
    %s579 = sor.u32 %s577, %s578
    %s580 = sand.u32 51, %s579
    %s581 = sshrl.u32 %s580, 2
    %s582 = sor.u32 %s580, %s581
    %s583 = sand.u32 15, %s582
    %v584 = vld [vmem:[%s574] sm:%s583]
    %v585 = vunpack.c.l.bf16 %v584
    %v586 = vunpack.c.h.bf16 %v584
    %s587 = scalar_lea.vmem [#allocation1], 712
    %588 = vst [vmem:[%s587] sm:%s3] %v585
    %s589 = scalar_lea.vmem %s0, 352
    %s590 = sshrl.u32 %s3, 1
    %s591 = sor.u32 %s3, %s590
    %s592 = sand.u32 %s591, 85
    %s593 = sshrl.u32 %s592, 1
    %s594 = sor.u32 %s592, %s593
    %s595 = sand.u32 51, %s594
    %s596 = sshrl.u32 %s595, 2
    %s597 = sor.u32 %s595, %s596
    %s598 = sand.u32 15, %s597
    %v599 = vld [vmem:[%s589] sm:%s598]
    %v600 = vunpack.c.l.bf16 %v599
    %v601 = vunpack.c.h.bf16 %v599
    %s602 = scalar_lea.vmem [#allocation1], 704
    %603 = vst [vmem:[%s602] sm:%s3] %v600
    %s604 = scalar_lea.vmem %s0, 348
    %s605 = sshrl.u32 %s3, 1
    %s606 = sor.u32 %s3, %s605
    %s607 = sand.u32 %s606, 85
    %s608 = sshrl.u32 %s607, 1
    %s609 = sor.u32 %s607, %s608
    %s610 = sand.u32 51, %s609
    %s611 = sshrl.u32 %s610, 2
    %s612 = sor.u32 %s610, %s611
    %s613 = sand.u32 15, %s612
    %v614 = vld [vmem:[%s604] sm:%s613]
    %v615 = vunpack.c.l.bf16 %v614
    %v616 = vunpack.c.h.bf16 %v614
    %s617 = scalar_lea.vmem [#allocation1], 696
    %618 = vst [vmem:[%s617] sm:%s3] %v615
    %s619 = scalar_lea.vmem %s0, 344
    %s620 = sshrl.u32 %s3, 1
    %s621 = sor.u32 %s3, %s620
    %s622 = sand.u32 %s621, 85
    %s623 = sshrl.u32 %s622, 1
    %s624 = sor.u32 %s622, %s623
    %s625 = sand.u32 51, %s624
    %s626 = sshrl.u32 %s625, 2
    %s627 = sor.u32 %s625, %s626
    %s628 = sand.u32 15, %s627
    %v629 = vld [vmem:[%s619] sm:%s628]
    %v630 = vunpack.c.l.bf16 %v629
    %v631 = vunpack.c.h.bf16 %v629
    %s632 = scalar_lea.vmem [#allocation1], 688
    %633 = vst [vmem:[%s632] sm:%s3] %v630
    %s634 = scalar_lea.vmem %s0, 340
    %s635 = sshrl.u32 %s3, 1
    %s636 = sor.u32 %s3, %s635
    %s637 = sand.u32 %s636, 85
    %s638 = sshrl.u32 %s637, 1
    %s639 = sor.u32 %s637, %s638
    %s640 = sand.u32 51, %s639
    %s641 = sshrl.u32 %s640, 2
    %s642 = sor.u32 %s640, %s641
    %s643 = sand.u32 15, %s642
    %v644 = vld [vmem:[%s634] sm:%s643]
    %v645 = vunpack.c.l.bf16 %v644
    %v646 = vunpack.c.h.bf16 %v644
    %s647 = scalar_lea.vmem [#allocation1], 680
    %648 = vst [vmem:[%s647] sm:%s3] %v645
    %s649 = scalar_lea.vmem %s0, 336
    %s650 = sshrl.u32 %s3, 1
    %s651 = sor.u32 %s3, %s650
    %s652 = sand.u32 %s651, 85
    %s653 = sshrl.u32 %s652, 1
    %s654 = sor.u32 %s652, %s653
    %s655 = sand.u32 51, %s654
    %s656 = sshrl.u32 %s655, 2
    %s657 = sor.u32 %s655, %s656
    %s658 = sand.u32 15, %s657
    %v659 = vld [vmem:[%s649] sm:%s658]
    %v660 = vunpack.c.l.bf16 %v659
    %v661 = vunpack.c.h.bf16 %v659
    %s662 = scalar_lea.vmem [#allocation1], 672
    %663 = vst [vmem:[%s662] sm:%s3] %v660
    %s664 = scalar_lea.vmem %s0, 332
    %s665 = sshrl.u32 %s3, 1
    %s666 = sor.u32 %s3, %s665
    %s667 = sand.u32 %s666, 85
    %s668 = sshrl.u32 %s667, 1
    %s669 = sor.u32 %s667, %s668
    %s670 = sand.u32 51, %s669
    %s671 = sshrl.u32 %s670, 2
    %s672 = sor.u32 %s670, %s671
    %s673 = sand.u32 15, %s672
    %v674 = vld [vmem:[%s664] sm:%s673]
    %v675 = vunpack.c.l.bf16 %v674
    %v676 = vunpack.c.h.bf16 %v674
    %s677 = scalar_lea.vmem [#allocation1], 664
    %678 = vst [vmem:[%s677] sm:%s3] %v675
    %s679 = scalar_lea.vmem %s0, 328
    %s680 = sshrl.u32 %s3, 1
    %s681 = sor.u32 %s3, %s680
    %s682 = sand.u32 %s681, 85
    %s683 = sshrl.u32 %s682, 1
    %s684 = sor.u32 %s682, %s683
    %s685 = sand.u32 51, %s684
    %s686 = sshrl.u32 %s685, 2
    %s687 = sor.u32 %s685, %s686
    %s688 = sand.u32 15, %s687
    %v689 = vld [vmem:[%s679] sm:%s688]
    %v690 = vunpack.c.l.bf16 %v689
    %v691 = vunpack.c.h.bf16 %v689
    %s692 = scalar_lea.vmem [#allocation1], 656
    %693 = vst [vmem:[%s692] sm:%s3] %v690
    %s694 = scalar_lea.vmem %s0, 324
    %s695 = sshrl.u32 %s3, 1
    %s696 = sor.u32 %s3, %s695
    %s697 = sand.u32 %s696, 85
    %s698 = sshrl.u32 %s697, 1
    %s699 = sor.u32 %s697, %s698
    %s700 = sand.u32 51, %s699
    %s701 = sshrl.u32 %s700, 2
    %s702 = sor.u32 %s700, %s701
    %s703 = sand.u32 15, %s702
    %v704 = vld [vmem:[%s694] sm:%s703]
    %v705 = vunpack.c.l.bf16 %v704
    %v706 = vunpack.c.h.bf16 %v704
    %s707 = scalar_lea.vmem [#allocation1], 648
    %708 = vst [vmem:[%s707] sm:%s3] %v705
    %s709 = scalar_lea.vmem %s0, 320
    %s710 = sshrl.u32 %s3, 1
    %s711 = sor.u32 %s3, %s710
    %s712 = sand.u32 %s711, 85
    %s713 = sshrl.u32 %s712, 1
    %s714 = sor.u32 %s712, %s713
    %s715 = sand.u32 51, %s714
    %s716 = sshrl.u32 %s715, 2
    %s717 = sor.u32 %s715, %s716
    %s718 = sand.u32 15, %s717
    %v719 = vld [vmem:[%s709] sm:%s718]
    %v720 = vunpack.c.l.bf16 %v719
    %v721 = vunpack.c.h.bf16 %v719
    %s722 = scalar_lea.vmem [#allocation1], 640
    %723 = vst [vmem:[%s722] sm:%s3] %v720
    %s724 = scalar_lea.vmem %s0, 316
    %s725 = sshrl.u32 %s3, 1
    %s726 = sor.u32 %s3, %s725
    %s727 = sand.u32 %s726, 85
    %s728 = sshrl.u32 %s727, 1
    %s729 = sor.u32 %s727, %s728
    %s730 = sand.u32 51, %s729
    %s731 = sshrl.u32 %s730, 2
    %s732 = sor.u32 %s730, %s731
    %s733 = sand.u32 15, %s732
    %v734 = vld [vmem:[%s724] sm:%s733]
    %v735 = vunpack.c.l.bf16 %v734
    %v736 = vunpack.c.h.bf16 %v734
    %s737 = scalar_lea.vmem [#allocation1], 632
    %738 = vst [vmem:[%s737] sm:%s3] %v735
    %s739 = scalar_lea.vmem %s0, 312
    %s740 = sshrl.u32 %s3, 1
    %s741 = sor.u32 %s3, %s740
    %s742 = sand.u32 %s741, 85
    %s743 = sshrl.u32 %s742, 1
    %s744 = sor.u32 %s742, %s743
    %s745 = sand.u32 51, %s744
    %s746 = sshrl.u32 %s745, 2
    %s747 = sor.u32 %s745, %s746
    %s748 = sand.u32 15, %s747
    %v749 = vld [vmem:[%s739] sm:%s748]
    %v750 = vunpack.c.l.bf16 %v749
    %v751 = vunpack.c.h.bf16 %v749
    %s752 = scalar_lea.vmem [#allocation1], 624
    %753 = vst [vmem:[%s752] sm:%s3] %v750
    %s754 = scalar_lea.vmem %s0, 308
    %s755 = sshrl.u32 %s3, 1
    %s756 = sor.u32 %s3, %s755
    %s757 = sand.u32 %s756, 85
    %s758 = sshrl.u32 %s757, 1
    %s759 = sor.u32 %s757, %s758
    %s760 = sand.u32 51, %s759
    %s761 = sshrl.u32 %s760, 2
    %s762 = sor.u32 %s760, %s761
    %s763 = sand.u32 15, %s762
    %v764 = vld [vmem:[%s754] sm:%s763]
    %v765 = vunpack.c.l.bf16 %v764
    %v766 = vunpack.c.h.bf16 %v764
    %s767 = scalar_lea.vmem [#allocation1], 616
    %768 = vst [vmem:[%s767] sm:%s3] %v765
    %s769 = scalar_lea.vmem %s0, 304
    %s770 = sshrl.u32 %s3, 1
    %s771 = sor.u32 %s3, %s770
    %s772 = sand.u32 %s771, 85
    %s773 = sshrl.u32 %s772, 1
    %s774 = sor.u32 %s772, %s773
    %s775 = sand.u32 51, %s774
    %s776 = sshrl.u32 %s775, 2
    %s777 = sor.u32 %s775, %s776
    %s778 = sand.u32 15, %s777
    %v779 = vld [vmem:[%s769] sm:%s778]
    %v780 = vunpack.c.l.bf16 %v779
    %v781 = vunpack.c.h.bf16 %v779
    %s782 = scalar_lea.vmem [#allocation1], 608
    %783 = vst [vmem:[%s782] sm:%s3] %v780
    %s784 = scalar_lea.vmem %s0, 300
    %s785 = sshrl.u32 %s3, 1
    %s786 = sor.u32 %s3, %s785
    %s787 = sand.u32 %s786, 85
    %s788 = sshrl.u32 %s787, 1
    %s789 = sor.u32 %s787, %s788
    %s790 = sand.u32 51, %s789
    %s791 = sshrl.u32 %s790, 2
    %s792 = sor.u32 %s790, %s791
    %s793 = sand.u32 15, %s792
    %v794 = vld [vmem:[%s784] sm:%s793]
    %v795 = vunpack.c.l.bf16 %v794
    %v796 = vunpack.c.h.bf16 %v794
    %s797 = scalar_lea.vmem [#allocation1], 600
    %798 = vst [vmem:[%s797] sm:%s3] %v795
    %s799 = scalar_lea.vmem %s0, 296
    %s800 = sshrl.u32 %s3, 1
    %s801 = sor.u32 %s3, %s800
    %s802 = sand.u32 %s801, 85
    %s803 = sshrl.u32 %s802, 1
    %s804 = sor.u32 %s802, %s803
    %s805 = sand.u32 51, %s804
    %s806 = sshrl.u32 %s805, 2
    %s807 = sor.u32 %s805, %s806
    %s808 = sand.u32 15, %s807
    %v809 = vld [vmem:[%s799] sm:%s808]
    %v810 = vunpack.c.l.bf16 %v809
    %v811 = vunpack.c.h.bf16 %v809
    %s812 = scalar_lea.vmem [#allocation1], 592
    %813 = vst [vmem:[%s812] sm:%s3] %v810
    %s814 = scalar_lea.vmem %s0, 292
    %s815 = sshrl.u32 %s3, 1
    %s816 = sor.u32 %s3, %s815
    %s817 = sand.u32 %s816, 85
    %s818 = sshrl.u32 %s817, 1
    %s819 = sor.u32 %s817, %s818
    %s820 = sand.u32 51, %s819
    %s821 = sshrl.u32 %s820, 2
    %s822 = sor.u32 %s820, %s821
    %s823 = sand.u32 15, %s822
    %v824 = vld [vmem:[%s814] sm:%s823]
    %v825 = vunpack.c.l.bf16 %v824
    %v826 = vunpack.c.h.bf16 %v824
    %s827 = scalar_lea.vmem [#allocation1], 584
    %828 = vst [vmem:[%s827] sm:%s3] %v825
    %s829 = scalar_lea.vmem %s0, 288
    %s830 = sshrl.u32 %s3, 1
    %s831 = sor.u32 %s3, %s830
    %s832 = sand.u32 %s831, 85
    %s833 = sshrl.u32 %s832, 1
    %s834 = sor.u32 %s832, %s833
    %s835 = sand.u32 51, %s834
    %s836 = sshrl.u32 %s835, 2
    %s837 = sor.u32 %s835, %s836
    %s838 = sand.u32 15, %s837
    %v839 = vld [vmem:[%s829] sm:%s838]
    %v840 = vunpack.c.l.bf16 %v839
    %v841 = vunpack.c.h.bf16 %v839
    %s842 = scalar_lea.vmem [#allocation1], 576
    %843 = vst [vmem:[%s842] sm:%s3] %v840
    %s844 = scalar_lea.vmem %s0, 284
    %s845 = sshrl.u32 %s3, 1
    %s846 = sor.u32 %s3, %s845
    %s847 = sand.u32 %s846, 85
    %s848 = sshrl.u32 %s847, 1
    %s849 = sor.u32 %s847, %s848
    %s850 = sand.u32 51, %s849
    %s851 = sshrl.u32 %s850, 2
    %s852 = sor.u32 %s850, %s851
    %s853 = sand.u32 15, %s852
    %v854 = vld [vmem:[%s844] sm:%s853]
    %v855 = vunpack.c.l.bf16 %v854
    %v856 = vunpack.c.h.bf16 %v854
    %s857 = scalar_lea.vmem [#allocation1], 568
    %858 = vst [vmem:[%s857] sm:%s3] %v855
    %s859 = scalar_lea.vmem %s0, 280
    %s860 = sshrl.u32 %s3, 1
    %s861 = sor.u32 %s3, %s860
    %s862 = sand.u32 %s861, 85
    %s863 = sshrl.u32 %s862, 1
    %s864 = sor.u32 %s862, %s863
    %s865 = sand.u32 51, %s864
    %s866 = sshrl.u32 %s865, 2
    %s867 = sor.u32 %s865, %s866
    %s868 = sand.u32 15, %s867
    %v869 = vld [vmem:[%s859] sm:%s868]
    %v870 = vunpack.c.l.bf16 %v869
    %v871 = vunpack.c.h.bf16 %v869
    %s872 = scalar_lea.vmem [#allocation1], 560
    %873 = vst [vmem:[%s872] sm:%s3] %v870
    %s874 = scalar_lea.vmem %s0, 276
    %s875 = sshrl.u32 %s3, 1
    %s876 = sor.u32 %s3, %s875
    %s877 = sand.u32 %s876, 85
    %s878 = sshrl.u32 %s877, 1
    %s879 = sor.u32 %s877, %s878
    %s880 = sand.u32 51, %s879
    %s881 = sshrl.u32 %s880, 2
    %s882 = sor.u32 %s880, %s881
    %s883 = sand.u32 15, %s882
    %v884 = vld [vmem:[%s874] sm:%s883]
    %v885 = vunpack.c.l.bf16 %v884
    %v886 = vunpack.c.h.bf16 %v884
    %s887 = scalar_lea.vmem [#allocation1], 552
    %888 = vst [vmem:[%s887] sm:%s3] %v885
    %s889 = scalar_lea.vmem %s0, 272
    %s890 = sshrl.u32 %s3, 1
    %s891 = sor.u32 %s3, %s890
    %s892 = sand.u32 %s891, 85
    %s893 = sshrl.u32 %s892, 1
    %s894 = sor.u32 %s892, %s893
    %s895 = sand.u32 51, %s894
    %s896 = sshrl.u32 %s895, 2
    %s897 = sor.u32 %s895, %s896
    %s898 = sand.u32 15, %s897
    %v899 = vld [vmem:[%s889] sm:%s898]
    %v900 = vunpack.c.l.bf16 %v899
    %v901 = vunpack.c.h.bf16 %v899
    %s902 = scalar_lea.vmem [#allocation1], 544
    %903 = vst [vmem:[%s902] sm:%s3] %v900
    %s904 = scalar_lea.vmem %s0, 268
    %s905 = sshrl.u32 %s3, 1
    %s906 = sor.u32 %s3, %s905
    %s907 = sand.u32 %s906, 85
    %s908 = sshrl.u32 %s907, 1
    %s909 = sor.u32 %s907, %s908
    %s910 = sand.u32 51, %s909
    %s911 = sshrl.u32 %s910, 2
    %s912 = sor.u32 %s910, %s911
    %s913 = sand.u32 15, %s912
    %v914 = vld [vmem:[%s904] sm:%s913]
    %v915 = vunpack.c.l.bf16 %v914
    %v916 = vunpack.c.h.bf16 %v914
    %s917 = scalar_lea.vmem [#allocation1], 536
    %918 = vst [vmem:[%s917] sm:%s3] %v915
    %s919 = scalar_lea.vmem %s0, 264
    %s920 = sshrl.u32 %s3, 1
    %s921 = sor.u32 %s3, %s920
    %s922 = sand.u32 %s921, 85
    %s923 = sshrl.u32 %s922, 1
    %s924 = sor.u32 %s922, %s923
    %s925 = sand.u32 51, %s924
    %s926 = sshrl.u32 %s925, 2
    %s927 = sor.u32 %s925, %s926
    %s928 = sand.u32 15, %s927
    %v929 = vld [vmem:[%s919] sm:%s928]
    %v930 = vunpack.c.l.bf16 %v929
    %v931 = vunpack.c.h.bf16 %v929
    %s932 = scalar_lea.vmem [#allocation1], 528
    %933 = vst [vmem:[%s932] sm:%s3] %v930
    %s934 = scalar_lea.vmem %s0, 260
    %s935 = sshrl.u32 %s3, 1
    %s936 = sor.u32 %s3, %s935
    %s937 = sand.u32 %s936, 85
    %s938 = sshrl.u32 %s937, 1
    %s939 = sor.u32 %s937, %s938
    %s940 = sand.u32 51, %s939
    %s941 = sshrl.u32 %s940, 2
    %s942 = sor.u32 %s940, %s941
    %s943 = sand.u32 15, %s942
    %v944 = vld [vmem:[%s934] sm:%s943]
    %v945 = vunpack.c.l.bf16 %v944
    %v946 = vunpack.c.h.bf16 %v944
    %s947 = scalar_lea.vmem [#allocation1], 520
    %948 = vst [vmem:[%s947] sm:%s3] %v945
    %s949 = scalar_lea.vmem %s0, 256
    %s950 = sshrl.u32 %s3, 1
    %s951 = sor.u32 %s3, %s950
    %s952 = sand.u32 %s951, 85
    %s953 = sshrl.u32 %s952, 1
    %s954 = sor.u32 %s952, %s953
    %s955 = sand.u32 51, %s954
    %s956 = sshrl.u32 %s955, 2
    %s957 = sor.u32 %s955, %s956
    %s958 = sand.u32 15, %s957
    %v959 = vld [vmem:[%s949] sm:%s958]
    %v960 = vunpack.c.l.bf16 %v959
    %v961 = vunpack.c.h.bf16 %v959
    %s962 = scalar_lea.vmem [#allocation1], 512
    %963 = vst [vmem:[%s962] sm:%s3] %v960
    %s964 = scalar_lea.vmem %s0, 252
    %s965 = sshrl.u32 %s3, 1
    %s966 = sor.u32 %s3, %s965
    %s967 = sand.u32 %s966, 85
    %s968 = sshrl.u32 %s967, 1
    %s969 = sor.u32 %s967, %s968
    %s970 = sand.u32 51, %s969
    %s971 = sshrl.u32 %s970, 2
    %s972 = sor.u32 %s970, %s971
    %s973 = sand.u32 15, %s972
    %v974 = vld [vmem:[%s964] sm:%s973]
    %v975 = vunpack.c.l.bf16 %v974
    %v976 = vunpack.c.h.bf16 %v974
    %s977 = scalar_lea.vmem [#allocation1], 504
    %978 = vst [vmem:[%s977] sm:%s3] %v975
    %s979 = scalar_lea.vmem %s0, 248
    %s980 = sshrl.u32 %s3, 1
    %s981 = sor.u32 %s3, %s980
    %s982 = sand.u32 %s981, 85
    %s983 = sshrl.u32 %s982, 1
    %s984 = sor.u32 %s982, %s983
    %s985 = sand.u32 51, %s984
    %s986 = sshrl.u32 %s985, 2
    %s987 = sor.u32 %s985, %s986
    %s988 = sand.u32 15, %s987
    %v989 = vld [vmem:[%s979] sm:%s988]
    %v990 = vunpack.c.l.bf16 %v989
    %v991 = vunpack.c.h.bf16 %v989
    %s992 = scalar_lea.vmem [#allocation1], 496
    %993 = vst [vmem:[%s992] sm:%s3] %v990
    %s994 = scalar_lea.vmem %s0, 244
    %s995 = sshrl.u32 %s3, 1
    %s996 = sor.u32 %s3, %s995
    %s997 = sand.u32 %s996, 85
    %s998 = sshrl.u32 %s997, 1
    %s999 = sor.u32 %s997, %s998
    %s1000 = sand.u32 51, %s999
    %s1001 = sshrl.u32 %s1000, 2
    %s1002 = sor.u32 %s1000, %s1001
    %s1003 = sand.u32 15, %s1002
    %v1004 = vld [vmem:[%s994] sm:%s1003]
    %v1005 = vunpack.c.l.bf16 %v1004
    %v1006 = vunpack.c.h.bf16 %v1004
    %s1007 = scalar_lea.vmem [#allocation1], 488
    %1008 = vst [vmem:[%s1007] sm:%s3] %v1005
    %s1009 = scalar_lea.vmem %s0, 240
    %s1010 = sshrl.u32 %s3, 1
    %s1011 = sor.u32 %s3, %s1010
    %s1012 = sand.u32 %s1011, 85
    %s1013 = sshrl.u32 %s1012, 1
    %s1014 = sor.u32 %s1012, %s1013
    %s1015 = sand.u32 51, %s1014
    %s1016 = sshrl.u32 %s1015, 2
    %s1017 = sor.u32 %s1015, %s1016
    %s1018 = sand.u32 15, %s1017
    %v1019 = vld [vmem:[%s1009] sm:%s1018]
    %v1020 = vunpack.c.l.bf16 %v1019
    %v1021 = vunpack.c.h.bf16 %v1019
    %s1022 = scalar_lea.vmem [#allocation1], 480
    %1023 = vst [vmem:[%s1022] sm:%s3] %v1020
    %s1024 = scalar_lea.vmem %s0, 236
    %s1025 = sshrl.u32 %s3, 1
    %s1026 = sor.u32 %s3, %s1025
    %s1027 = sand.u32 %s1026, 85
    %s1028 = sshrl.u32 %s1027, 1
    %s1029 = sor.u32 %s1027, %s1028
    %s1030 = sand.u32 51, %s1029
    %s1031 = sshrl.u32 %s1030, 2
    %s1032 = sor.u32 %s1030, %s1031
    %s1033 = sand.u32 15, %s1032
    %v1034 = vld [vmem:[%s1024] sm:%s1033]
    %v1035 = vunpack.c.l.bf16 %v1034
    %v1036 = vunpack.c.h.bf16 %v1034
    %s1037 = scalar_lea.vmem [#allocation1], 472
    %1038 = vst [vmem:[%s1037] sm:%s3] %v1035
    %s1039 = scalar_lea.vmem %s0, 232
    %s1040 = sshrl.u32 %s3, 1
    %s1041 = sor.u32 %s3, %s1040
    %s1042 = sand.u32 %s1041, 85
    %s1043 = sshrl.u32 %s1042, 1
    %s1044 = sor.u32 %s1042, %s1043
    %s1045 = sand.u32 51, %s1044
    %s1046 = sshrl.u32 %s1045, 2
    %s1047 = sor.u32 %s1045, %s1046
    %s1048 = sand.u32 15, %s1047
    %v1049 = vld [vmem:[%s1039] sm:%s1048]
    %v1050 = vunpack.c.l.bf16 %v1049
    %v1051 = vunpack.c.h.bf16 %v1049
    %s1052 = scalar_lea.vmem [#allocation1], 464
    %1053 = vst [vmem:[%s1052] sm:%s3] %v1050
    %s1054 = scalar_lea.vmem %s0, 228
    %s1055 = sshrl.u32 %s3, 1
    %s1056 = sor.u32 %s3, %s1055
    %s1057 = sand.u32 %s1056, 85
    %s1058 = sshrl.u32 %s1057, 1
    %s1059 = sor.u32 %s1057, %s1058
    %s1060 = sand.u32 51, %s1059
    %s1061 = sshrl.u32 %s1060, 2
    %s1062 = sor.u32 %s1060, %s1061
    %s1063 = sand.u32 15, %s1062
    %v1064 = vld [vmem:[%s1054] sm:%s1063]
    %v1065 = vunpack.c.l.bf16 %v1064
    %v1066 = vunpack.c.h.bf16 %v1064
    %s1067 = scalar_lea.vmem [#allocation1], 456
    %1068 = vst [vmem:[%s1067] sm:%s3] %v1065
    %s1069 = scalar_lea.vmem %s0, 224
    %s1070 = sshrl.u32 %s3, 1
    %s1071 = sor.u32 %s3, %s1070
    %s1072 = sand.u32 %s1071, 85
    %s1073 = sshrl.u32 %s1072, 1
    %s1074 = sor.u32 %s1072, %s1073
    %s1075 = sand.u32 51, %s1074
    %s1076 = sshrl.u32 %s1075, 2
    %s1077 = sor.u32 %s1075, %s1076
    %s1078 = sand.u32 15, %s1077
    %v1079 = vld [vmem:[%s1069] sm:%s1078]
    %v1080 = vunpack.c.l.bf16 %v1079
    %v1081 = vunpack.c.h.bf16 %v1079
    %s1082 = scalar_lea.vmem [#allocation1], 448
    %1083 = vst [vmem:[%s1082] sm:%s3] %v1080
    %s1084 = scalar_lea.vmem %s0, 220
    %s1085 = sshrl.u32 %s3, 1
    %s1086 = sor.u32 %s3, %s1085
    %s1087 = sand.u32 %s1086, 85
    %s1088 = sshrl.u32 %s1087, 1
    %s1089 = sor.u32 %s1087, %s1088
    %s1090 = sand.u32 51, %s1089
    %s1091 = sshrl.u32 %s1090, 2
    %s1092 = sor.u32 %s1090, %s1091
    %s1093 = sand.u32 15, %s1092
    %v1094 = vld [vmem:[%s1084] sm:%s1093]
    %v1095 = vunpack.c.l.bf16 %v1094
    %v1096 = vunpack.c.h.bf16 %v1094
    %s1097 = scalar_lea.vmem [#allocation1], 440
    %1098 = vst [vmem:[%s1097] sm:%s3] %v1095
    %s1099 = scalar_lea.vmem %s0, 216
    %s1100 = sshrl.u32 %s3, 1
    %s1101 = sor.u32 %s3, %s1100
    %s1102 = sand.u32 %s1101, 85
    %s1103 = sshrl.u32 %s1102, 1
    %s1104 = sor.u32 %s1102, %s1103
    %s1105 = sand.u32 51, %s1104
    %s1106 = sshrl.u32 %s1105, 2
    %s1107 = sor.u32 %s1105, %s1106
    %s1108 = sand.u32 15, %s1107
    %v1109 = vld [vmem:[%s1099] sm:%s1108]
    %v1110 = vunpack.c.l.bf16 %v1109
    %v1111 = vunpack.c.h.bf16 %v1109
    %s1112 = scalar_lea.vmem [#allocation1], 432
    %1113 = vst [vmem:[%s1112] sm:%s3] %v1110
    %s1114 = scalar_lea.vmem %s0, 212
    %s1115 = sshrl.u32 %s3, 1
    %s1116 = sor.u32 %s3, %s1115
    %s1117 = sand.u32 %s1116, 85
    %s1118 = sshrl.u32 %s1117, 1
    %s1119 = sor.u32 %s1117, %s1118
    %s1120 = sand.u32 51, %s1119
    %s1121 = sshrl.u32 %s1120, 2
    %s1122 = sor.u32 %s1120, %s1121
    %s1123 = sand.u32 15, %s1122
    %v1124 = vld [vmem:[%s1114] sm:%s1123]
    %v1125 = vunpack.c.l.bf16 %v1124
    %v1126 = vunpack.c.h.bf16 %v1124
    %s1127 = scalar_lea.vmem [#allocation1], 424
    %1128 = vst [vmem:[%s1127] sm:%s3] %v1125
    %s1129 = scalar_lea.vmem %s0, 208
    %s1130 = sshrl.u32 %s3, 1
    %s1131 = sor.u32 %s3, %s1130
    %s1132 = sand.u32 %s1131, 85
    %s1133 = sshrl.u32 %s1132, 1
    %s1134 = sor.u32 %s1132, %s1133
    %s1135 = sand.u32 51, %s1134
    %s1136 = sshrl.u32 %s1135, 2
    %s1137 = sor.u32 %s1135, %s1136
    %s1138 = sand.u32 15, %s1137
    %v1139 = vld [vmem:[%s1129] sm:%s1138]
    %v1140 = vunpack.c.l.bf16 %v1139
    %v1141 = vunpack.c.h.bf16 %v1139
    %s1142 = scalar_lea.vmem [#allocation1], 416
    %1143 = vst [vmem:[%s1142] sm:%s3] %v1140
    %s1144 = scalar_lea.vmem %s0, 204
    %s1145 = sshrl.u32 %s3, 1
    %s1146 = sor.u32 %s3, %s1145
    %s1147 = sand.u32 %s1146, 85
    %s1148 = sshrl.u32 %s1147, 1
    %s1149 = sor.u32 %s1147, %s1148
    %s1150 = sand.u32 51, %s1149
    %s1151 = sshrl.u32 %s1150, 2
    %s1152 = sor.u32 %s1150, %s1151
    %s1153 = sand.u32 15, %s1152
    %v1154 = vld [vmem:[%s1144] sm:%s1153]
    %v1155 = vunpack.c.l.bf16 %v1154
    %v1156 = vunpack.c.h.bf16 %v1154
    %s1157 = scalar_lea.vmem [#allocation1], 408
    %1158 = vst [vmem:[%s1157] sm:%s3] %v1155
    %s1159 = scalar_lea.vmem %s0, 200
    %s1160 = sshrl.u32 %s3, 1
    %s1161 = sor.u32 %s3, %s1160
    %s1162 = sand.u32 %s1161, 85
    %s1163 = sshrl.u32 %s1162, 1
    %s1164 = sor.u32 %s1162, %s1163
    %s1165 = sand.u32 51, %s1164
    %s1166 = sshrl.u32 %s1165, 2
    %s1167 = sor.u32 %s1165, %s1166
    %s1168 = sand.u32 15, %s1167
    %v1169 = vld [vmem:[%s1159] sm:%s1168]
    %v1170 = vunpack.c.l.bf16 %v1169
    %v1171 = vunpack.c.h.bf16 %v1169
    %s1172 = scalar_lea.vmem [#allocation1], 400
    %1173 = vst [vmem:[%s1172] sm:%s3] %v1170
    %s1174 = scalar_lea.vmem %s0, 196
    %s1175 = sshrl.u32 %s3, 1
    %s1176 = sor.u32 %s3, %s1175
    %s1177 = sand.u32 %s1176, 85
    %s1178 = sshrl.u32 %s1177, 1
    %s1179 = sor.u32 %s1177, %s1178
    %s1180 = sand.u32 51, %s1179
    %s1181 = sshrl.u32 %s1180, 2
    %s1182 = sor.u32 %s1180, %s1181
    %s1183 = sand.u32 15, %s1182
    %v1184 = vld [vmem:[%s1174] sm:%s1183]
    %v1185 = vunpack.c.l.bf16 %v1184
    %v1186 = vunpack.c.h.bf16 %v1184
    %s1187 = scalar_lea.vmem [#allocation1], 392
    %1188 = vst [vmem:[%s1187] sm:%s3] %v1185
    %s1189 = scalar_lea.vmem %s0, 192
    %s1190 = sshrl.u32 %s3, 1
    %s1191 = sor.u32 %s3, %s1190
    %s1192 = sand.u32 %s1191, 85
    %s1193 = sshrl.u32 %s1192, 1
    %s1194 = sor.u32 %s1192, %s1193
    %s1195 = sand.u32 51, %s1194
    %s1196 = sshrl.u32 %s1195, 2
    %s1197 = sor.u32 %s1195, %s1196
    %s1198 = sand.u32 15, %s1197
    %v1199 = vld [vmem:[%s1189] sm:%s1198]
    %v1200 = vunpack.c.l.bf16 %v1199
    %v1201 = vunpack.c.h.bf16 %v1199
    %s1202 = scalar_lea.vmem [#allocation1], 384
    %1203 = vst [vmem:[%s1202] sm:%s3] %v1200
    %s1204 = scalar_lea.vmem %s0, 188
    %s1205 = sshrl.u32 %s3, 1
    %s1206 = sor.u32 %s3, %s1205
    %s1207 = sand.u32 %s1206, 85
    %s1208 = sshrl.u32 %s1207, 1
    %s1209 = sor.u32 %s1207, %s1208
    %s1210 = sand.u32 51, %s1209
    %s1211 = sshrl.u32 %s1210, 2
    %s1212 = sor.u32 %s1210, %s1211
    %s1213 = sand.u32 15, %s1212
    %v1214 = vld [vmem:[%s1204] sm:%s1213]
    %v1215 = vunpack.c.l.bf16 %v1214
    %v1216 = vunpack.c.h.bf16 %v1214
    %s1217 = scalar_lea.vmem [#allocation1], 376
    %1218 = vst [vmem:[%s1217] sm:%s3] %v1215
    %s1219 = scalar_lea.vmem %s0, 184
    %s1220 = sshrl.u32 %s3, 1
    %s1221 = sor.u32 %s3, %s1220
    %s1222 = sand.u32 %s1221, 85
    %s1223 = sshrl.u32 %s1222, 1
    %s1224 = sor.u32 %s1222, %s1223
    %s1225 = sand.u32 51, %s1224
    %s1226 = sshrl.u32 %s1225, 2
    %s1227 = sor.u32 %s1225, %s1226
    %s1228 = sand.u32 15, %s1227
    %v1229 = vld [vmem:[%s1219] sm:%s1228]
    %v1230 = vunpack.c.l.bf16 %v1229
    %v1231 = vunpack.c.h.bf16 %v1229
    %s1232 = scalar_lea.vmem [#allocation1], 368
    %1233 = vst [vmem:[%s1232] sm:%s3] %v1230
    %s1234 = scalar_lea.vmem %s0, 180
    %s1235 = sshrl.u32 %s3, 1
    %s1236 = sor.u32 %s3, %s1235
    %s1237 = sand.u32 %s1236, 85
    %s1238 = sshrl.u32 %s1237, 1
    %s1239 = sor.u32 %s1237, %s1238
    %s1240 = sand.u32 51, %s1239
    %s1241 = sshrl.u32 %s1240, 2
    %s1242 = sor.u32 %s1240, %s1241
    %s1243 = sand.u32 15, %s1242
    %v1244 = vld [vmem:[%s1234] sm:%s1243]
    %v1245 = vunpack.c.l.bf16 %v1244
    %v1246 = vunpack.c.h.bf16 %v1244
    %s1247 = scalar_lea.vmem [#allocation1], 360
    %1248 = vst [vmem:[%s1247] sm:%s3] %v1245
    %s1249 = scalar_lea.vmem %s0, 176
    %s1250 = sshrl.u32 %s3, 1
    %s1251 = sor.u32 %s3, %s1250
    %s1252 = sand.u32 %s1251, 85
    %s1253 = sshrl.u32 %s1252, 1
    %s1254 = sor.u32 %s1252, %s1253
    %s1255 = sand.u32 51, %s1254
    %s1256 = sshrl.u32 %s1255, 2
    %s1257 = sor.u32 %s1255, %s1256
    %s1258 = sand.u32 15, %s1257
    %v1259 = vld [vmem:[%s1249] sm:%s1258]
    %v1260 = vunpack.c.l.bf16 %v1259
    %v1261 = vunpack.c.h.bf16 %v1259
    %s1262 = scalar_lea.vmem [#allocation1], 352
    %1263 = vst [vmem:[%s1262] sm:%s3] %v1260
    %s1264 = scalar_lea.vmem %s0, 172
    %s1265 = sshrl.u32 %s3, 1
    %s1266 = sor.u32 %s3, %s1265
    %s1267 = sand.u32 %s1266, 85
    %s1268 = sshrl.u32 %s1267, 1
    %s1269 = sor.u32 %s1267, %s1268
    %s1270 = sand.u32 51, %s1269
    %s1271 = sshrl.u32 %s1270, 2
    %s1272 = sor.u32 %s1270, %s1271
    %s1273 = sand.u32 15, %s1272
    %v1274 = vld [vmem:[%s1264] sm:%s1273]
    %v1275 = vunpack.c.l.bf16 %v1274
    %v1276 = vunpack.c.h.bf16 %v1274
    %s1277 = scalar_lea.vmem [#allocation1], 344
    %1278 = vst [vmem:[%s1277] sm:%s3] %v1275
    %s1279 = scalar_lea.vmem %s0, 168
    %s1280 = sshrl.u32 %s3, 1
    %s1281 = sor.u32 %s3, %s1280
    %s1282 = sand.u32 %s1281, 85
    %s1283 = sshrl.u32 %s1282, 1
    %s1284 = sor.u32 %s1282, %s1283
    %s1285 = sand.u32 51, %s1284
    %s1286 = sshrl.u32 %s1285, 2
    %s1287 = sor.u32 %s1285, %s1286
    %s1288 = sand.u32 15, %s1287
    %v1289 = vld [vmem:[%s1279] sm:%s1288]
    %v1290 = vunpack.c.l.bf16 %v1289
    %v1291 = vunpack.c.h.bf16 %v1289
    %s1292 = scalar_lea.vmem [#allocation1], 336
    %1293 = vst [vmem:[%s1292] sm:%s3] %v1290
    %s1294 = scalar_lea.vmem %s0, 164
    %s1295 = sshrl.u32 %s3, 1
    %s1296 = sor.u32 %s3, %s1295
    %s1297 = sand.u32 %s1296, 85
    %s1298 = sshrl.u32 %s1297, 1
    %s1299 = sor.u32 %s1297, %s1298
    %s1300 = sand.u32 51, %s1299
    %s1301 = sshrl.u32 %s1300, 2
    %s1302 = sor.u32 %s1300, %s1301
    %s1303 = sand.u32 15, %s1302
    %v1304 = vld [vmem:[%s1294] sm:%s1303]
    %v1305 = vunpack.c.l.bf16 %v1304
    %v1306 = vunpack.c.h.bf16 %v1304
    %s1307 = scalar_lea.vmem [#allocation1], 328
    %1308 = vst [vmem:[%s1307] sm:%s3] %v1305
    %s1309 = scalar_lea.vmem %s0, 160
    %s1310 = sshrl.u32 %s3, 1
    %s1311 = sor.u32 %s3, %s1310
    %s1312 = sand.u32 %s1311, 85
    %s1313 = sshrl.u32 %s1312, 1
    %s1314 = sor.u32 %s1312, %s1313
    %s1315 = sand.u32 51, %s1314
    %s1316 = sshrl.u32 %s1315, 2
    %s1317 = sor.u32 %s1315, %s1316
    %s1318 = sand.u32 15, %s1317
    %v1319 = vld [vmem:[%s1309] sm:%s1318]
    %v1320 = vunpack.c.l.bf16 %v1319
    %v1321 = vunpack.c.h.bf16 %v1319
    %s1322 = scalar_lea.vmem [#allocation1], 320
    %1323 = vst [vmem:[%s1322] sm:%s3] %v1320
    %s1324 = scalar_lea.vmem %s0, 156
    %s1325 = sshrl.u32 %s3, 1
    %s1326 = sor.u32 %s3, %s1325
    %s1327 = sand.u32 %s1326, 85
    %s1328 = sshrl.u32 %s1327, 1
    %s1329 = sor.u32 %s1327, %s1328
    %s1330 = sand.u32 51, %s1329
    %s1331 = sshrl.u32 %s1330, 2
    %s1332 = sor.u32 %s1330, %s1331
    %s1333 = sand.u32 15, %s1332
    %v1334 = vld [vmem:[%s1324] sm:%s1333]
    %v1335 = vunpack.c.l.bf16 %v1334
    %v1336 = vunpack.c.h.bf16 %v1334
    %s1337 = scalar_lea.vmem [#allocation1], 312
    %1338 = vst [vmem:[%s1337] sm:%s3] %v1335
    %s1339 = scalar_lea.vmem %s0, 152
    %s1340 = sshrl.u32 %s3, 1
    %s1341 = sor.u32 %s3, %s1340
    %s1342 = sand.u32 %s1341, 85
    %s1343 = sshrl.u32 %s1342, 1
    %s1344 = sor.u32 %s1342, %s1343
    %s1345 = sand.u32 51, %s1344
    %s1346 = sshrl.u32 %s1345, 2
    %s1347 = sor.u32 %s1345, %s1346
    %s1348 = sand.u32 15, %s1347
    %v1349 = vld [vmem:[%s1339] sm:%s1348]
    %v1350 = vunpack.c.l.bf16 %v1349
    %v1351 = vunpack.c.h.bf16 %v1349
    %s1352 = scalar_lea.vmem [#allocation1], 304
    %1353 = vst [vmem:[%s1352] sm:%s3] %v1350
    %s1354 = scalar_lea.vmem %s0, 148
    %s1355 = sshrl.u32 %s3, 1
    %s1356 = sor.u32 %s3, %s1355
    %s1357 = sand.u32 %s1356, 85
    %s1358 = sshrl.u32 %s1357, 1
    %s1359 = sor.u32 %s1357, %s1358
    %s1360 = sand.u32 51, %s1359
    %s1361 = sshrl.u32 %s1360, 2
    %s1362 = sor.u32 %s1360, %s1361
    %s1363 = sand.u32 15, %s1362
    %v1364 = vld [vmem:[%s1354] sm:%s1363]
    %v1365 = vunpack.c.l.bf16 %v1364
    %v1366 = vunpack.c.h.bf16 %v1364
    %s1367 = scalar_lea.vmem [#allocation1], 296
    %1368 = vst [vmem:[%s1367] sm:%s3] %v1365
    %s1369 = scalar_lea.vmem %s0, 144
    %s1370 = sshrl.u32 %s3, 1
    %s1371 = sor.u32 %s3, %s1370
    %s1372 = sand.u32 %s1371, 85
    %s1373 = sshrl.u32 %s1372, 1
    %s1374 = sor.u32 %s1372, %s1373
    %s1375 = sand.u32 51, %s1374
    %s1376 = sshrl.u32 %s1375, 2
    %s1377 = sor.u32 %s1375, %s1376
    %s1378 = sand.u32 15, %s1377
    %v1379 = vld [vmem:[%s1369] sm:%s1378]
    %v1380 = vunpack.c.l.bf16 %v1379
    %v1381 = vunpack.c.h.bf16 %v1379
    %s1382 = scalar_lea.vmem [#allocation1], 288
    %1383 = vst [vmem:[%s1382] sm:%s3] %v1380
    %s1384 = scalar_lea.vmem %s0, 140
    %s1385 = sshrl.u32 %s3, 1
    %s1386 = sor.u32 %s3, %s1385
    %s1387 = sand.u32 %s1386, 85
    %s1388 = sshrl.u32 %s1387, 1
    %s1389 = sor.u32 %s1387, %s1388
    %s1390 = sand.u32 51, %s1389
    %s1391 = sshrl.u32 %s1390, 2
    %s1392 = sor.u32 %s1390, %s1391
    %s1393 = sand.u32 15, %s1392
    %v1394 = vld [vmem:[%s1384] sm:%s1393]
    %v1395 = vunpack.c.l.bf16 %v1394
    %v1396 = vunpack.c.h.bf16 %v1394
    %s1397 = scalar_lea.vmem [#allocation1], 280
    %1398 = vst [vmem:[%s1397] sm:%s3] %v1395
    %s1399 = scalar_lea.vmem %s0, 136
    %s1400 = sshrl.u32 %s3, 1
    %s1401 = sor.u32 %s3, %s1400
    %s1402 = sand.u32 %s1401, 85
    %s1403 = sshrl.u32 %s1402, 1
    %s1404 = sor.u32 %s1402, %s1403
    %s1405 = sand.u32 51, %s1404
    %s1406 = sshrl.u32 %s1405, 2
    %s1407 = sor.u32 %s1405, %s1406
    %s1408 = sand.u32 15, %s1407
    %v1409 = vld [vmem:[%s1399] sm:%s1408]
    %v1410 = vunpack.c.l.bf16 %v1409
    %v1411 = vunpack.c.h.bf16 %v1409
    %s1412 = scalar_lea.vmem [#allocation1], 272
    %1413 = vst [vmem:[%s1412] sm:%s3] %v1410
    %s1414 = scalar_lea.vmem %s0, 132
    %s1415 = sshrl.u32 %s3, 1
    %s1416 = sor.u32 %s3, %s1415
    %s1417 = sand.u32 %s1416, 85
    %s1418 = sshrl.u32 %s1417, 1
    %s1419 = sor.u32 %s1417, %s1418
    %s1420 = sand.u32 51, %s1419
    %s1421 = sshrl.u32 %s1420, 2
    %s1422 = sor.u32 %s1420, %s1421
    %s1423 = sand.u32 15, %s1422
    %v1424 = vld [vmem:[%s1414] sm:%s1423]
    %v1425 = vunpack.c.l.bf16 %v1424
    %v1426 = vunpack.c.h.bf16 %v1424
    %s1427 = scalar_lea.vmem [#allocation1], 264
    %1428 = vst [vmem:[%s1427] sm:%s3] %v1425
    %s1429 = scalar_lea.vmem %s0, 128
    %s1430 = sshrl.u32 %s3, 1
    %s1431 = sor.u32 %s3, %s1430
    %s1432 = sand.u32 %s1431, 85
    %s1433 = sshrl.u32 %s1432, 1
    %s1434 = sor.u32 %s1432, %s1433
    %s1435 = sand.u32 51, %s1434
    %s1436 = sshrl.u32 %s1435, 2
    %s1437 = sor.u32 %s1435, %s1436
    %s1438 = sand.u32 15, %s1437
    %v1439 = vld [vmem:[%s1429] sm:%s1438]
    %v1440 = vunpack.c.l.bf16 %v1439
    %v1441 = vunpack.c.h.bf16 %v1439
    %s1442 = scalar_lea.vmem [#allocation1], 256
    %1443 = vst [vmem:[%s1442] sm:%s3] %v1440
    %s1444 = scalar_lea.vmem %s0, 124
    %s1445 = sshrl.u32 %s3, 1
    %s1446 = sor.u32 %s3, %s1445
    %s1447 = sand.u32 %s1446, 85
    %s1448 = sshrl.u32 %s1447, 1
    %s1449 = sor.u32 %s1447, %s1448
    %s1450 = sand.u32 51, %s1449
    %s1451 = sshrl.u32 %s1450, 2
    %s1452 = sor.u32 %s1450, %s1451
    %s1453 = sand.u32 15, %s1452
    %v1454 = vld [vmem:[%s1444] sm:%s1453]
    %v1455 = vunpack.c.l.bf16 %v1454
    %v1456 = vunpack.c.h.bf16 %v1454
    %s1457 = scalar_lea.vmem [#allocation1], 248
    %1458 = vst [vmem:[%s1457] sm:%s3] %v1455
    %s1459 = scalar_lea.vmem %s0, 120
    %s1460 = sshrl.u32 %s3, 1
    %s1461 = sor.u32 %s3, %s1460
    %s1462 = sand.u32 %s1461, 85
    %s1463 = sshrl.u32 %s1462, 1
    %s1464 = sor.u32 %s1462, %s1463
    %s1465 = sand.u32 51, %s1464
    %s1466 = sshrl.u32 %s1465, 2
    %s1467 = sor.u32 %s1465, %s1466
    %s1468 = sand.u32 15, %s1467
    %v1469 = vld [vmem:[%s1459] sm:%s1468]
    %v1470 = vunpack.c.l.bf16 %v1469
    %v1471 = vunpack.c.h.bf16 %v1469
    %s1472 = scalar_lea.vmem [#allocation1], 240
    %1473 = vst [vmem:[%s1472] sm:%s3] %v1470
    %s1474 = scalar_lea.vmem %s0, 116
    %s1475 = sshrl.u32 %s3, 1
    %s1476 = sor.u32 %s3, %s1475
    %s1477 = sand.u32 %s1476, 85
    %s1478 = sshrl.u32 %s1477, 1
    %s1479 = sor.u32 %s1477, %s1478
    %s1480 = sand.u32 51, %s1479
    %s1481 = sshrl.u32 %s1480, 2
    %s1482 = sor.u32 %s1480, %s1481
    %s1483 = sand.u32 15, %s1482
    %v1484 = vld [vmem:[%s1474] sm:%s1483]
    %v1485 = vunpack.c.l.bf16 %v1484
    %v1486 = vunpack.c.h.bf16 %v1484
    %s1487 = scalar_lea.vmem [#allocation1], 232
    %1488 = vst [vmem:[%s1487] sm:%s3] %v1485
    %s1489 = scalar_lea.vmem %s0, 112
    %s1490 = sshrl.u32 %s3, 1
    %s1491 = sor.u32 %s3, %s1490
    %s1492 = sand.u32 %s1491, 85
    %s1493 = sshrl.u32 %s1492, 1
    %s1494 = sor.u32 %s1492, %s1493
    %s1495 = sand.u32 51, %s1494
    %s1496 = sshrl.u32 %s1495, 2
    %s1497 = sor.u32 %s1495, %s1496
    %s1498 = sand.u32 15, %s1497
    %v1499 = vld [vmem:[%s1489] sm:%s1498]
    %v1500 = vunpack.c.l.bf16 %v1499
    %v1501 = vunpack.c.h.bf16 %v1499
    %s1502 = scalar_lea.vmem [#allocation1], 224
    %1503 = vst [vmem:[%s1502] sm:%s3] %v1500
    %s1504 = scalar_lea.vmem %s0, 108
    %s1505 = sshrl.u32 %s3, 1
    %s1506 = sor.u32 %s3, %s1505
    %s1507 = sand.u32 %s1506, 85
    %s1508 = sshrl.u32 %s1507, 1
    %s1509 = sor.u32 %s1507, %s1508
    %s1510 = sand.u32 51, %s1509
    %s1511 = sshrl.u32 %s1510, 2
    %s1512 = sor.u32 %s1510, %s1511
    %s1513 = sand.u32 15, %s1512
    %v1514 = vld [vmem:[%s1504] sm:%s1513]
    %v1515 = vunpack.c.l.bf16 %v1514
    %v1516 = vunpack.c.h.bf16 %v1514
    %s1517 = scalar_lea.vmem [#allocation1], 216
    %1518 = vst [vmem:[%s1517] sm:%s3] %v1515
    %s1519 = scalar_lea.vmem %s0, 104
    %s1520 = sshrl.u32 %s3, 1
    %s1521 = sor.u32 %s3, %s1520
    %s1522 = sand.u32 %s1521, 85
    %s1523 = sshrl.u32 %s1522, 1
    %s1524 = sor.u32 %s1522, %s1523
    %s1525 = sand.u32 51, %s1524
    %s1526 = sshrl.u32 %s1525, 2
    %s1527 = sor.u32 %s1525, %s1526
    %s1528 = sand.u32 15, %s1527
    %v1529 = vld [vmem:[%s1519] sm:%s1528]
    %v1530 = vunpack.c.l.bf16 %v1529
    %v1531 = vunpack.c.h.bf16 %v1529
    %s1532 = scalar_lea.vmem [#allocation1], 208
    %1533 = vst [vmem:[%s1532] sm:%s3] %v1530
    %s1534 = scalar_lea.vmem %s0, 100
    %s1535 = sshrl.u32 %s3, 1
    %s1536 = sor.u32 %s3, %s1535
    %s1537 = sand.u32 %s1536, 85
    %s1538 = sshrl.u32 %s1537, 1
    %s1539 = sor.u32 %s1537, %s1538
    %s1540 = sand.u32 51, %s1539
    %s1541 = sshrl.u32 %s1540, 2
    %s1542 = sor.u32 %s1540, %s1541
    %s1543 = sand.u32 15, %s1542
    %v1544 = vld [vmem:[%s1534] sm:%s1543]
    %v1545 = vunpack.c.l.bf16 %v1544
    %v1546 = vunpack.c.h.bf16 %v1544
    %s1547 = scalar_lea.vmem [#allocation1], 200
    %1548 = vst [vmem:[%s1547] sm:%s3] %v1545
    %s1549 = scalar_lea.vmem %s0, 96
    %s1550 = sshrl.u32 %s3, 1
    %s1551 = sor.u32 %s3, %s1550
    %s1552 = sand.u32 %s1551, 85
    %s1553 = sshrl.u32 %s1552, 1
    %s1554 = sor.u32 %s1552, %s1553
    %s1555 = sand.u32 51, %s1554
    %s1556 = sshrl.u32 %s1555, 2
    %s1557 = sor.u32 %s1555, %s1556
    %s1558 = sand.u32 15, %s1557
    %v1559 = vld [vmem:[%s1549] sm:%s1558]
    %v1560 = vunpack.c.l.bf16 %v1559
    %v1561 = vunpack.c.h.bf16 %v1559
    %s1562 = scalar_lea.vmem [#allocation1], 192
    %1563 = vst [vmem:[%s1562] sm:%s3] %v1560
    %s1564 = scalar_lea.vmem %s0, 92
    %s1565 = sshrl.u32 %s3, 1
    %s1566 = sor.u32 %s3, %s1565
    %s1567 = sand.u32 %s1566, 85
    %s1568 = sshrl.u32 %s1567, 1
    %s1569 = sor.u32 %s1567, %s1568
    %s1570 = sand.u32 51, %s1569
    %s1571 = sshrl.u32 %s1570, 2
    %s1572 = sor.u32 %s1570, %s1571
    %s1573 = sand.u32 15, %s1572
    %v1574 = vld [vmem:[%s1564] sm:%s1573]
    %v1575 = vunpack.c.l.bf16 %v1574
    %v1576 = vunpack.c.h.bf16 %v1574
    %s1577 = scalar_lea.vmem [#allocation1], 184
    %1578 = vst [vmem:[%s1577] sm:%s3] %v1575
    %s1579 = scalar_lea.vmem %s0, 88
    %s1580 = sshrl.u32 %s3, 1
    %s1581 = sor.u32 %s3, %s1580
    %s1582 = sand.u32 %s1581, 85
    %s1583 = sshrl.u32 %s1582, 1
    %s1584 = sor.u32 %s1582, %s1583
    %s1585 = sand.u32 51, %s1584
    %s1586 = sshrl.u32 %s1585, 2
    %s1587 = sor.u32 %s1585, %s1586
    %s1588 = sand.u32 15, %s1587
    %v1589 = vld [vmem:[%s1579] sm:%s1588]
    %v1590 = vunpack.c.l.bf16 %v1589
    %v1591 = vunpack.c.h.bf16 %v1589
    %s1592 = scalar_lea.vmem [#allocation1], 176
    %1593 = vst [vmem:[%s1592] sm:%s3] %v1590
    %s1594 = scalar_lea.vmem %s0, 84
    %s1595 = sshrl.u32 %s3, 1
    %s1596 = sor.u32 %s3, %s1595
    %s1597 = sand.u32 %s1596, 85
    %s1598 = sshrl.u32 %s1597, 1
    %s1599 = sor.u32 %s1597, %s1598
    %s1600 = sand.u32 51, %s1599
    %s1601 = sshrl.u32 %s1600, 2
    %s1602 = sor.u32 %s1600, %s1601
    %s1603 = sand.u32 15, %s1602
    %v1604 = vld [vmem:[%s1594] sm:%s1603]
    %v1605 = vunpack.c.l.bf16 %v1604
    %v1606 = vunpack.c.h.bf16 %v1604
    %s1607 = scalar_lea.vmem [#allocation1], 168
    %1608 = vst [vmem:[%s1607] sm:%s3] %v1605
    %s1609 = scalar_lea.vmem %s0, 80
    %s1610 = sshrl.u32 %s3, 1
    %s1611 = sor.u32 %s3, %s1610
    %s1612 = sand.u32 %s1611, 85
    %s1613 = sshrl.u32 %s1612, 1
    %s1614 = sor.u32 %s1612, %s1613
    %s1615 = sand.u32 51, %s1614
    %s1616 = sshrl.u32 %s1615, 2
    %s1617 = sor.u32 %s1615, %s1616
    %s1618 = sand.u32 15, %s1617
    %v1619 = vld [vmem:[%s1609] sm:%s1618]
    %v1620 = vunpack.c.l.bf16 %v1619
    %v1621 = vunpack.c.h.bf16 %v1619
    %s1622 = scalar_lea.vmem [#allocation1], 160
    %1623 = vst [vmem:[%s1622] sm:%s3] %v1620
    %s1624 = scalar_lea.vmem %s0, 76
    %s1625 = sshrl.u32 %s3, 1
    %s1626 = sor.u32 %s3, %s1625
    %s1627 = sand.u32 %s1626, 85
    %s1628 = sshrl.u32 %s1627, 1
    %s1629 = sor.u32 %s1627, %s1628
    %s1630 = sand.u32 51, %s1629
    %s1631 = sshrl.u32 %s1630, 2
    %s1632 = sor.u32 %s1630, %s1631
    %s1633 = sand.u32 15, %s1632
    %v1634 = vld [vmem:[%s1624] sm:%s1633]
    %v1635 = vunpack.c.l.bf16 %v1634
    %v1636 = vunpack.c.h.bf16 %v1634
    %s1637 = scalar_lea.vmem [#allocation1], 152
    %1638 = vst [vmem:[%s1637] sm:%s3] %v1635
    %s1639 = scalar_lea.vmem %s0, 72
    %s1640 = sshrl.u32 %s3, 1
    %s1641 = sor.u32 %s3, %s1640
    %s1642 = sand.u32 %s1641, 85
    %s1643 = sshrl.u32 %s1642, 1
    %s1644 = sor.u32 %s1642, %s1643
    %s1645 = sand.u32 51, %s1644
    %s1646 = sshrl.u32 %s1645, 2
    %s1647 = sor.u32 %s1645, %s1646
    %s1648 = sand.u32 15, %s1647
    %v1649 = vld [vmem:[%s1639] sm:%s1648]
    %v1650 = vunpack.c.l.bf16 %v1649
    %v1651 = vunpack.c.h.bf16 %v1649
    %s1652 = scalar_lea.vmem [#allocation1], 144
    %1653 = vst [vmem:[%s1652] sm:%s3] %v1650
    %s1654 = scalar_lea.vmem %s0, 68
    %s1655 = sshrl.u32 %s3, 1
    %s1656 = sor.u32 %s3, %s1655
    %s1657 = sand.u32 %s1656, 85
    %s1658 = sshrl.u32 %s1657, 1
    %s1659 = sor.u32 %s1657, %s1658
    %s1660 = sand.u32 51, %s1659
    %s1661 = sshrl.u32 %s1660, 2
    %s1662 = sor.u32 %s1660, %s1661
    %s1663 = sand.u32 15, %s1662
    %v1664 = vld [vmem:[%s1654] sm:%s1663]
    %v1665 = vunpack.c.l.bf16 %v1664
    %v1666 = vunpack.c.h.bf16 %v1664
    %s1667 = scalar_lea.vmem [#allocation1], 136
    %1668 = vst [vmem:[%s1667] sm:%s3] %v1665
    %s1669 = scalar_lea.vmem %s0, 64
    %s1670 = sshrl.u32 %s3, 1
    %s1671 = sor.u32 %s3, %s1670
    %s1672 = sand.u32 %s1671, 85
    %s1673 = sshrl.u32 %s1672, 1
    %s1674 = sor.u32 %s1672, %s1673
    %s1675 = sand.u32 51, %s1674
    %s1676 = sshrl.u32 %s1675, 2
    %s1677 = sor.u32 %s1675, %s1676
    %s1678 = sand.u32 15, %s1677
    %v1679 = vld [vmem:[%s1669] sm:%s1678]
    %v1680 = vunpack.c.l.bf16 %v1679
    %v1681 = vunpack.c.h.bf16 %v1679
    %s1682 = scalar_lea.vmem [#allocation1], 128
    %1683 = vst [vmem:[%s1682] sm:%s3] %v1680
    %s1684 = scalar_lea.vmem %s0, 60
    %s1685 = sshrl.u32 %s3, 1
    %s1686 = sor.u32 %s3, %s1685
    %s1687 = sand.u32 %s1686, 85
    %s1688 = sshrl.u32 %s1687, 1
    %s1689 = sor.u32 %s1687, %s1688
    %s1690 = sand.u32 51, %s1689
    %s1691 = sshrl.u32 %s1690, 2
    %s1692 = sor.u32 %s1690, %s1691
    %s1693 = sand.u32 15, %s1692
    %v1694 = vld [vmem:[%s1684] sm:%s1693]
    %v1695 = vunpack.c.l.bf16 %v1694
    %v1696 = vunpack.c.h.bf16 %v1694
    %s1697 = scalar_lea.vmem [#allocation1], 120
    %1698 = vst [vmem:[%s1697] sm:%s3] %v1695
    %s1699 = scalar_lea.vmem %s0, 56
    %s1700 = sshrl.u32 %s3, 1
    %s1701 = sor.u32 %s3, %s1700
    %s1702 = sand.u32 %s1701, 85
    %s1703 = sshrl.u32 %s1702, 1
    %s1704 = sor.u32 %s1702, %s1703
    %s1705 = sand.u32 51, %s1704
    %s1706 = sshrl.u32 %s1705, 2
    %s1707 = sor.u32 %s1705, %s1706
    %s1708 = sand.u32 15, %s1707
    %v1709 = vld [vmem:[%s1699] sm:%s1708]
    %v1710 = vunpack.c.l.bf16 %v1709
    %v1711 = vunpack.c.h.bf16 %v1709
    %s1712 = scalar_lea.vmem [#allocation1], 112
    %1713 = vst [vmem:[%s1712] sm:%s3] %v1710
    %s1714 = scalar_lea.vmem %s0, 52
    %s1715 = sshrl.u32 %s3, 1
    %s1716 = sor.u32 %s3, %s1715
    %s1717 = sand.u32 %s1716, 85
    %s1718 = sshrl.u32 %s1717, 1
    %s1719 = sor.u32 %s1717, %s1718
    %s1720 = sand.u32 51, %s1719
    %s1721 = sshrl.u32 %s1720, 2
    %s1722 = sor.u32 %s1720, %s1721
    %s1723 = sand.u32 15, %s1722
    %v1724 = vld [vmem:[%s1714] sm:%s1723]
    %v1725 = vunpack.c.l.bf16 %v1724
    %v1726 = vunpack.c.h.bf16 %v1724
    %s1727 = scalar_lea.vmem [#allocation1], 104
    %1728 = vst [vmem:[%s1727] sm:%s3] %v1725
    %s1729 = scalar_lea.vmem %s0, 48
    %s1730 = sshrl.u32 %s3, 1
    %s1731 = sor.u32 %s3, %s1730
    %s1732 = sand.u32 %s1731, 85
    %s1733 = sshrl.u32 %s1732, 1
    %s1734 = sor.u32 %s1732, %s1733
    %s1735 = sand.u32 51, %s1734
    %s1736 = sshrl.u32 %s1735, 2
    %s1737 = sor.u32 %s1735, %s1736
    %s1738 = sand.u32 15, %s1737
    %v1739 = vld [vmem:[%s1729] sm:%s1738]
    %v1740 = vunpack.c.l.bf16 %v1739
    %v1741 = vunpack.c.h.bf16 %v1739
    %s1742 = scalar_lea.vmem [#allocation1], 96
    %1743 = vst [vmem:[%s1742] sm:%s3] %v1740
    %s1744 = scalar_lea.vmem %s0, 44
    %s1745 = sshrl.u32 %s3, 1
    %s1746 = sor.u32 %s3, %s1745
    %s1747 = sand.u32 %s1746, 85
    %s1748 = sshrl.u32 %s1747, 1
    %s1749 = sor.u32 %s1747, %s1748
    %s1750 = sand.u32 51, %s1749
    %s1751 = sshrl.u32 %s1750, 2
    %s1752 = sor.u32 %s1750, %s1751
    %s1753 = sand.u32 15, %s1752
    %v1754 = vld [vmem:[%s1744] sm:%s1753]
    %v1755 = vunpack.c.l.bf16 %v1754
    %v1756 = vunpack.c.h.bf16 %v1754
    %s1757 = scalar_lea.vmem [#allocation1], 88
    %1758 = vst [vmem:[%s1757] sm:%s3] %v1755
    %s1759 = scalar_lea.vmem %s0, 40
    %s1760 = sshrl.u32 %s3, 1
    %s1761 = sor.u32 %s3, %s1760
    %s1762 = sand.u32 %s1761, 85
    %s1763 = sshrl.u32 %s1762, 1
    %s1764 = sor.u32 %s1762, %s1763
    %s1765 = sand.u32 51, %s1764
    %s1766 = sshrl.u32 %s1765, 2
    %s1767 = sor.u32 %s1765, %s1766
    %s1768 = sand.u32 15, %s1767
    %v1769 = vld [vmem:[%s1759] sm:%s1768]
    %v1770 = vunpack.c.l.bf16 %v1769
    %v1771 = vunpack.c.h.bf16 %v1769
    %s1772 = scalar_lea.vmem [#allocation1], 80
    %1773 = vst [vmem:[%s1772] sm:%s3] %v1770
    %s1774 = scalar_lea.vmem %s0, 36
    %s1775 = sshrl.u32 %s3, 1
    %s1776 = sor.u32 %s3, %s1775
    %s1777 = sand.u32 %s1776, 85
    %s1778 = sshrl.u32 %s1777, 1
    %s1779 = sor.u32 %s1777, %s1778
    %s1780 = sand.u32 51, %s1779
    %s1781 = sshrl.u32 %s1780, 2
    %s1782 = sor.u32 %s1780, %s1781
    %s1783 = sand.u32 15, %s1782
    %v1784 = vld [vmem:[%s1774] sm:%s1783]
    %v1785 = vunpack.c.l.bf16 %v1784
    %v1786 = vunpack.c.h.bf16 %v1784
    %s1787 = scalar_lea.vmem [#allocation1], 72
    %1788 = vst [vmem:[%s1787] sm:%s3] %v1785
    %s1789 = scalar_lea.vmem %s0, 32
    %s1790 = sshrl.u32 %s3, 1
    %s1791 = sor.u32 %s3, %s1790
    %s1792 = sand.u32 %s1791, 85
    %s1793 = sshrl.u32 %s1792, 1
    %s1794 = sor.u32 %s1792, %s1793
    %s1795 = sand.u32 51, %s1794
    %s1796 = sshrl.u32 %s1795, 2
    %s1797 = sor.u32 %s1795, %s1796
    %s1798 = sand.u32 15, %s1797
    %v1799 = vld [vmem:[%s1789] sm:%s1798]
    %v1800 = vunpack.c.l.bf16 %v1799
    %v1801 = vunpack.c.h.bf16 %v1799
    %s1802 = scalar_lea.vmem [#allocation1], 64
    %1803 = vst [vmem:[%s1802] sm:%s3] %v1800
    %s1804 = scalar_lea.vmem %s0, 28
    %s1805 = sshrl.u32 %s3, 1
    %s1806 = sor.u32 %s3, %s1805
    %s1807 = sand.u32 %s1806, 85
    %s1808 = sshrl.u32 %s1807, 1
    %s1809 = sor.u32 %s1807, %s1808
    %s1810 = sand.u32 51, %s1809
    %s1811 = sshrl.u32 %s1810, 2
    %s1812 = sor.u32 %s1810, %s1811
    %s1813 = sand.u32 15, %s1812
    %v1814 = vld [vmem:[%s1804] sm:%s1813]
    %v1815 = vunpack.c.l.bf16 %v1814
    %v1816 = vunpack.c.h.bf16 %v1814
    %s1817 = scalar_lea.vmem [#allocation1], 56
    %1818 = vst [vmem:[%s1817] sm:%s3] %v1815
    %s1819 = scalar_lea.vmem %s0, 24
    %s1820 = sshrl.u32 %s3, 1
    %s1821 = sor.u32 %s3, %s1820
    %s1822 = sand.u32 %s1821, 85
    %s1823 = sshrl.u32 %s1822, 1
    %s1824 = sor.u32 %s1822, %s1823
    %s1825 = sand.u32 51, %s1824
    %s1826 = sshrl.u32 %s1825, 2
    %s1827 = sor.u32 %s1825, %s1826
    %s1828 = sand.u32 15, %s1827
    %v1829 = vld [vmem:[%s1819] sm:%s1828]
    %v1830 = vunpack.c.l.bf16 %v1829
    %v1831 = vunpack.c.h.bf16 %v1829
    %s1832 = scalar_lea.vmem [#allocation1], 48
    %1833 = vst [vmem:[%s1832] sm:%s3] %v1830
    %s1834 = scalar_lea.vmem %s0, 20
    %s1835 = sshrl.u32 %s3, 1
    %s1836 = sor.u32 %s3, %s1835
    %s1837 = sand.u32 %s1836, 85
    %s1838 = sshrl.u32 %s1837, 1
    %s1839 = sor.u32 %s1837, %s1838
    %s1840 = sand.u32 51, %s1839
    %s1841 = sshrl.u32 %s1840, 2
    %s1842 = sor.u32 %s1840, %s1841
    %s1843 = sand.u32 15, %s1842
    %v1844 = vld [vmem:[%s1834] sm:%s1843]
    %v1845 = vunpack.c.l.bf16 %v1844
    %v1846 = vunpack.c.h.bf16 %v1844
    %s1847 = scalar_lea.vmem [#allocation1], 40
    %1848 = vst [vmem:[%s1847] sm:%s3] %v1845
    %s1849 = scalar_lea.vmem %s0, 16
    %s1850 = sshrl.u32 %s3, 1
    %s1851 = sor.u32 %s3, %s1850
    %s1852 = sand.u32 %s1851, 85
    %s1853 = sshrl.u32 %s1852, 1
    %s1854 = sor.u32 %s1852, %s1853
    %s1855 = sand.u32 51, %s1854
    %s1856 = sshrl.u32 %s1855, 2
    %s1857 = sor.u32 %s1855, %s1856
    %s1858 = sand.u32 15, %s1857
    %v1859 = vld [vmem:[%s1849] sm:%s1858]
    %v1860 = vunpack.c.l.bf16 %v1859
    %v1861 = vunpack.c.h.bf16 %v1859
    %s1862 = scalar_lea.vmem [#allocation1], 32
    %1863 = vst [vmem:[%s1862] sm:%s3] %v1860
    %s1864 = scalar_lea.vmem %s0, 12
    %s1865 = sshrl.u32 %s3, 1
    %s1866 = sor.u32 %s3, %s1865
    %s1867 = sand.u32 %s1866, 85
    %s1868 = sshrl.u32 %s1867, 1
    %s1869 = sor.u32 %s1867, %s1868
    %s1870 = sand.u32 51, %s1869
    %s1871 = sshrl.u32 %s1870, 2
    %s1872 = sor.u32 %s1870, %s1871
    %s1873 = sand.u32 15, %s1872
    %v1874 = vld [vmem:[%s1864] sm:%s1873]
    %v1875 = vunpack.c.l.bf16 %v1874
    %v1876 = vunpack.c.h.bf16 %v1874
    %s1877 = scalar_lea.vmem [#allocation1], 24
    %1878 = vst [vmem:[%s1877] sm:%s3] %v1875
    %s1879 = scalar_lea.vmem %s0, 8
    %s1880 = sshrl.u32 %s3, 1
    %s1881 = sor.u32 %s3, %s1880
    %s1882 = sand.u32 %s1881, 85
    %s1883 = sshrl.u32 %s1882, 1
    %s1884 = sor.u32 %s1882, %s1883
    %s1885 = sand.u32 51, %s1884
    %s1886 = sshrl.u32 %s1885, 2
    %s1887 = sor.u32 %s1885, %s1886
    %s1888 = sand.u32 15, %s1887
    %v1889 = vld [vmem:[%s1879] sm:%s1888]
    %v1890 = vunpack.c.l.bf16 %v1889
    %v1891 = vunpack.c.h.bf16 %v1889
    %s1892 = scalar_lea.vmem [#allocation1], 16
    %1893 = vst [vmem:[%s1892] sm:%s3] %v1890
    %s1894 = scalar_lea.vmem %s0, 4
    %s1895 = sshrl.u32 %s3, 1
    %s1896 = sor.u32 %s3, %s1895
    %s1897 = sand.u32 %s1896, 85
    %s1898 = sshrl.u32 %s1897, 1
    %s1899 = sor.u32 %s1897, %s1898
    %s1900 = sand.u32 51, %s1899
    %s1901 = sshrl.u32 %s1900, 2
    %s1902 = sor.u32 %s1900, %s1901
    %s1903 = sand.u32 15, %s1902
    %v1904 = vld [vmem:[%s1894] sm:%s1903]
    %v1905 = vunpack.c.l.bf16 %v1904
    %v1906 = vunpack.c.h.bf16 %v1904
    %s1907 = scalar_lea.vmem [#allocation1], 8
    %1908 = vst [vmem:[%s1907] sm:%s3] %v1905
    %s1909 = sshrl.u32 %s3, 1
    %s1910 = sor.u32 %s3, %s1909
    %s1911 = sand.u32 %s1910, 85
    %s1912 = sshrl.u32 %s1911, 1
    %s1913 = sor.u32 %s1911, %s1912
    %s1914 = sand.u32 51, %s1913
    %s1915 = sshrl.u32 %s1914, 2
    %s1916 = sor.u32 %s1914, %s1915
    %s1917 = sand.u32 15, %s1916
    %v1918 = vld [vmem:[%s0] sm:%s1917]
    %v1919 = vunpack.c.l.bf16 %v1918
    %v1920 = vunpack.c.h.bf16 %v1918
    %1921 = vst [vmem:[#allocation1] sm:%s3] %v1919
    %s1922 = smov 3
    %v1923 = vld [vmem:[#allocation1] ss:$16 sm:%s1922]
    %s1924 = smov 12
    %v1925 = vld [vmem:[#allocation1] ss:$16 sm:%s1924]
    %vm1926 = vcmask 1043458
    %v1927 = vsel %vm1926, %v1925, %v1923
    %s1928 = smov 48
    %v1929 = vld [vmem:[#allocation1] ss:$16 sm:%s1928]
    %vm1930 = vcmask 1045508
    %v1931 = vsel %vm1930, %v1929, %v1927
    %s1932 = smov 192
    %v1933 = vld [vmem:[#allocation1] ss:$16 sm:%s1932]
    %vm1934 = vcmask 1047558
    %v1935 = vsel %vm1934, %v1933, %v1931
    %vm1936 = vcmask 64512
    %1937 = vst.msk [vmem:[#allocation0] sm:$0xff] %vm1936, %v1935
    %s1938 = scalar_lea.vmem [#allocation1], 128
    %s1939 = smov 3
    %v1940 = vld [vmem:[%s1938] ss:$16 sm:%s1939]
    %s1941 = scalar_lea.vmem [#allocation1], 128
    %s1942 = smov 12
    %v1943 = vld [vmem:[%s1941] ss:$16 sm:%s1942]
    %vm1944 = vcmask 1043458
    %v1945 = vsel %vm1944, %v1943, %v1940
    %s1946 = scalar_lea.vmem [#allocation1], 128
    %s1947 = smov 48
    %v1948 = vld [vmem:[%s1946] ss:$16 sm:%s1947]
    %vm1949 = vcmask 1045508
    %v1950 = vsel %vm1949, %v1948, %v1945
    %s1951 = scalar_lea.vmem [#allocation1], 128
    %s1952 = smov 192
    %v1953 = vld [vmem:[%s1951] ss:$16 sm:%s1952]
    %vm1954 = vcmask 1047558
    %v1955 = vsel %vm1954, %v1953, %v1950
    %vm1956 = vcmask 64512
    %s1957 = scalar_lea.vmem [#allocation0], 8
    %1958 = vst.msk [vmem:[%s1957] sm:$0xff] %vm1956, %v1955
    %s1959 = scalar_lea.vmem [#allocation1], 256
    %s1960 = smov 3
    %v1961 = vld [vmem:[%s1959] ss:$16 sm:%s1960]
    %s1962 = scalar_lea.vmem [#allocation1], 256
    %s1963 = smov 12
    %v1964 = vld [vmem:[%s1962] ss:$16 sm:%s1963]
    %vm1965 = vcmask 1043458
    %v1966 = vsel %vm1965, %v1964, %v1961
    %s1967 = scalar_lea.vmem [#allocation1], 256
    %s1968 = smov 48
    %v1969 = vld [vmem:[%s1967] ss:$16 sm:%s1968]
    %vm1970 = vcmask 1045508
    %v1971 = vsel %vm1970, %v1969, %v1966
    %s1972 = scalar_lea.vmem [#allocation1], 256
    %s1973 = smov 192
    %v1974 = vld [vmem:[%s1972] ss:$16 sm:%s1973]
    %vm1975 = vcmask 1047558
    %v1976 = vsel %vm1975, %v1974, %v1971
    %vm1977 = vcmask 64512
    %s1978 = scalar_lea.vmem [#allocation0], 16
    %1979 = vst.msk [vmem:[%s1978] sm:$0xff] %vm1977, %v1976
    %s1980 = scalar_lea.vmem [#allocation1], 384
    %s1981 = smov 3
    %v1982 = vld [vmem:[%s1980] ss:$16 sm:%s1981]
    %s1983 = scalar_lea.vmem [#allocation1], 384
    %s1984 = smov 12
    %v1985 = vld [vmem:[%s1983] ss:$16 sm:%s1984]
    %vm1986 = vcmask 1043458
    %v1987 = vsel %vm1986, %v1985, %v1982
    %s1988 = scalar_lea.vmem [#allocation1], 384
    %s1989 = smov 48
    %v1990 = vld [vmem:[%s1988] ss:$16 sm:%s1989]
    %vm1991 = vcmask 1045508
    %v1992 = vsel %vm1991, %v1990, %v1987
    %s1993 = scalar_lea.vmem [#allocation1], 384
    %s1994 = smov 192
    %v1995 = vld [vmem:[%s1993] ss:$16 sm:%s1994]
    %vm1996 = vcmask 1047558
    %v1997 = vsel %vm1996, %v1995, %v1992
    %vm1998 = vcmask 64512
    %s1999 = scalar_lea.vmem [#allocation0], 24
    %2000 = vst.msk [vmem:[%s1999] sm:$0xff] %vm1998, %v1997
    %s2001 = scalar_lea.vmem [#allocation1], 512
    %s2002 = smov 3
    %v2003 = vld [vmem:[%s2001] ss:$16 sm:%s2002]
    %s2004 = scalar_lea.vmem [#allocation1], 512
    %s2005 = smov 12
    %v2006 = vld [vmem:[%s2004] ss:$16 sm:%s2005]
    %vm2007 = vcmask 1043458
    %v2008 = vsel %vm2007, %v2006, %v2003
    %s2009 = scalar_lea.vmem [#allocation1], 512
    %s2010 = smov 48
    %v2011 = vld [vmem:[%s2009] ss:$16 sm:%s2010]
    %vm2012 = vcmask 1045508
    %v2013 = vsel %vm2012, %v2011, %v2008
    %s2014 = scalar_lea.vmem [#allocation1], 512
    %s2015 = smov 192
    %v2016 = vld [vmem:[%s2014] ss:$16 sm:%s2015]
    %vm2017 = vcmask 1047558
    %v2018 = vsel %vm2017, %v2016, %v2013
    %vm2019 = vcmask 64512
    %s2020 = scalar_lea.vmem [#allocation0], 32
    %2021 = vst.msk [vmem:[%s2020] sm:$0xff] %vm2019, %v2018
    %s2022 = scalar_lea.vmem [#allocation1], 640
    %s2023 = smov 3
    %v2024 = vld [vmem:[%s2022] ss:$16 sm:%s2023]
    %s2025 = scalar_lea.vmem [#allocation1], 640
    %s2026 = smov 12
    %v2027 = vld [vmem:[%s2025] ss:$16 sm:%s2026]
    %vm2028 = vcmask 1043458
    %v2029 = vsel %vm2028, %v2027, %v2024
    %s2030 = scalar_lea.vmem [#allocation1], 640
    %s2031 = smov 48
    %v2032 = vld [vmem:[%s2030] ss:$16 sm:%s2031]
    %vm2033 = vcmask 1045508
    %v2034 = vsel %vm2033, %v2032, %v2029
    %s2035 = scalar_lea.vmem [#allocation1], 640
    %s2036 = smov 192
    %v2037 = vld [vmem:[%s2035] ss:$16 sm:%s2036]
    %vm2038 = vcmask 1047558
    %v2039 = vsel %vm2038, %v2037, %v2034
    %vm2040 = vcmask 64512
    %s2041 = scalar_lea.vmem [#allocation0], 40
    %2042 = vst.msk [vmem:[%s2041] sm:$0xff] %vm2040, %v2039
    %s2043 = scalar_lea.vmem [#allocation1], 768
    %s2044 = smov 3
    %v2045 = vld [vmem:[%s2043] ss:$16 sm:%s2044]
    %s2046 = scalar_lea.vmem [#allocation1], 768
    %s2047 = smov 12
    %v2048 = vld [vmem:[%s2046] ss:$16 sm:%s2047]
    %vm2049 = vcmask 1043458
    %v2050 = vsel %vm2049, %v2048, %v2045
    %s2051 = scalar_lea.vmem [#allocation1], 768
    %s2052 = smov 48
    %v2053 = vld [vmem:[%s2051] ss:$16 sm:%s2052]
    %vm2054 = vcmask 1045508
    %v2055 = vsel %vm2054, %v2053, %v2050
    %s2056 = scalar_lea.vmem [#allocation1], 768
    %s2057 = smov 192
    %v2058 = vld [vmem:[%s2056] ss:$16 sm:%s2057]
    %vm2059 = vcmask 1047558
    %v2060 = vsel %vm2059, %v2058, %v2055
    %vm2061 = vcmask 64512
    %s2062 = scalar_lea.vmem [#allocation0], 48
    %2063 = vst.msk [vmem:[%s2062] sm:$0xff] %vm2061, %v2060
    %s2064 = scalar_lea.vmem [#allocation1], 896
    %s2065 = smov 3
    %v2066 = vld [vmem:[%s2064] ss:$16 sm:%s2065]
    %s2067 = scalar_lea.vmem [#allocation1], 896
    %s2068 = smov 12
    %v2069 = vld [vmem:[%s2067] ss:$16 sm:%s2068]
    %vm2070 = vcmask 1043458
    %v2071 = vsel %vm2070, %v2069, %v2066
    %s2072 = scalar_lea.vmem [#allocation1], 896
    %s2073 = smov 48
    %v2074 = vld [vmem:[%s2072] ss:$16 sm:%s2073]
    %vm2075 = vcmask 1045508
    %v2076 = vsel %vm2075, %v2074, %v2071
    %s2077 = scalar_lea.vmem [#allocation1], 896
    %s2078 = smov 192
    %v2079 = vld [vmem:[%s2077] ss:$16 sm:%s2078]
    %vm2080 = vcmask 1047558
    %v2081 = vsel %vm2080, %v2079, %v2076
    %vm2082 = vcmask 64512
    %s2083 = scalar_lea.vmem [#allocation0], 56
    %2084 = vst.msk [vmem:[%s2083] sm:$0xff] %vm2082, %v2081
    %s2085 = scalar_lea.vmem [#allocation1], 15
    %s2086 = smov 3
    %v2087 = vld [vmem:[%s2085] ss:$16 sm:%s2086]
    %s2088 = scalar_lea.vmem [#allocation1], 15
    %s2089 = smov 12
    %v2090 = vld [vmem:[%s2088] ss:$16 sm:%s2089]
    %vm2091 = vcmask 1043458
    %v2092 = vsel %vm2091, %v2090, %v2087
    %s2093 = scalar_lea.vmem [#allocation1], 15
    %s2094 = smov 48
    %v2095 = vld [vmem:[%s2093] ss:$16 sm:%s2094]
    %vm2096 = vcmask 1045508
    %v2097 = vsel %vm2096, %v2095, %v2092
    %s2098 = scalar_lea.vmem [#allocation1], 15
    %s2099 = smov 192
    %v2100 = vld [vmem:[%s2098] ss:$16 sm:%s2099]
    %vm2101 = vcmask 1047558
    %v2102 = vsel %vm2101, %v2100, %v2097
    %2103 = vrot.lane.b32.xlu0 %v2102, 120
    %v2104 = vpop.permute.xlu0 %2103
    %vm2105 = vcmask 1048512
    %2106 = vst.msk [vmem:[#allocation0] sm:$0xff] %vm2105, %v2104
    %s2107 = scalar_lea.vmem [#allocation1], 527
    %s2108 = smov 3
    %v2109 = vld [vmem:[%s2107] ss:$16 sm:%s2108]
    %s2110 = scalar_lea.vmem [#allocation1], 527
    %s2111 = smov 12
    %v2112 = vld [vmem:[%s2110] ss:$16 sm:%s2111]
    %vm2113 = vcmask 1043458
    %v2114 = vsel %vm2113, %v2112, %v2109
    %s2115 = scalar_lea.vmem [#allocation1], 527
    %s2116 = smov 48
    %v2117 = vld [vmem:[%s2115] ss:$16 sm:%s2116]
    %vm2118 = vcmask 1045508
    %v2119 = vsel %vm2118, %v2117, %v2114
    %s2120 = scalar_lea.vmem [#allocation1], 527
    %s2121 = smov 192
    %v2122 = vld [vmem:[%s2120] ss:$16 sm:%s2121]
    %vm2123 = vcmask 1047558
    %v2124 = vsel %vm2123, %v2122, %v2119
    %2125 = vrot.lane.b32.xlu0 %v2124, 120
    %v2126 = vpop.permute.xlu0 %2125
    %vm2127 = vcmask 1048512
    %s2128 = scalar_lea.vmem [#allocation0], 32
    %2129 = vst.msk [vmem:[%s2128] sm:$0xff] %vm2127, %v2126
    %s2130 = scalar_lea.vmem [#allocation1], 143
    %s2131 = smov 3
    %v2132 = vld [vmem:[%s2130] ss:$16 sm:%s2131]
    %s2133 = scalar_lea.vmem [#allocation1], 143
    %s2134 = smov 12
    %v2135 = vld [vmem:[%s2133] ss:$16 sm:%s2134]
    %vm2136 = vcmask 1043458
    %v2137 = vsel %vm2136, %v2135, %v2132
    %s2138 = scalar_lea.vmem [#allocation1], 143
    %s2139 = smov 48
    %v2140 = vld [vmem:[%s2138] ss:$16 sm:%s2139]
    %vm2141 = vcmask 1045508
    %v2142 = vsel %vm2141, %v2140, %v2137
    %s2143 = scalar_lea.vmem [#allocation1], 143
    %s2144 = smov 192
    %v2145 = vld [vmem:[%s2143] ss:$16 sm:%s2144]
    %vm2146 = vcmask 1047558
    %v2147 = vsel %vm2146, %v2145, %v2142
    %2148 = vrot.lane.b32.xlu0 %v2147, 120
    %v2149 = vpop.permute.xlu0 %2148
    %vm2150 = vcmask 1048512
    %s2151 = scalar_lea.vmem [#allocation0], 8
    %2152 = vst.msk [vmem:[%s2151] sm:$0xff] %vm2150, %v2149
    %s2153 = scalar_lea.vmem [#allocation1], 655
    %s2154 = smov 3
    %v2155 = vld [vmem:[%s2153] ss:$16 sm:%s2154]
    %s2156 = scalar_lea.vmem [#allocation1], 655
    %s2157 = smov 12
    %v2158 = vld [vmem:[%s2156] ss:$16 sm:%s2157]
    %vm2159 = vcmask 1043458
    %v2160 = vsel %vm2159, %v2158, %v2155
    %s2161 = scalar_lea.vmem [#allocation1], 655
    %s2162 = smov 48
    %v2163 = vld [vmem:[%s2161] ss:$16 sm:%s2162]
    %vm2164 = vcmask 1045508
    %v2165 = vsel %vm2164, %v2163, %v2160
    %s2166 = scalar_lea.vmem [#allocation1], 655
    %s2167 = smov 192
    %v2168 = vld [vmem:[%s2166] ss:$16 sm:%s2167]
    %vm2169 = vcmask 1047558
    %v2170 = vsel %vm2169, %v2168, %v2165
    %2171 = vrot.lane.b32.xlu0 %v2170, 120
    %v2172 = vpop.permute.xlu0 %2171
    %vm2173 = vcmask 1048512
    %s2174 = scalar_lea.vmem [#allocation0], 40
    %2175 = vst.msk [vmem:[%s2174] sm:$0xff] %vm2173, %v2172
    %s2176 = scalar_lea.vmem [#allocation1], 271
    %s2177 = smov 3
    %v2178 = vld [vmem:[%s2176] ss:$16 sm:%s2177]
    %s2179 = scalar_lea.vmem [#allocation1], 271
    %s2180 = smov 12
    %v2181 = vld [vmem:[%s2179] ss:$16 sm:%s2180]
    %vm2182 = vcmask 1043458
    %v2183 = vsel %vm2182, %v2181, %v2178
    %s2184 = scalar_lea.vmem [#allocation1], 271
    %s2185 = smov 48
    %v2186 = vld [vmem:[%s2184] ss:$16 sm:%s2185]
    %vm2187 = vcmask 1045508
    %v2188 = vsel %vm2187, %v2186, %v2183
    %s2189 = scalar_lea.vmem [#allocation1], 271
    %s2190 = smov 192
    %v2191 = vld [vmem:[%s2189] ss:$16 sm:%s2190]
    %vm2192 = vcmask 1047558
    %v2193 = vsel %vm2192, %v2191, %v2188
    %2194 = vrot.lane.b32.xlu0 %v2193, 120
    %v2195 = vpop.permute.xlu0 %2194
    %vm2196 = vcmask 1048512
    %s2197 = scalar_lea.vmem [#allocation0], 16
    %2198 = vst.msk [vmem:[%s2197] sm:$0xff] %vm2196, %v2195
    %s2199 = scalar_lea.vmem [#allocation1], 783
    %s2200 = smov 3
    %v2201 = vld [vmem:[%s2199] ss:$16 sm:%s2200]
    %s2202 = scalar_lea.vmem [#allocation1], 783
    %s2203 = smov 12
    %v2204 = vld [vmem:[%s2202] ss:$16 sm:%s2203]
    %vm2205 = vcmask 1043458
    %v2206 = vsel %vm2205, %v2204, %v2201
    %s2207 = scalar_lea.vmem [#allocation1], 783
    %s2208 = smov 48
    %v2209 = vld [vmem:[%s2207] ss:$16 sm:%s2208]
    %vm2210 = vcmask 1045508
    %v2211 = vsel %vm2210, %v2209, %v2206
    %s2212 = scalar_lea.vmem [#allocation1], 783
    %s2213 = smov 192
    %v2214 = vld [vmem:[%s2212] ss:$16 sm:%s2213]
    %vm2215 = vcmask 1047558
    %v2216 = vsel %vm2215, %v2214, %v2211
    %2217 = vrot.lane.b32.xlu0 %v2216, 120
    %v2218 = vpop.permute.xlu0 %2217
    %vm2219 = vcmask 1048512
    %s2220 = scalar_lea.vmem [#allocation0], 48
    %2221 = vst.msk [vmem:[%s2220] sm:$0xff] %vm2219, %v2218
    %s2222 = scalar_lea.vmem [#allocation1], 399
    %s2223 = smov 3
    %v2224 = vld [vmem:[%s2222] ss:$16 sm:%s2223]
    %s2225 = scalar_lea.vmem [#allocation1], 399
    %s2226 = smov 12
    %v2227 = vld [vmem:[%s2225] ss:$16 sm:%s2226]
    %vm2228 = vcmask 1043458
    %v2229 = vsel %vm2228, %v2227, %v2224
    %s2230 = scalar_lea.vmem [#allocation1], 399
    %s2231 = smov 48
    %v2232 = vld [vmem:[%s2230] ss:$16 sm:%s2231]
    %vm2233 = vcmask 1045508
    %v2234 = vsel %vm2233, %v2232, %v2229
    %s2235 = scalar_lea.vmem [#allocation1], 399
    %s2236 = smov 192
    %v2237 = vld [vmem:[%s2235] ss:$16 sm:%s2236]
    %vm2238 = vcmask 1047558
    %v2239 = vsel %vm2238, %v2237, %v2234
    %2240 = vrot.lane.b32.xlu0 %v2239, 120
    %v2241 = vpop.permute.xlu0 %2240
    %vm2242 = vcmask 1048512
    %s2243 = scalar_lea.vmem [#allocation0], 24
    %2244 = vst.msk [vmem:[%s2243] sm:$0xff] %vm2242, %v2241
    %s2245 = scalar_lea.vmem [#allocation1], 911
    %s2246 = smov 3
    %v2247 = vld [vmem:[%s2245] ss:$16 sm:%s2246]
    %s2248 = scalar_lea.vmem [#allocation1], 911
    %s2249 = smov 12
    %v2250 = vld [vmem:[%s2248] ss:$16 sm:%s2249]
    %vm2251 = vcmask 1043458
    %v2252 = vsel %vm2251, %v2250, %v2247
    %s2253 = scalar_lea.vmem [#allocation1], 911
    %s2254 = smov 48
    %v2255 = vld [vmem:[%s2253] ss:$16 sm:%s2254]
    %vm2256 = vcmask 1045508
    %v2257 = vsel %vm2256, %v2255, %v2252
    %s2258 = scalar_lea.vmem [#allocation1], 911
    %s2259 = smov 192
    %v2260 = vld [vmem:[%s2258] ss:$16 sm:%s2259]
    %vm2261 = vcmask 1047558
    %v2262 = vsel %vm2261, %v2260, %v2257
    %2263 = vrot.lane.b32.xlu0 %v2262, 120
    %v2264 = vpop.permute.xlu0 %2263
    %vm2265 = vcmask 1048512
    %s2266 = scalar_lea.vmem [#allocation0], 56
    %2267 = vst.msk [vmem:[%s2266] sm:$0xff] %vm2265, %v2264
    %s2268 = scalar_lea.vmem [#allocation1], 14
    %s2269 = smov 3
    %v2270 = vld [vmem:[%s2268] ss:$16 sm:%s2269]
    %s2271 = scalar_lea.vmem [#allocation1], 14
    %s2272 = smov 12
    %v2273 = vld [vmem:[%s2271] ss:$16 sm:%s2272]
    %vm2274 = vcmask 1043458
    %v2275 = vsel %vm2274, %v2273, %v2270
    %s2276 = scalar_lea.vmem [#allocation1], 14
    %s2277 = smov 48
    %v2278 = vld [vmem:[%s2276] ss:$16 sm:%s2277]
    %vm2279 = vcmask 1045508
    %v2280 = vsel %vm2279, %v2278, %v2275
    %s2281 = scalar_lea.vmem [#allocation1], 14
    %s2282 = smov 192
    %v2283 = vld [vmem:[%s2281] ss:$16 sm:%s2282]
    %vm2284 = vcmask 1047558
    %v2285 = vsel %vm2284, %v2283, %v2280
    %2286 = vrot.lane.b32.xlu0 %v2285, 112
    %v2287 = vpop.permute.xlu0 %2286
    %vm2288 = vcmask 982912
    %2289 = vst.msk [vmem:[#allocation0] sm:$0xff] %vm2288, %v2287
    %s2290 = scalar_lea.vmem [#allocation1], 526
    %s2291 = smov 3
    %v2292 = vld [vmem:[%s2290] ss:$16 sm:%s2291]
    %s2293 = scalar_lea.vmem [#allocation1], 526
    %s2294 = smov 12
    %v2295 = vld [vmem:[%s2293] ss:$16 sm:%s2294]
    %vm2296 = vcmask 1043458
    %v2297 = vsel %vm2296, %v2295, %v2292
    %s2298 = scalar_lea.vmem [#allocation1], 526
    %s2299 = smov 48
    %v2300 = vld [vmem:[%s2298] ss:$16 sm:%s2299]
    %vm2301 = vcmask 1045508
    %v2302 = vsel %vm2301, %v2300, %v2297
    %s2303 = scalar_lea.vmem [#allocation1], 526
    %s2304 = smov 192
    %v2305 = vld [vmem:[%s2303] ss:$16 sm:%s2304]
    %vm2306 = vcmask 1047558
    %v2307 = vsel %vm2306, %v2305, %v2302
    %2308 = vrot.lane.b32.xlu0 %v2307, 112
    %v2309 = vpop.permute.xlu0 %2308
    %vm2310 = vcmask 982912
    %s2311 = scalar_lea.vmem [#allocation0], 32
    %2312 = vst.msk [vmem:[%s2311] sm:$0xff] %vm2310, %v2309
    %s2313 = scalar_lea.vmem [#allocation1], 142
    %s2314 = smov 3
    %v2315 = vld [vmem:[%s2313] ss:$16 sm:%s2314]
    %s2316 = scalar_lea.vmem [#allocation1], 142
    %s2317 = smov 12
    %v2318 = vld [vmem:[%s2316] ss:$16 sm:%s2317]
    %vm2319 = vcmask 1043458
    %v2320 = vsel %vm2319, %v2318, %v2315
    %s2321 = scalar_lea.vmem [#allocation1], 142
    %s2322 = smov 48
    %v2323 = vld [vmem:[%s2321] ss:$16 sm:%s2322]
    %vm2324 = vcmask 1045508
    %v2325 = vsel %vm2324, %v2323, %v2320
    %s2326 = scalar_lea.vmem [#allocation1], 142
    %s2327 = smov 192
    %v2328 = vld [vmem:[%s2326] ss:$16 sm:%s2327]
    %vm2329 = vcmask 1047558
    %v2330 = vsel %vm2329, %v2328, %v2325
    %2331 = vrot.lane.b32.xlu0 %v2330, 112
    %v2332 = vpop.permute.xlu0 %2331
    %vm2333 = vcmask 982912
    %s2334 = scalar_lea.vmem [#allocation0], 8
    %2335 = vst.msk [vmem:[%s2334] sm:$0xff] %vm2333, %v2332
    %s2336 = scalar_lea.vmem [#allocation1], 654
    %s2337 = smov 3
    %v2338 = vld [vmem:[%s2336] ss:$16 sm:%s2337]
    %s2339 = scalar_lea.vmem [#allocation1], 654
    %s2340 = smov 12
    %v2341 = vld [vmem:[%s2339] ss:$16 sm:%s2340]
    %vm2342 = vcmask 1043458
    %v2343 = vsel %vm2342, %v2341, %v2338
    %s2344 = scalar_lea.vmem [#allocation1], 654
    %s2345 = smov 48
    %v2346 = vld [vmem:[%s2344] ss:$16 sm:%s2345]
    %vm2347 = vcmask 1045508
    %v2348 = vsel %vm2347, %v2346, %v2343
    %s2349 = scalar_lea.vmem [#allocation1], 654
    %s2350 = smov 192
    %v2351 = vld [vmem:[%s2349] ss:$16 sm:%s2350]
    %vm2352 = vcmask 1047558
    %v2353 = vsel %vm2352, %v2351, %v2348
    %2354 = vrot.lane.b32.xlu0 %v2353, 112
    %v2355 = vpop.permute.xlu0 %2354
    %vm2356 = vcmask 982912
    %s2357 = scalar_lea.vmem [#allocation0], 40
    %2358 = vst.msk [vmem:[%s2357] sm:$0xff] %vm2356, %v2355
    %s2359 = scalar_lea.vmem [#allocation1], 270
    %s2360 = smov 3
    %v2361 = vld [vmem:[%s2359] ss:$16 sm:%s2360]
    %s2362 = scalar_lea.vmem [#allocation1], 270
    %s2363 = smov 12
    %v2364 = vld [vmem:[%s2362] ss:$16 sm:%s2363]
    %vm2365 = vcmask 1043458
    %v2366 = vsel %vm2365, %v2364, %v2361
    %s2367 = scalar_lea.vmem [#allocation1], 270
    %s2368 = smov 48
    %v2369 = vld [vmem:[%s2367] ss:$16 sm:%s2368]
    %vm2370 = vcmask 1045508
    %v2371 = vsel %vm2370, %v2369, %v2366
    %s2372 = scalar_lea.vmem [#allocation1], 270
    %s2373 = smov 192
    %v2374 = vld [vmem:[%s2372] ss:$16 sm:%s2373]
    %vm2375 = vcmask 1047558
    %v2376 = vsel %vm2375, %v2374, %v2371
    %2377 = vrot.lane.b32.xlu0 %v2376, 112
    %v2378 = vpop.permute.xlu0 %2377
    %vm2379 = vcmask 982912
    %s2380 = scalar_lea.vmem [#allocation0], 16
    %2381 = vst.msk [vmem:[%s2380] sm:$0xff] %vm2379, %v2378
    %s2382 = scalar_lea.vmem [#allocation1], 782
    %s2383 = smov 3
    %v2384 = vld [vmem:[%s2382] ss:$16 sm:%s2383]
    %s2385 = scalar_lea.vmem [#allocation1], 782
    %s2386 = smov 12
    %v2387 = vld [vmem:[%s2385] ss:$16 sm:%s2386]
    %vm2388 = vcmask 1043458
    %v2389 = vsel %vm2388, %v2387, %v2384
    %s2390 = scalar_lea.vmem [#allocation1], 782
    %s2391 = smov 48
    %v2392 = vld [vmem:[%s2390] ss:$16 sm:%s2391]
    %vm2393 = vcmask 1045508
    %v2394 = vsel %vm2393, %v2392, %v2389
    %s2395 = scalar_lea.vmem [#allocation1], 782
    %s2396 = smov 192
    %v2397 = vld [vmem:[%s2395] ss:$16 sm:%s2396]
    %vm2398 = vcmask 1047558
    %v2399 = vsel %vm2398, %v2397, %v2394
    %2400 = vrot.lane.b32.xlu0 %v2399, 112
    %v2401 = vpop.permute.xlu0 %2400
    %vm2402 = vcmask 982912
    %s2403 = scalar_lea.vmem [#allocation0], 48
    %2404 = vst.msk [vmem:[%s2403] sm:$0xff] %vm2402, %v2401
    %s2405 = scalar_lea.vmem [#allocation1], 398
    %s2406 = smov 3
    %v2407 = vld [vmem:[%s2405] ss:$16 sm:%s2406]
    %s2408 = scalar_lea.vmem [#allocation1], 398
    %s2409 = smov 12
    %v2410 = vld [vmem:[%s2408] ss:$16 sm:%s2409]
    %vm2411 = vcmask 1043458
    %v2412 = vsel %vm2411, %v2410, %v2407
    %s2413 = scalar_lea.vmem [#allocation1], 398
    %s2414 = smov 48
    %v2415 = vld [vmem:[%s2413] ss:$16 sm:%s2414]
    %vm2416 = vcmask 1045508
    %v2417 = vsel %vm2416, %v2415, %v2412
    %s2418 = scalar_lea.vmem [#allocation1], 398
    %s2419 = smov 192
    %v2420 = vld [vmem:[%s2418] ss:$16 sm:%s2419]
    %vm2421 = vcmask 1047558
    %v2422 = vsel %vm2421, %v2420, %v2417
    %2423 = vrot.lane.b32.xlu0 %v2422, 112
    %v2424 = vpop.permute.xlu0 %2423
    %vm2425 = vcmask 982912
    %s2426 = scalar_lea.vmem [#allocation0], 24
    %2427 = vst.msk [vmem:[%s2426] sm:$0xff] %vm2425, %v2424
    %s2428 = scalar_lea.vmem [#allocation1], 910
    %s2429 = smov 3
    %v2430 = vld [vmem:[%s2428] ss:$16 sm:%s2429]
    %s2431 = scalar_lea.vmem [#allocation1], 910
    %s2432 = smov 12
    %v2433 = vld [vmem:[%s2431] ss:$16 sm:%s2432]
    %vm2434 = vcmask 1043458
    %v2435 = vsel %vm2434, %v2433, %v2430
    %s2436 = scalar_lea.vmem [#allocation1], 910
    %s2437 = smov 48
    %v2438 = vld [vmem:[%s2436] ss:$16 sm:%s2437]
    %vm2439 = vcmask 1045508
    %v2440 = vsel %vm2439, %v2438, %v2435
    %s2441 = scalar_lea.vmem [#allocation1], 910
    %s2442 = smov 192
    %v2443 = vld [vmem:[%s2441] ss:$16 sm:%s2442]
    %vm2444 = vcmask 1047558
    %v2445 = vsel %vm2444, %v2443, %v2440
    %2446 = vrot.lane.b32.xlu0 %v2445, 112
    %v2447 = vpop.permute.xlu0 %2446
    %vm2448 = vcmask 982912
    %s2449 = scalar_lea.vmem [#allocation0], 56
    %2450 = vst.msk [vmem:[%s2449] sm:$0xff] %vm2448, %v2447
    %s2451 = scalar_lea.vmem [#allocation1], 13
    %s2452 = smov 3
    %v2453 = vld [vmem:[%s2451] ss:$16 sm:%s2452]
    %s2454 = scalar_lea.vmem [#allocation1], 13
    %s2455 = smov 12
    %v2456 = vld [vmem:[%s2454] ss:$16 sm:%s2455]
    %vm2457 = vcmask 1043458
    %v2458 = vsel %vm2457, %v2456, %v2453
    %s2459 = scalar_lea.vmem [#allocation1], 13
    %s2460 = smov 48
    %v2461 = vld [vmem:[%s2459] ss:$16 sm:%s2460]
    %vm2462 = vcmask 1045508
    %v2463 = vsel %vm2462, %v2461, %v2458
    %s2464 = scalar_lea.vmem [#allocation1], 13
    %s2465 = smov 192
    %v2466 = vld [vmem:[%s2464] ss:$16 sm:%s2465]
    %vm2467 = vcmask 1047558
    %v2468 = vsel %vm2467, %v2466, %v2463
    %2469 = vrot.lane.b32.xlu0 %v2468, 104
    %v2470 = vpop.permute.xlu0 %2469
    %vm2471 = vcmask 917312
    %2472 = vst.msk [vmem:[#allocation0] sm:$0xff] %vm2471, %v2470
    %s2473 = scalar_lea.vmem [#allocation1], 525
    %s2474 = smov 3
    %v2475 = vld [vmem:[%s2473] ss:$16 sm:%s2474]
    %s2476 = scalar_lea.vmem [#allocation1], 525
    %s2477 = smov 12
    %v2478 = vld [vmem:[%s2476] ss:$16 sm:%s2477]
    %vm2479 = vcmask 1043458
    %v2480 = vsel %vm2479, %v2478, %v2475
    %s2481 = scalar_lea.vmem [#allocation1], 525
    %s2482 = smov 48
    %v2483 = vld [vmem:[%s2481] ss:$16 sm:%s2482]
    %vm2484 = vcmask 1045508
    %v2485 = vsel %vm2484, %v2483, %v2480
    %s2486 = scalar_lea.vmem [#allocation1], 525
    %s2487 = smov 192
    %v2488 = vld [vmem:[%s2486] ss:$16 sm:%s2487]
    %vm2489 = vcmask 1047558
    %v2490 = vsel %vm2489, %v2488, %v2485
    %2491 = vrot.lane.b32.xlu0 %v2490, 104
    %v2492 = vpop.permute.xlu0 %2491
    %vm2493 = vcmask 917312
    %s2494 = scalar_lea.vmem [#allocation0], 32
    %2495 = vst.msk [vmem:[%s2494] sm:$0xff] %vm2493, %v2492
    %s2496 = scalar_lea.vmem [#allocation1], 141
    %s2497 = smov 3
    %v2498 = vld [vmem:[%s2496] ss:$16 sm:%s2497]
    %s2499 = scalar_lea.vmem [#allocation1], 141
    %s2500 = smov 12
    %v2501 = vld [vmem:[%s2499] ss:$16 sm:%s2500]
    %vm2502 = vcmask 1043458
    %v2503 = vsel %vm2502, %v2501, %v2498
    %s2504 = scalar_lea.vmem [#allocation1], 141
    %s2505 = smov 48
    %v2506 = vld [vmem:[%s2504] ss:$16 sm:%s2505]
    %vm2507 = vcmask 1045508
    %v2508 = vsel %vm2507, %v2506, %v2503
    %s2509 = scalar_lea.vmem [#allocation1], 141
    %s2510 = smov 192
    %v2511 = vld [vmem:[%s2509] ss:$16 sm:%s2510]
    %vm2512 = vcmask 1047558
    %v2513 = vsel %vm2512, %v2511, %v2508
    %2514 = vrot.lane.b32.xlu0 %v2513, 104
    %v2515 = vpop.permute.xlu0 %2514
    %vm2516 = vcmask 917312
    %s2517 = scalar_lea.vmem [#allocation0], 8
    %2518 = vst.msk [vmem:[%s2517] sm:$0xff] %vm2516, %v2515
    %s2519 = scalar_lea.vmem [#allocation1], 653
    %s2520 = smov 3
    %v2521 = vld [vmem:[%s2519] ss:$16 sm:%s2520]
    %s2522 = scalar_lea.vmem [#allocation1], 653
    %s2523 = smov 12
    %v2524 = vld [vmem:[%s2522] ss:$16 sm:%s2523]
    %vm2525 = vcmask 1043458
    %v2526 = vsel %vm2525, %v2524, %v2521
    %s2527 = scalar_lea.vmem [#allocation1], 653
    %s2528 = smov 48
    %v2529 = vld [vmem:[%s2527] ss:$16 sm:%s2528]
    %vm2530 = vcmask 1045508
    %v2531 = vsel %vm2530, %v2529, %v2526
    %s2532 = scalar_lea.vmem [#allocation1], 653
    %s2533 = smov 192
    %v2534 = vld [vmem:[%s2532] ss:$16 sm:%s2533]
    %vm2535 = vcmask 1047558
    %v2536 = vsel %vm2535, %v2534, %v2531
    %2537 = vrot.lane.b32.xlu0 %v2536, 104
    %v2538 = vpop.permute.xlu0 %2537
    %vm2539 = vcmask 917312
    %s2540 = scalar_lea.vmem [#allocation0], 40
    %2541 = vst.msk [vmem:[%s2540] sm:$0xff] %vm2539, %v2538
    %s2542 = scalar_lea.vmem [#allocation1], 269
    %s2543 = smov 3
    %v2544 = vld [vmem:[%s2542] ss:$16 sm:%s2543]
    %s2545 = scalar_lea.vmem [#allocation1], 269
    %s2546 = smov 12
    %v2547 = vld [vmem:[%s2545] ss:$16 sm:%s2546]
    %vm2548 = vcmask 1043458
    %v2549 = vsel %vm2548, %v2547, %v2544
    %s2550 = scalar_lea.vmem [#allocation1], 269
    %s2551 = smov 48
    %v2552 = vld [vmem:[%s2550] ss:$16 sm:%s2551]
    %vm2553 = vcmask 1045508
    %v2554 = vsel %vm2553, %v2552, %v2549
    %s2555 = scalar_lea.vmem [#allocation1], 269
    %s2556 = smov 192
    %v2557 = vld [vmem:[%s2555] ss:$16 sm:%s2556]
    %vm2558 = vcmask 1047558
    %v2559 = vsel %vm2558, %v2557, %v2554
    %2560 = vrot.lane.b32.xlu0 %v2559, 104
    %v2561 = vpop.permute.xlu0 %2560
    %vm2562 = vcmask 917312
    %s2563 = scalar_lea.vmem [#allocation0], 16
    %2564 = vst.msk [vmem:[%s2563] sm:$0xff] %vm2562, %v2561
    %s2565 = scalar_lea.vmem [#allocation1], 781
    %s2566 = smov 3
    %v2567 = vld [vmem:[%s2565] ss:$16 sm:%s2566]
    %s2568 = scalar_lea.vmem [#allocation1], 781
    %s2569 = smov 12
    %v2570 = vld [vmem:[%s2568] ss:$16 sm:%s2569]
    %vm2571 = vcmask 1043458
    %v2572 = vsel %vm2571, %v2570, %v2567
    %s2573 = scalar_lea.vmem [#allocation1], 781
    %s2574 = smov 48
    %v2575 = vld [vmem:[%s2573] ss:$16 sm:%s2574]
    %vm2576 = vcmask 1045508
    %v2577 = vsel %vm2576, %v2575, %v2572
    %s2578 = scalar_lea.vmem [#allocation1], 781
    %s2579 = smov 192
    %v2580 = vld [vmem:[%s2578] ss:$16 sm:%s2579]
    %vm2581 = vcmask 1047558
    %v2582 = vsel %vm2581, %v2580, %v2577
    %2583 = vrot.lane.b32.xlu0 %v2582, 104
    %v2584 = vpop.permute.xlu0 %2583
    %vm2585 = vcmask 917312
    %s2586 = scalar_lea.vmem [#allocation0], 48
    %2587 = vst.msk [vmem:[%s2586] sm:$0xff] %vm2585, %v2584
    %s2588 = scalar_lea.vmem [#allocation1], 397
    %s2589 = smov 3
    %v2590 = vld [vmem:[%s2588] ss:$16 sm:%s2589]
    %s2591 = scalar_lea.vmem [#allocation1], 397
    %s2592 = smov 12
    %v2593 = vld [vmem:[%s2591] ss:$16 sm:%s2592]
    %vm2594 = vcmask 1043458
    %v2595 = vsel %vm2594, %v2593, %v2590
    %s2596 = scalar_lea.vmem [#allocation1], 397
    %s2597 = smov 48
    %v2598 = vld [vmem:[%s2596] ss:$16 sm:%s2597]
    %vm2599 = vcmask 1045508
    %v2600 = vsel %vm2599, %v2598, %v2595
    %s2601 = scalar_lea.vmem [#allocation1], 397
    %s2602 = smov 192
    %v2603 = vld [vmem:[%s2601] ss:$16 sm:%s2602]
    %vm2604 = vcmask 1047558
    %v2605 = vsel %vm2604, %v2603, %v2600
    %2606 = vrot.lane.b32.xlu0 %v2605, 104
    %v2607 = vpop.permute.xlu0 %2606
    %vm2608 = vcmask 917312
    %s2609 = scalar_lea.vmem [#allocation0], 24
    %2610 = vst.msk [vmem:[%s2609] sm:$0xff] %vm2608, %v2607
    %s2611 = scalar_lea.vmem [#allocation1], 909
    %s2612 = smov 3
    %v2613 = vld [vmem:[%s2611] ss:$16 sm:%s2612]
    %s2614 = scalar_lea.vmem [#allocation1], 909
    %s2615 = smov 12
    %v2616 = vld [vmem:[%s2614] ss:$16 sm:%s2615]
    %vm2617 = vcmask 1043458
    %v2618 = vsel %vm2617, %v2616, %v2613
    %s2619 = scalar_lea.vmem [#allocation1], 909
    %s2620 = smov 48
    %v2621 = vld [vmem:[%s2619] ss:$16 sm:%s2620]
    %vm2622 = vcmask 1045508
    %v2623 = vsel %vm2622, %v2621, %v2618
    %s2624 = scalar_lea.vmem [#allocation1], 909
    %s2625 = smov 192
    %v2626 = vld [vmem:[%s2624] ss:$16 sm:%s2625]
    %vm2627 = vcmask 1047558
    %v2628 = vsel %vm2627, %v2626, %v2623
    %2629 = vrot.lane.b32.xlu0 %v2628, 104
    %v2630 = vpop.permute.xlu0 %2629
    %vm2631 = vcmask 917312
    %s2632 = scalar_lea.vmem [#allocation0], 56
    %2633 = vst.msk [vmem:[%s2632] sm:$0xff] %vm2631, %v2630
    %s2634 = scalar_lea.vmem [#allocation1], 12
    %s2635 = smov 3
    %v2636 = vld [vmem:[%s2634] ss:$16 sm:%s2635]
    %s2637 = scalar_lea.vmem [#allocation1], 12
    %s2638 = smov 12
    %v2639 = vld [vmem:[%s2637] ss:$16 sm:%s2638]
    %vm2640 = vcmask 1043458
    %v2641 = vsel %vm2640, %v2639, %v2636
    %s2642 = scalar_lea.vmem [#allocation1], 12
    %s2643 = smov 48
    %v2644 = vld [vmem:[%s2642] ss:$16 sm:%s2643]
    %vm2645 = vcmask 1045508
    %v2646 = vsel %vm2645, %v2644, %v2641
    %s2647 = scalar_lea.vmem [#allocation1], 12
    %s2648 = smov 192
    %v2649 = vld [vmem:[%s2647] ss:$16 sm:%s2648]
    %vm2650 = vcmask 1047558
    %v2651 = vsel %vm2650, %v2649, %v2646
    %2652 = vrot.lane.b32.xlu0 %v2651, 96
    %v2653 = vpop.permute.xlu0 %2652
    %vm2654 = vcmask 851712
    %2655 = vst.msk [vmem:[#allocation0] sm:$0xff] %vm2654, %v2653
    %s2656 = scalar_lea.vmem [#allocation1], 524
    %s2657 = smov 3
    %v2658 = vld [vmem:[%s2656] ss:$16 sm:%s2657]
    %s2659 = scalar_lea.vmem [#allocation1], 524
    %s2660 = smov 12
    %v2661 = vld [vmem:[%s2659] ss:$16 sm:%s2660]
    %vm2662 = vcmask 1043458
    %v2663 = vsel %vm2662, %v2661, %v2658
    %s2664 = scalar_lea.vmem [#allocation1], 524
    %s2665 = smov 48
    %v2666 = vld [vmem:[%s2664] ss:$16 sm:%s2665]
    %vm2667 = vcmask 1045508
    %v2668 = vsel %vm2667, %v2666, %v2663
    %s2669 = scalar_lea.vmem [#allocation1], 524
    %s2670 = smov 192
    %v2671 = vld [vmem:[%s2669] ss:$16 sm:%s2670]
    %vm2672 = vcmask 1047558
    %v2673 = vsel %vm2672, %v2671, %v2668
    %2674 = vrot.lane.b32.xlu0 %v2673, 96
    %v2675 = vpop.permute.xlu0 %2674
    %vm2676 = vcmask 851712
    %s2677 = scalar_lea.vmem [#allocation0], 32
    %2678 = vst.msk [vmem:[%s2677] sm:$0xff] %vm2676, %v2675
    %s2679 = scalar_lea.vmem [#allocation1], 140
    %s2680 = smov 3
    %v2681 = vld [vmem:[%s2679] ss:$16 sm:%s2680]
    %s2682 = scalar_lea.vmem [#allocation1], 140
    %s2683 = smov 12
    %v2684 = vld [vmem:[%s2682] ss:$16 sm:%s2683]
    %vm2685 = vcmask 1043458
    %v2686 = vsel %vm2685, %v2684, %v2681
    %s2687 = scalar_lea.vmem [#allocation1], 140
    %s2688 = smov 48
    %v2689 = vld [vmem:[%s2687] ss:$16 sm:%s2688]
    %vm2690 = vcmask 1045508
    %v2691 = vsel %vm2690, %v2689, %v2686
    %s2692 = scalar_lea.vmem [#allocation1], 140
    %s2693 = smov 192
    %v2694 = vld [vmem:[%s2692] ss:$16 sm:%s2693]
    %vm2695 = vcmask 1047558
    %v2696 = vsel %vm2695, %v2694, %v2691
    %2697 = vrot.lane.b32.xlu0 %v2696, 96
    %v2698 = vpop.permute.xlu0 %2697
    %vm2699 = vcmask 851712
    %s2700 = scalar_lea.vmem [#allocation0], 8
    %2701 = vst.msk [vmem:[%s2700] sm:$0xff] %vm2699, %v2698
    %s2702 = scalar_lea.vmem [#allocation1], 652
    %s2703 = smov 3
    %v2704 = vld [vmem:[%s2702] ss:$16 sm:%s2703]
    %s2705 = scalar_lea.vmem [#allocation1], 652
    %s2706 = smov 12
    %v2707 = vld [vmem:[%s2705] ss:$16 sm:%s2706]
    %vm2708 = vcmask 1043458
    %v2709 = vsel %vm2708, %v2707, %v2704
    %s2710 = scalar_lea.vmem [#allocation1], 652
    %s2711 = smov 48
    %v2712 = vld [vmem:[%s2710] ss:$16 sm:%s2711]
    %vm2713 = vcmask 1045508
    %v2714 = vsel %vm2713, %v2712, %v2709
    %s2715 = scalar_lea.vmem [#allocation1], 652
    %s2716 = smov 192
    %v2717 = vld [vmem:[%s2715] ss:$16 sm:%s2716]
    %vm2718 = vcmask 1047558
    %v2719 = vsel %vm2718, %v2717, %v2714
    %2720 = vrot.lane.b32.xlu0 %v2719, 96
    %v2721 = vpop.permute.xlu0 %2720
    %vm2722 = vcmask 851712
    %s2723 = scalar_lea.vmem [#allocation0], 40
    %2724 = vst.msk [vmem:[%s2723] sm:$0xff] %vm2722, %v2721
    %s2725 = scalar_lea.vmem [#allocation1], 268
    %s2726 = smov 3
    %v2727 = vld [vmem:[%s2725] ss:$16 sm:%s2726]
    %s2728 = scalar_lea.vmem [#allocation1], 268
    %s2729 = smov 12
    %v2730 = vld [vmem:[%s2728] ss:$16 sm:%s2729]
    %vm2731 = vcmask 1043458
    %v2732 = vsel %vm2731, %v2730, %v2727
    %s2733 = scalar_lea.vmem [#allocation1], 268
    %s2734 = smov 48
    %v2735 = vld [vmem:[%s2733] ss:$16 sm:%s2734]
    %vm2736 = vcmask 1045508
    %v2737 = vsel %vm2736, %v2735, %v2732
    %s2738 = scalar_lea.vmem [#allocation1], 268
    %s2739 = smov 192
    %v2740 = vld [vmem:[%s2738] ss:$16 sm:%s2739]
    %vm2741 = vcmask 1047558
    %v2742 = vsel %vm2741, %v2740, %v2737
    %2743 = vrot.lane.b32.xlu0 %v2742, 96
    %v2744 = vpop.permute.xlu0 %2743
    %vm2745 = vcmask 851712
    %s2746 = scalar_lea.vmem [#allocation0], 16
    %2747 = vst.msk [vmem:[%s2746] sm:$0xff] %vm2745, %v2744
    %s2748 = scalar_lea.vmem [#allocation1], 780
    %s2749 = smov 3
    %v2750 = vld [vmem:[%s2748] ss:$16 sm:%s2749]
    %s2751 = scalar_lea.vmem [#allocation1], 780
    %s2752 = smov 12
    %v2753 = vld [vmem:[%s2751] ss:$16 sm:%s2752]
    %vm2754 = vcmask 1043458
    %v2755 = vsel %vm2754, %v2753, %v2750
    %s2756 = scalar_lea.vmem [#allocation1], 780
    %s2757 = smov 48
    %v2758 = vld [vmem:[%s2756] ss:$16 sm:%s2757]
    %vm2759 = vcmask 1045508
    %v2760 = vsel %vm2759, %v2758, %v2755
    %s2761 = scalar_lea.vmem [#allocation1], 780
    %s2762 = smov 192
    %v2763 = vld [vmem:[%s2761] ss:$16 sm:%s2762]
    %vm2764 = vcmask 1047558
    %v2765 = vsel %vm2764, %v2763, %v2760
    %2766 = vrot.lane.b32.xlu0 %v2765, 96
    %v2767 = vpop.permute.xlu0 %2766
    %vm2768 = vcmask 851712
    %s2769 = scalar_lea.vmem [#allocation0], 48
    %2770 = vst.msk [vmem:[%s2769] sm:$0xff] %vm2768, %v2767
    %s2771 = scalar_lea.vmem [#allocation1], 396
    %s2772 = smov 3
    %v2773 = vld [vmem:[%s2771] ss:$16 sm:%s2772]
    %s2774 = scalar_lea.vmem [#allocation1], 396
    %s2775 = smov 12
    %v2776 = vld [vmem:[%s2774] ss:$16 sm:%s2775]
    %vm2777 = vcmask 1043458
    %v2778 = vsel %vm2777, %v2776, %v2773
    %s2779 = scalar_lea.vmem [#allocation1], 396
    %s2780 = smov 48
    %v2781 = vld [vmem:[%s2779] ss:$16 sm:%s2780]
    %vm2782 = vcmask 1045508
    %v2783 = vsel %vm2782, %v2781, %v2778
    %s2784 = scalar_lea.vmem [#allocation1], 396
    %s2785 = smov 192
    %v2786 = vld [vmem:[%s2784] ss:$16 sm:%s2785]
    %vm2787 = vcmask 1047558
    %v2788 = vsel %vm2787, %v2786, %v2783
    %2789 = vrot.lane.b32.xlu0 %v2788, 96
    %v2790 = vpop.permute.xlu0 %2789
    %vm2791 = vcmask 851712
    %s2792 = scalar_lea.vmem [#allocation0], 24
    %2793 = vst.msk [vmem:[%s2792] sm:$0xff] %vm2791, %v2790
    %s2794 = scalar_lea.vmem [#allocation1], 908
    %s2795 = smov 3
    %v2796 = vld [vmem:[%s2794] ss:$16 sm:%s2795]
    %s2797 = scalar_lea.vmem [#allocation1], 908
    %s2798 = smov 12
    %v2799 = vld [vmem:[%s2797] ss:$16 sm:%s2798]
    %vm2800 = vcmask 1043458
    %v2801 = vsel %vm2800, %v2799, %v2796
    %s2802 = scalar_lea.vmem [#allocation1], 908
    %s2803 = smov 48
    %v2804 = vld [vmem:[%s2802] ss:$16 sm:%s2803]
    %vm2805 = vcmask 1045508
    %v2806 = vsel %vm2805, %v2804, %v2801
    %s2807 = scalar_lea.vmem [#allocation1], 908
    %s2808 = smov 192
    %v2809 = vld [vmem:[%s2807] ss:$16 sm:%s2808]
    %vm2810 = vcmask 1047558
    %v2811 = vsel %vm2810, %v2809, %v2806
    %2812 = vrot.lane.b32.xlu0 %v2811, 96
    %v2813 = vpop.permute.xlu0 %2812
    %vm2814 = vcmask 851712
    %s2815 = scalar_lea.vmem [#allocation0], 56
    %2816 = vst.msk [vmem:[%s2815] sm:$0xff] %vm2814, %v2813
    %s2817 = scalar_lea.vmem [#allocation1], 11
    %s2818 = smov 3
    %v2819 = vld [vmem:[%s2817] ss:$16 sm:%s2818]
    %s2820 = scalar_lea.vmem [#allocation1], 11
    %s2821 = smov 12
    %v2822 = vld [vmem:[%s2820] ss:$16 sm:%s2821]
    %vm2823 = vcmask 1043458
    %v2824 = vsel %vm2823, %v2822, %v2819
    %s2825 = scalar_lea.vmem [#allocation1], 11
    %s2826 = smov 48
    %v2827 = vld [vmem:[%s2825] ss:$16 sm:%s2826]
    %vm2828 = vcmask 1045508
    %v2829 = vsel %vm2828, %v2827, %v2824
    %s2830 = scalar_lea.vmem [#allocation1], 11
    %s2831 = smov 192
    %v2832 = vld [vmem:[%s2830] ss:$16 sm:%s2831]
    %vm2833 = vcmask 1047558
    %v2834 = vsel %vm2833, %v2832, %v2829
    %2835 = vrot.lane.b32.xlu0 %v2834, 88
    %v2836 = vpop.permute.xlu0 %2835
    %vm2837 = vcmask 786112
    %2838 = vst.msk [vmem:[#allocation0] sm:$0xff] %vm2837, %v2836
    %s2839 = scalar_lea.vmem [#allocation1], 523
    %s2840 = smov 3
    %v2841 = vld [vmem:[%s2839] ss:$16 sm:%s2840]
    %s2842 = scalar_lea.vmem [#allocation1], 523
    %s2843 = smov 12
    %v2844 = vld [vmem:[%s2842] ss:$16 sm:%s2843]
    %vm2845 = vcmask 1043458
    %v2846 = vsel %vm2845, %v2844, %v2841
    %s2847 = scalar_lea.vmem [#allocation1], 523
    %s2848 = smov 48
    %v2849 = vld [vmem:[%s2847] ss:$16 sm:%s2848]
    %vm2850 = vcmask 1045508
    %v2851 = vsel %vm2850, %v2849, %v2846
    %s2852 = scalar_lea.vmem [#allocation1], 523
    %s2853 = smov 192
    %v2854 = vld [vmem:[%s2852] ss:$16 sm:%s2853]
    %vm2855 = vcmask 1047558
    %v2856 = vsel %vm2855, %v2854, %v2851
    %2857 = vrot.lane.b32.xlu0 %v2856, 88
    %v2858 = vpop.permute.xlu0 %2857
    %vm2859 = vcmask 786112
    %s2860 = scalar_lea.vmem [#allocation0], 32
    %2861 = vst.msk [vmem:[%s2860] sm:$0xff] %vm2859, %v2858
    %s2862 = scalar_lea.vmem [#allocation1], 139
    %s2863 = smov 3
    %v2864 = vld [vmem:[%s2862] ss:$16 sm:%s2863]
    %s2865 = scalar_lea.vmem [#allocation1], 139
    %s2866 = smov 12
    %v2867 = vld [vmem:[%s2865] ss:$16 sm:%s2866]
    %vm2868 = vcmask 1043458
    %v2869 = vsel %vm2868, %v2867, %v2864
    %s2870 = scalar_lea.vmem [#allocation1], 139
    %s2871 = smov 48
    %v2872 = vld [vmem:[%s2870] ss:$16 sm:%s2871]
    %vm2873 = vcmask 1045508
    %v2874 = vsel %vm2873, %v2872, %v2869
    %s2875 = scalar_lea.vmem [#allocation1], 139
    %s2876 = smov 192
    %v2877 = vld [vmem:[%s2875] ss:$16 sm:%s2876]
    %vm2878 = vcmask 1047558
    %v2879 = vsel %vm2878, %v2877, %v2874
    %2880 = vrot.lane.b32.xlu0 %v2879, 88
    %v2881 = vpop.permute.xlu0 %2880
    %vm2882 = vcmask 786112
    %s2883 = scalar_lea.vmem [#allocation0], 8
    %2884 = vst.msk [vmem:[%s2883] sm:$0xff] %vm2882, %v2881
    %s2885 = scalar_lea.vmem [#allocation1], 651
    %s2886 = smov 3
    %v2887 = vld [vmem:[%s2885] ss:$16 sm:%s2886]
    %s2888 = scalar_lea.vmem [#allocation1], 651
    %s2889 = smov 12
    %v2890 = vld [vmem:[%s2888] ss:$16 sm:%s2889]
    %vm2891 = vcmask 1043458
    %v2892 = vsel %vm2891, %v2890, %v2887
    %s2893 = scalar_lea.vmem [#allocation1], 651
    %s2894 = smov 48
    %v2895 = vld [vmem:[%s2893] ss:$16 sm:%s2894]
    %vm2896 = vcmask 1045508
    %v2897 = vsel %vm2896, %v2895, %v2892
    %s2898 = scalar_lea.vmem [#allocation1], 651
    %s2899 = smov 192
    %v2900 = vld [vmem:[%s2898] ss:$16 sm:%s2899]
    %vm2901 = vcmask 1047558
    %v2902 = vsel %vm2901, %v2900, %v2897
    %2903 = vrot.lane.b32.xlu0 %v2902, 88
    %v2904 = vpop.permute.xlu0 %2903
    %vm2905 = vcmask 786112
    %s2906 = scalar_lea.vmem [#allocation0], 40
    %2907 = vst.msk [vmem:[%s2906] sm:$0xff] %vm2905, %v2904
    %s2908 = scalar_lea.vmem [#allocation1], 267
    %s2909 = smov 3
    %v2910 = vld [vmem:[%s2908] ss:$16 sm:%s2909]
    %s2911 = scalar_lea.vmem [#allocation1], 267
    %s2912 = smov 12
    %v2913 = vld [vmem:[%s2911] ss:$16 sm:%s2912]
    %vm2914 = vcmask 1043458
    %v2915 = vsel %vm2914, %v2913, %v2910
    %s2916 = scalar_lea.vmem [#allocation1], 267
    %s2917 = smov 48
    %v2918 = vld [vmem:[%s2916] ss:$16 sm:%s2917]
    %vm2919 = vcmask 1045508
    %v2920 = vsel %vm2919, %v2918, %v2915
    %s2921 = scalar_lea.vmem [#allocation1], 267
    %s2922 = smov 192
    %v2923 = vld [vmem:[%s2921] ss:$16 sm:%s2922]
    %vm2924 = vcmask 1047558
    %v2925 = vsel %vm2924, %v2923, %v2920
    %2926 = vrot.lane.b32.xlu0 %v2925, 88
    %v2927 = vpop.permute.xlu0 %2926
    %vm2928 = vcmask 786112
    %s2929 = scalar_lea.vmem [#allocation0], 16
    %2930 = vst.msk [vmem:[%s2929] sm:$0xff] %vm2928, %v2927
    %s2931 = scalar_lea.vmem [#allocation1], 779
    %s2932 = smov 3
    %v2933 = vld [vmem:[%s2931] ss:$16 sm:%s2932]
    %s2934 = scalar_lea.vmem [#allocation1], 779
    %s2935 = smov 12
    %v2936 = vld [vmem:[%s2934] ss:$16 sm:%s2935]
    %vm2937 = vcmask 1043458
    %v2938 = vsel %vm2937, %v2936, %v2933
    %s2939 = scalar_lea.vmem [#allocation1], 779
    %s2940 = smov 48
    %v2941 = vld [vmem:[%s2939] ss:$16 sm:%s2940]
    %vm2942 = vcmask 1045508
    %v2943 = vsel %vm2942, %v2941, %v2938
    %s2944 = scalar_lea.vmem [#allocation1], 779
    %s2945 = smov 192
    %v2946 = vld [vmem:[%s2944] ss:$16 sm:%s2945]
    %vm2947 = vcmask 1047558
    %v2948 = vsel %vm2947, %v2946, %v2943
    %2949 = vrot.lane.b32.xlu0 %v2948, 88
    %v2950 = vpop.permute.xlu0 %2949
    %vm2951 = vcmask 786112
    %s2952 = scalar_lea.vmem [#allocation0], 48
    %2953 = vst.msk [vmem:[%s2952] sm:$0xff] %vm2951, %v2950
    %s2954 = scalar_lea.vmem [#allocation1], 395
    %s2955 = smov 3
    %v2956 = vld [vmem:[%s2954] ss:$16 sm:%s2955]
    %s2957 = scalar_lea.vmem [#allocation1], 395
    %s2958 = smov 12
    %v2959 = vld [vmem:[%s2957] ss:$16 sm:%s2958]
    %vm2960 = vcmask 1043458
    %v2961 = vsel %vm2960, %v2959, %v2956
    %s2962 = scalar_lea.vmem [#allocation1], 395
    %s2963 = smov 48
    %v2964 = vld [vmem:[%s2962] ss:$16 sm:%s2963]
    %vm2965 = vcmask 1045508
    %v2966 = vsel %vm2965, %v2964, %v2961
    %s2967 = scalar_lea.vmem [#allocation1], 395
    %s2968 = smov 192
    %v2969 = vld [vmem:[%s2967] ss:$16 sm:%s2968]
    %vm2970 = vcmask 1047558
    %v2971 = vsel %vm2970, %v2969, %v2966
    %2972 = vrot.lane.b32.xlu0 %v2971, 88
    %v2973 = vpop.permute.xlu0 %2972
    %vm2974 = vcmask 786112
    %s2975 = scalar_lea.vmem [#allocation0], 24
    %2976 = vst.msk [vmem:[%s2975] sm:$0xff] %vm2974, %v2973
    %s2977 = scalar_lea.vmem [#allocation1], 907
    %s2978 = smov 3
    %v2979 = vld [vmem:[%s2977] ss:$16 sm:%s2978]
    %s2980 = scalar_lea.vmem [#allocation1], 907
    %s2981 = smov 12
    %v2982 = vld [vmem:[%s2980] ss:$16 sm:%s2981]
    %vm2983 = vcmask 1043458
    %v2984 = vsel %vm2983, %v2982, %v2979
    %s2985 = scalar_lea.vmem [#allocation1], 907
    %s2986 = smov 48
    %v2987 = vld [vmem:[%s2985] ss:$16 sm:%s2986]
    %vm2988 = vcmask 1045508
    %v2989 = vsel %vm2988, %v2987, %v2984
    %s2990 = scalar_lea.vmem [#allocation1], 907
    %s2991 = smov 192
    %v2992 = vld [vmem:[%s2990] ss:$16 sm:%s2991]
    %vm2993 = vcmask 1047558
    %v2994 = vsel %vm2993, %v2992, %v2989
    %2995 = vrot.lane.b32.xlu0 %v2994, 88
    %v2996 = vpop.permute.xlu0 %2995
    %vm2997 = vcmask 786112
    %s2998 = scalar_lea.vmem [#allocation0], 56
    %2999 = vst.msk [vmem:[%s2998] sm:$0xff] %vm2997, %v2996
    %s3000 = scalar_lea.vmem [#allocation1], 10
    %s3001 = smov 3
    %v3002 = vld [vmem:[%s3000] ss:$16 sm:%s3001]
    %s3003 = scalar_lea.vmem [#allocation1], 10
    %s3004 = smov 12
    %v3005 = vld [vmem:[%s3003] ss:$16 sm:%s3004]
    %vm3006 = vcmask 1043458
    %v3007 = vsel %vm3006, %v3005, %v3002
    %s3008 = scalar_lea.vmem [#allocation1], 10
    %s3009 = smov 48
    %v3010 = vld [vmem:[%s3008] ss:$16 sm:%s3009]
    %vm3011 = vcmask 1045508
    %v3012 = vsel %vm3011, %v3010, %v3007
    %s3013 = scalar_lea.vmem [#allocation1], 10
    %s3014 = smov 192
    %v3015 = vld [vmem:[%s3013] ss:$16 sm:%s3014]
    %vm3016 = vcmask 1047558
    %v3017 = vsel %vm3016, %v3015, %v3012
    %3018 = vrot.lane.b32.xlu0 %v3017, 80
    %v3019 = vpop.permute.xlu0 %3018
    %vm3020 = vcmask 720512
    %3021 = vst.msk [vmem:[#allocation0] sm:$0xff] %vm3020, %v3019
    %s3022 = scalar_lea.vmem [#allocation1], 522
    %s3023 = smov 3
    %v3024 = vld [vmem:[%s3022] ss:$16 sm:%s3023]
    %s3025 = scalar_lea.vmem [#allocation1], 522
    %s3026 = smov 12
    %v3027 = vld [vmem:[%s3025] ss:$16 sm:%s3026]
    %vm3028 = vcmask 1043458
    %v3029 = vsel %vm3028, %v3027, %v3024
    %s3030 = scalar_lea.vmem [#allocation1], 522
    %s3031 = smov 48
    %v3032 = vld [vmem:[%s3030] ss:$16 sm:%s3031]
    %vm3033 = vcmask 1045508
    %v3034 = vsel %vm3033, %v3032, %v3029
    %s3035 = scalar_lea.vmem [#allocation1], 522
    %s3036 = smov 192
    %v3037 = vld [vmem:[%s3035] ss:$16 sm:%s3036]
    %vm3038 = vcmask 1047558
    %v3039 = vsel %vm3038, %v3037, %v3034
    %3040 = vrot.lane.b32.xlu0 %v3039, 80
    %v3041 = vpop.permute.xlu0 %3040
    %vm3042 = vcmask 720512
    %s3043 = scalar_lea.vmem [#allocation0], 32
    %3044 = vst.msk [vmem:[%s3043] sm:$0xff] %vm3042, %v3041
    %s3045 = scalar_lea.vmem [#allocation1], 138
    %s3046 = smov 3
    %v3047 = vld [vmem:[%s3045] ss:$16 sm:%s3046]
    %s3048 = scalar_lea.vmem [#allocation1], 138
    %s3049 = smov 12
    %v3050 = vld [vmem:[%s3048] ss:$16 sm:%s3049]
    %vm3051 = vcmask 1043458
    %v3052 = vsel %vm3051, %v3050, %v3047
    %s3053 = scalar_lea.vmem [#allocation1], 138
    %s3054 = smov 48
    %v3055 = vld [vmem:[%s3053] ss:$16 sm:%s3054]
    %vm3056 = vcmask 1045508
    %v3057 = vsel %vm3056, %v3055, %v3052
    %s3058 = scalar_lea.vmem [#allocation1], 138
    %s3059 = smov 192
    %v3060 = vld [vmem:[%s3058] ss:$16 sm:%s3059]
    %vm3061 = vcmask 1047558
    %v3062 = vsel %vm3061, %v3060, %v3057
    %3063 = vrot.lane.b32.xlu0 %v3062, 80
    %v3064 = vpop.permute.xlu0 %3063
    %vm3065 = vcmask 720512
    %s3066 = scalar_lea.vmem [#allocation0], 8
    %3067 = vst.msk [vmem:[%s3066] sm:$0xff] %vm3065, %v3064
    %s3068 = scalar_lea.vmem [#allocation1], 650
    %s3069 = smov 3
    %v3070 = vld [vmem:[%s3068] ss:$16 sm:%s3069]
    %s3071 = scalar_lea.vmem [#allocation1], 650
    %s3072 = smov 12
    %v3073 = vld [vmem:[%s3071] ss:$16 sm:%s3072]
    %vm3074 = vcmask 1043458
    %v3075 = vsel %vm3074, %v3073, %v3070
    %s3076 = scalar_lea.vmem [#allocation1], 650
    %s3077 = smov 48
    %v3078 = vld [vmem:[%s3076] ss:$16 sm:%s3077]
    %vm3079 = vcmask 1045508
    %v3080 = vsel %vm3079, %v3078, %v3075
    %s3081 = scalar_lea.vmem [#allocation1], 650
    %s3082 = smov 192
    %v3083 = vld [vmem:[%s3081] ss:$16 sm:%s3082]
    %vm3084 = vcmask 1047558
    %v3085 = vsel %vm3084, %v3083, %v3080
    %3086 = vrot.lane.b32.xlu0 %v3085, 80
    %v3087 = vpop.permute.xlu0 %3086
    %vm3088 = vcmask 720512
    %s3089 = scalar_lea.vmem [#allocation0], 40
    %3090 = vst.msk [vmem:[%s3089] sm:$0xff] %vm3088, %v3087
    %s3091 = scalar_lea.vmem [#allocation1], 266
    %s3092 = smov 3
    %v3093 = vld [vmem:[%s3091] ss:$16 sm:%s3092]
    %s3094 = scalar_lea.vmem [#allocation1], 266
    %s3095 = smov 12
    %v3096 = vld [vmem:[%s3094] ss:$16 sm:%s3095]
    %vm3097 = vcmask 1043458
    %v3098 = vsel %vm3097, %v3096, %v3093
    %s3099 = scalar_lea.vmem [#allocation1], 266
    %s3100 = smov 48
    %v3101 = vld [vmem:[%s3099] ss:$16 sm:%s3100]
    %vm3102 = vcmask 1045508
    %v3103 = vsel %vm3102, %v3101, %v3098
    %s3104 = scalar_lea.vmem [#allocation1], 266
    %s3105 = smov 192
    %v3106 = vld [vmem:[%s3104] ss:$16 sm:%s3105]
    %vm3107 = vcmask 1047558
    %v3108 = vsel %vm3107, %v3106, %v3103
    %3109 = vrot.lane.b32.xlu0 %v3108, 80
    %v3110 = vpop.permute.xlu0 %3109
    %vm3111 = vcmask 720512
    %s3112 = scalar_lea.vmem [#allocation0], 16
    %3113 = vst.msk [vmem:[%s3112] sm:$0xff] %vm3111, %v3110
    %s3114 = scalar_lea.vmem [#allocation1], 778
    %s3115 = smov 3
    %v3116 = vld [vmem:[%s3114] ss:$16 sm:%s3115]
    %s3117 = scalar_lea.vmem [#allocation1], 778
    %s3118 = smov 12
    %v3119 = vld [vmem:[%s3117] ss:$16 sm:%s3118]
    %vm3120 = vcmask 1043458
    %v3121 = vsel %vm3120, %v3119, %v3116
    %s3122 = scalar_lea.vmem [#allocation1], 778
    %s3123 = smov 48
    %v3124 = vld [vmem:[%s3122] ss:$16 sm:%s3123]
    %vm3125 = vcmask 1045508
    %v3126 = vsel %vm3125, %v3124, %v3121
    %s3127 = scalar_lea.vmem [#allocation1], 778
    %s3128 = smov 192
    %v3129 = vld [vmem:[%s3127] ss:$16 sm:%s3128]
    %vm3130 = vcmask 1047558
    %v3131 = vsel %vm3130, %v3129, %v3126
    %3132 = vrot.lane.b32.xlu0 %v3131, 80
    %v3133 = vpop.permute.xlu0 %3132
    %vm3134 = vcmask 720512
    %s3135 = scalar_lea.vmem [#allocation0], 48
    %3136 = vst.msk [vmem:[%s3135] sm:$0xff] %vm3134, %v3133
    %s3137 = scalar_lea.vmem [#allocation1], 394
    %s3138 = smov 3
    %v3139 = vld [vmem:[%s3137] ss:$16 sm:%s3138]
    %s3140 = scalar_lea.vmem [#allocation1], 394
    %s3141 = smov 12
    %v3142 = vld [vmem:[%s3140] ss:$16 sm:%s3141]
    %vm3143 = vcmask 1043458
    %v3144 = vsel %vm3143, %v3142, %v3139
    %s3145 = scalar_lea.vmem [#allocation1], 394
    %s3146 = smov 48
    %v3147 = vld [vmem:[%s3145] ss:$16 sm:%s3146]
    %vm3148 = vcmask 1045508
    %v3149 = vsel %vm3148, %v3147, %v3144
    %s3150 = scalar_lea.vmem [#allocation1], 394
    %s3151 = smov 192
    %v3152 = vld [vmem:[%s3150] ss:$16 sm:%s3151]
    %vm3153 = vcmask 1047558
    %v3154 = vsel %vm3153, %v3152, %v3149
    %3155 = vrot.lane.b32.xlu0 %v3154, 80
    %v3156 = vpop.permute.xlu0 %3155
    %vm3157 = vcmask 720512
    %s3158 = scalar_lea.vmem [#allocation0], 24
    %3159 = vst.msk [vmem:[%s3158] sm:$0xff] %vm3157, %v3156
    %s3160 = scalar_lea.vmem [#allocation1], 906
    %s3161 = smov 3
    %v3162 = vld [vmem:[%s3160] ss:$16 sm:%s3161]
    %s3163 = scalar_lea.vmem [#allocation1], 906
    %s3164 = smov 12
    %v3165 = vld [vmem:[%s3163] ss:$16 sm:%s3164]
    %vm3166 = vcmask 1043458
    %v3167 = vsel %vm3166, %v3165, %v3162
    %s3168 = scalar_lea.vmem [#allocation1], 906
    %s3169 = smov 48
    %v3170 = vld [vmem:[%s3168] ss:$16 sm:%s3169]
    %vm3171 = vcmask 1045508
    %v3172 = vsel %vm3171, %v3170, %v3167
    %s3173 = scalar_lea.vmem [#allocation1], 906
    %s3174 = smov 192
    %v3175 = vld [vmem:[%s3173] ss:$16 sm:%s3174]
    %vm3176 = vcmask 1047558
    %v3177 = vsel %vm3176, %v3175, %v3172
    %3178 = vrot.lane.b32.xlu0 %v3177, 80
    %v3179 = vpop.permute.xlu0 %3178
    %vm3180 = vcmask 720512
    %s3181 = scalar_lea.vmem [#allocation0], 56
    %3182 = vst.msk [vmem:[%s3181] sm:$0xff] %vm3180, %v3179
    %s3183 = scalar_lea.vmem [#allocation1], 9
    %s3184 = smov 3
    %v3185 = vld [vmem:[%s3183] ss:$16 sm:%s3184]
    %s3186 = scalar_lea.vmem [#allocation1], 9
    %s3187 = smov 12
    %v3188 = vld [vmem:[%s3186] ss:$16 sm:%s3187]
    %vm3189 = vcmask 1043458
    %v3190 = vsel %vm3189, %v3188, %v3185
    %s3191 = scalar_lea.vmem [#allocation1], 9
    %s3192 = smov 48
    %v3193 = vld [vmem:[%s3191] ss:$16 sm:%s3192]
    %vm3194 = vcmask 1045508
    %v3195 = vsel %vm3194, %v3193, %v3190
    %s3196 = scalar_lea.vmem [#allocation1], 9
    %s3197 = smov 192
    %v3198 = vld [vmem:[%s3196] ss:$16 sm:%s3197]
    %vm3199 = vcmask 1047558
    %v3200 = vsel %vm3199, %v3198, %v3195
    %3201 = vrot.lane.b32.xlu0 %v3200, 72
    %v3202 = vpop.permute.xlu0 %3201
    %vm3203 = vcmask 654912
    %3204 = vst.msk [vmem:[#allocation0] sm:$0xff] %vm3203, %v3202
    %s3205 = scalar_lea.vmem [#allocation1], 521
    %s3206 = smov 3
    %v3207 = vld [vmem:[%s3205] ss:$16 sm:%s3206]
    %s3208 = scalar_lea.vmem [#allocation1], 521
    %s3209 = smov 12
    %v3210 = vld [vmem:[%s3208] ss:$16 sm:%s3209]
    %vm3211 = vcmask 1043458
    %v3212 = vsel %vm3211, %v3210, %v3207
    %s3213 = scalar_lea.vmem [#allocation1], 521
    %s3214 = smov 48
    %v3215 = vld [vmem:[%s3213] ss:$16 sm:%s3214]
    %vm3216 = vcmask 1045508
    %v3217 = vsel %vm3216, %v3215, %v3212
    %s3218 = scalar_lea.vmem [#allocation1], 521
    %s3219 = smov 192
    %v3220 = vld [vmem:[%s3218] ss:$16 sm:%s3219]
    %vm3221 = vcmask 1047558
    %v3222 = vsel %vm3221, %v3220, %v3217
    %3223 = vrot.lane.b32.xlu0 %v3222, 72
    %v3224 = vpop.permute.xlu0 %3223
    %vm3225 = vcmask 654912
    %s3226 = scalar_lea.vmem [#allocation0], 32
    %3227 = vst.msk [vmem:[%s3226] sm:$0xff] %vm3225, %v3224
    %s3228 = scalar_lea.vmem [#allocation1], 137
    %s3229 = smov 3
    %v3230 = vld [vmem:[%s3228] ss:$16 sm:%s3229]
    %s3231 = scalar_lea.vmem [#allocation1], 137
    %s3232 = smov 12
    %v3233 = vld [vmem:[%s3231] ss:$16 sm:%s3232]
    %vm3234 = vcmask 1043458
    %v3235 = vsel %vm3234, %v3233, %v3230
    %s3236 = scalar_lea.vmem [#allocation1], 137
    %s3237 = smov 48
    %v3238 = vld [vmem:[%s3236] ss:$16 sm:%s3237]
    %vm3239 = vcmask 1045508
    %v3240 = vsel %vm3239, %v3238, %v3235
    %s3241 = scalar_lea.vmem [#allocation1], 137
    %s3242 = smov 192
    %v3243 = vld [vmem:[%s3241] ss:$16 sm:%s3242]
    %vm3244 = vcmask 1047558
    %v3245 = vsel %vm3244, %v3243, %v3240
    %3246 = vrot.lane.b32.xlu0 %v3245, 72
    %v3247 = vpop.permute.xlu0 %3246
    %vm3248 = vcmask 654912
    %s3249 = scalar_lea.vmem [#allocation0], 8
    %3250 = vst.msk [vmem:[%s3249] sm:$0xff] %vm3248, %v3247
    %s3251 = scalar_lea.vmem [#allocation1], 649
    %s3252 = smov 3
    %v3253 = vld [vmem:[%s3251] ss:$16 sm:%s3252]
    %s3254 = scalar_lea.vmem [#allocation1], 649
    %s3255 = smov 12
    %v3256 = vld [vmem:[%s3254] ss:$16 sm:%s3255]
    %vm3257 = vcmask 1043458
    %v3258 = vsel %vm3257, %v3256, %v3253
    %s3259 = scalar_lea.vmem [#allocation1], 649
    %s3260 = smov 48
    %v3261 = vld [vmem:[%s3259] ss:$16 sm:%s3260]
    %vm3262 = vcmask 1045508
    %v3263 = vsel %vm3262, %v3261, %v3258
    %s3264 = scalar_lea.vmem [#allocation1], 649
    %s3265 = smov 192
    %v3266 = vld [vmem:[%s3264] ss:$16 sm:%s3265]
    %vm3267 = vcmask 1047558
    %v3268 = vsel %vm3267, %v3266, %v3263
    %3269 = vrot.lane.b32.xlu0 %v3268, 72
    %v3270 = vpop.permute.xlu0 %3269
    %vm3271 = vcmask 654912
    %s3272 = scalar_lea.vmem [#allocation0], 40
    %3273 = vst.msk [vmem:[%s3272] sm:$0xff] %vm3271, %v3270
    %s3274 = scalar_lea.vmem [#allocation1], 265
    %s3275 = smov 3
    %v3276 = vld [vmem:[%s3274] ss:$16 sm:%s3275]
    %s3277 = scalar_lea.vmem [#allocation1], 265
    %s3278 = smov 12
    %v3279 = vld [vmem:[%s3277] ss:$16 sm:%s3278]
    %vm3280 = vcmask 1043458
    %v3281 = vsel %vm3280, %v3279, %v3276
    %s3282 = scalar_lea.vmem [#allocation1], 265
    %s3283 = smov 48
    %v3284 = vld [vmem:[%s3282] ss:$16 sm:%s3283]
    %vm3285 = vcmask 1045508
    %v3286 = vsel %vm3285, %v3284, %v3281
    %s3287 = scalar_lea.vmem [#allocation1], 265
    %s3288 = smov 192
    %v3289 = vld [vmem:[%s3287] ss:$16 sm:%s3288]
    %vm3290 = vcmask 1047558
    %v3291 = vsel %vm3290, %v3289, %v3286
    %3292 = vrot.lane.b32.xlu0 %v3291, 72
    %v3293 = vpop.permute.xlu0 %3292
    %vm3294 = vcmask 654912
    %s3295 = scalar_lea.vmem [#allocation0], 16
    %3296 = vst.msk [vmem:[%s3295] sm:$0xff] %vm3294, %v3293
    %s3297 = scalar_lea.vmem [#allocation1], 777
    %s3298 = smov 3
    %v3299 = vld [vmem:[%s3297] ss:$16 sm:%s3298]
    %s3300 = scalar_lea.vmem [#allocation1], 777
    %s3301 = smov 12
    %v3302 = vld [vmem:[%s3300] ss:$16 sm:%s3301]
    %vm3303 = vcmask 1043458
    %v3304 = vsel %vm3303, %v3302, %v3299
    %s3305 = scalar_lea.vmem [#allocation1], 777
    %s3306 = smov 48
    %v3307 = vld [vmem:[%s3305] ss:$16 sm:%s3306]
    %vm3308 = vcmask 1045508
    %v3309 = vsel %vm3308, %v3307, %v3304
    %s3310 = scalar_lea.vmem [#allocation1], 777
    %s3311 = smov 192
    %v3312 = vld [vmem:[%s3310] ss:$16 sm:%s3311]
    %vm3313 = vcmask 1047558
    %v3314 = vsel %vm3313, %v3312, %v3309
    %3315 = vrot.lane.b32.xlu0 %v3314, 72
    %v3316 = vpop.permute.xlu0 %3315
    %vm3317 = vcmask 654912
    %s3318 = scalar_lea.vmem [#allocation0], 48
    %3319 = vst.msk [vmem:[%s3318] sm:$0xff] %vm3317, %v3316
    %s3320 = scalar_lea.vmem [#allocation1], 393
    %s3321 = smov 3
    %v3322 = vld [vmem:[%s3320] ss:$16 sm:%s3321]
    %s3323 = scalar_lea.vmem [#allocation1], 393
    %s3324 = smov 12
    %v3325 = vld [vmem:[%s3323] ss:$16 sm:%s3324]
    %vm3326 = vcmask 1043458
    %v3327 = vsel %vm3326, %v3325, %v3322
    %s3328 = scalar_lea.vmem [#allocation1], 393
    %s3329 = smov 48
    %v3330 = vld [vmem:[%s3328] ss:$16 sm:%s3329]
    %vm3331 = vcmask 1045508
    %v3332 = vsel %vm3331, %v3330, %v3327
    %s3333 = scalar_lea.vmem [#allocation1], 393
    %s3334 = smov 192
    %v3335 = vld [vmem:[%s3333] ss:$16 sm:%s3334]
    %vm3336 = vcmask 1047558
    %v3337 = vsel %vm3336, %v3335, %v3332
    %3338 = vrot.lane.b32.xlu0 %v3337, 72
    %v3339 = vpop.permute.xlu0 %3338
    %vm3340 = vcmask 654912
    %s3341 = scalar_lea.vmem [#allocation0], 24
    %3342 = vst.msk [vmem:[%s3341] sm:$0xff] %vm3340, %v3339
    %s3343 = scalar_lea.vmem [#allocation1], 905
    %s3344 = smov 3
    %v3345 = vld [vmem:[%s3343] ss:$16 sm:%s3344]
    %s3346 = scalar_lea.vmem [#allocation1], 905
    %s3347 = smov 12
    %v3348 = vld [vmem:[%s3346] ss:$16 sm:%s3347]
    %vm3349 = vcmask 1043458
    %v3350 = vsel %vm3349, %v3348, %v3345
    %s3351 = scalar_lea.vmem [#allocation1], 905
    %s3352 = smov 48
    %v3353 = vld [vmem:[%s3351] ss:$16 sm:%s3352]
    %vm3354 = vcmask 1045508
    %v3355 = vsel %vm3354, %v3353, %v3350
    %s3356 = scalar_lea.vmem [#allocation1], 905
    %s3357 = smov 192
    %v3358 = vld [vmem:[%s3356] ss:$16 sm:%s3357]
    %vm3359 = vcmask 1047558
    %v3360 = vsel %vm3359, %v3358, %v3355
    %3361 = vrot.lane.b32.xlu0 %v3360, 72
    %v3362 = vpop.permute.xlu0 %3361
    %vm3363 = vcmask 654912
    %s3364 = scalar_lea.vmem [#allocation0], 56
    %3365 = vst.msk [vmem:[%s3364] sm:$0xff] %vm3363, %v3362
    %s3366 = scalar_lea.vmem [#allocation1], 8
    %s3367 = smov 3
    %v3368 = vld [vmem:[%s3366] ss:$16 sm:%s3367]
    %s3369 = scalar_lea.vmem [#allocation1], 8
    %s3370 = smov 12
    %v3371 = vld [vmem:[%s3369] ss:$16 sm:%s3370]
    %vm3372 = vcmask 1043458
    %v3373 = vsel %vm3372, %v3371, %v3368
    %s3374 = scalar_lea.vmem [#allocation1], 8
    %s3375 = smov 48
    %v3376 = vld [vmem:[%s3374] ss:$16 sm:%s3375]
    %vm3377 = vcmask 1045508
    %v3378 = vsel %vm3377, %v3376, %v3373
    %s3379 = scalar_lea.vmem [#allocation1], 8
    %s3380 = smov 192
    %v3381 = vld [vmem:[%s3379] ss:$16 sm:%s3380]
    %vm3382 = vcmask 1047558
    %v3383 = vsel %vm3382, %v3381, %v3378
    %3384 = vrot.lane.b32.xlu0 %v3383, 64
    %v3385 = vpop.permute.xlu0 %3384
    %vm3386 = vcmask 589312
    %3387 = vst.msk [vmem:[#allocation0] sm:$0xff] %vm3386, %v3385
    %s3388 = scalar_lea.vmem [#allocation1], 520
    %s3389 = smov 3
    %v3390 = vld [vmem:[%s3388] ss:$16 sm:%s3389]
    %s3391 = scalar_lea.vmem [#allocation1], 520
    %s3392 = smov 12
    %v3393 = vld [vmem:[%s3391] ss:$16 sm:%s3392]
    %vm3394 = vcmask 1043458
    %v3395 = vsel %vm3394, %v3393, %v3390
    %s3396 = scalar_lea.vmem [#allocation1], 520
    %s3397 = smov 48
    %v3398 = vld [vmem:[%s3396] ss:$16 sm:%s3397]
    %vm3399 = vcmask 1045508
    %v3400 = vsel %vm3399, %v3398, %v3395
    %s3401 = scalar_lea.vmem [#allocation1], 520
    %s3402 = smov 192
    %v3403 = vld [vmem:[%s3401] ss:$16 sm:%s3402]
    %vm3404 = vcmask 1047558
    %v3405 = vsel %vm3404, %v3403, %v3400
    %3406 = vrot.lane.b32.xlu0 %v3405, 64
    %v3407 = vpop.permute.xlu0 %3406
    %vm3408 = vcmask 589312
    %s3409 = scalar_lea.vmem [#allocation0], 32
    %3410 = vst.msk [vmem:[%s3409] sm:$0xff] %vm3408, %v3407
    %s3411 = scalar_lea.vmem [#allocation1], 136
    %s3412 = smov 3
    %v3413 = vld [vmem:[%s3411] ss:$16 sm:%s3412]
    %s3414 = scalar_lea.vmem [#allocation1], 136
    %s3415 = smov 12
    %v3416 = vld [vmem:[%s3414] ss:$16 sm:%s3415]
    %vm3417 = vcmask 1043458
    %v3418 = vsel %vm3417, %v3416, %v3413
    %s3419 = scalar_lea.vmem [#allocation1], 136
    %s3420 = smov 48
    %v3421 = vld [vmem:[%s3419] ss:$16 sm:%s3420]
    %vm3422 = vcmask 1045508
    %v3423 = vsel %vm3422, %v3421, %v3418
    %s3424 = scalar_lea.vmem [#allocation1], 136
    %s3425 = smov 192
    %v3426 = vld [vmem:[%s3424] ss:$16 sm:%s3425]
    %vm3427 = vcmask 1047558
    %v3428 = vsel %vm3427, %v3426, %v3423
    %3429 = vrot.lane.b32.xlu0 %v3428, 64
    %v3430 = vpop.permute.xlu0 %3429
    %vm3431 = vcmask 589312
    %s3432 = scalar_lea.vmem [#allocation0], 8
    %3433 = vst.msk [vmem:[%s3432] sm:$0xff] %vm3431, %v3430
    %s3434 = scalar_lea.vmem [#allocation1], 648
    %s3435 = smov 3
    %v3436 = vld [vmem:[%s3434] ss:$16 sm:%s3435]
    %s3437 = scalar_lea.vmem [#allocation1], 648
    %s3438 = smov 12
    %v3439 = vld [vmem:[%s3437] ss:$16 sm:%s3438]
    %vm3440 = vcmask 1043458
    %v3441 = vsel %vm3440, %v3439, %v3436
    %s3442 = scalar_lea.vmem [#allocation1], 648
    %s3443 = smov 48
    %v3444 = vld [vmem:[%s3442] ss:$16 sm:%s3443]
    %vm3445 = vcmask 1045508
    %v3446 = vsel %vm3445, %v3444, %v3441
    %s3447 = scalar_lea.vmem [#allocation1], 648
    %s3448 = smov 192
    %v3449 = vld [vmem:[%s3447] ss:$16 sm:%s3448]
    %vm3450 = vcmask 1047558
    %v3451 = vsel %vm3450, %v3449, %v3446
    %3452 = vrot.lane.b32.xlu0 %v3451, 64
    %v3453 = vpop.permute.xlu0 %3452
    %vm3454 = vcmask 589312
    %s3455 = scalar_lea.vmem [#allocation0], 40
    %3456 = vst.msk [vmem:[%s3455] sm:$0xff] %vm3454, %v3453
    %s3457 = scalar_lea.vmem [#allocation1], 264
    %s3458 = smov 3
    %v3459 = vld [vmem:[%s3457] ss:$16 sm:%s3458]
    %s3460 = scalar_lea.vmem [#allocation1], 264
    %s3461 = smov 12
    %v3462 = vld [vmem:[%s3460] ss:$16 sm:%s3461]
    %vm3463 = vcmask 1043458
    %v3464 = vsel %vm3463, %v3462, %v3459
    %s3465 = scalar_lea.vmem [#allocation1], 264
    %s3466 = smov 48
    %v3467 = vld [vmem:[%s3465] ss:$16 sm:%s3466]
    %vm3468 = vcmask 1045508
    %v3469 = vsel %vm3468, %v3467, %v3464
    %s3470 = scalar_lea.vmem [#allocation1], 264
    %s3471 = smov 192
    %v3472 = vld [vmem:[%s3470] ss:$16 sm:%s3471]
    %vm3473 = vcmask 1047558
    %v3474 = vsel %vm3473, %v3472, %v3469
    %3475 = vrot.lane.b32.xlu0 %v3474, 64
    %v3476 = vpop.permute.xlu0 %3475
    %vm3477 = vcmask 589312
    %s3478 = scalar_lea.vmem [#allocation0], 16
    %3479 = vst.msk [vmem:[%s3478] sm:$0xff] %vm3477, %v3476
    %s3480 = scalar_lea.vmem [#allocation1], 776
    %s3481 = smov 3
    %v3482 = vld [vmem:[%s3480] ss:$16 sm:%s3481]
    %s3483 = scalar_lea.vmem [#allocation1], 776
    %s3484 = smov 12
    %v3485 = vld [vmem:[%s3483] ss:$16 sm:%s3484]
    %vm3486 = vcmask 1043458
    %v3487 = vsel %vm3486, %v3485, %v3482
    %s3488 = scalar_lea.vmem [#allocation1], 776
    %s3489 = smov 48
    %v3490 = vld [vmem:[%s3488] ss:$16 sm:%s3489]
    %vm3491 = vcmask 1045508
    %v3492 = vsel %vm3491, %v3490, %v3487
    %s3493 = scalar_lea.vmem [#allocation1], 776
    %s3494 = smov 192
    %v3495 = vld [vmem:[%s3493] ss:$16 sm:%s3494]
    %vm3496 = vcmask 1047558
    %v3497 = vsel %vm3496, %v3495, %v3492
    %3498 = vrot.lane.b32.xlu0 %v3497, 64
    %v3499 = vpop.permute.xlu0 %3498
    %vm3500 = vcmask 589312
    %s3501 = scalar_lea.vmem [#allocation0], 48
    %3502 = vst.msk [vmem:[%s3501] sm:$0xff] %vm3500, %v3499
    %s3503 = scalar_lea.vmem [#allocation1], 392
    %s3504 = smov 3
    %v3505 = vld [vmem:[%s3503] ss:$16 sm:%s3504]
    %s3506 = scalar_lea.vmem [#allocation1], 392
    %s3507 = smov 12
    %v3508 = vld [vmem:[%s3506] ss:$16 sm:%s3507]
    %vm3509 = vcmask 1043458
    %v3510 = vsel %vm3509, %v3508, %v3505
    %s3511 = scalar_lea.vmem [#allocation1], 392
    %s3512 = smov 48
    %v3513 = vld [vmem:[%s3511] ss:$16 sm:%s3512]
    %vm3514 = vcmask 1045508
    %v3515 = vsel %vm3514, %v3513, %v3510
    %s3516 = scalar_lea.vmem [#allocation1], 392
    %s3517 = smov 192
    %v3518 = vld [vmem:[%s3516] ss:$16 sm:%s3517]
    %vm3519 = vcmask 1047558
    %v3520 = vsel %vm3519, %v3518, %v3515
    %3521 = vrot.lane.b32.xlu0 %v3520, 64
    %v3522 = vpop.permute.xlu0 %3521
    %vm3523 = vcmask 589312
    %s3524 = scalar_lea.vmem [#allocation0], 24
    %3525 = vst.msk [vmem:[%s3524] sm:$0xff] %vm3523, %v3522
    %s3526 = scalar_lea.vmem [#allocation1], 904
    %s3527 = smov 3
    %v3528 = vld [vmem:[%s3526] ss:$16 sm:%s3527]
    %s3529 = scalar_lea.vmem [#allocation1], 904
    %s3530 = smov 12
    %v3531 = vld [vmem:[%s3529] ss:$16 sm:%s3530]
    %vm3532 = vcmask 1043458
    %v3533 = vsel %vm3532, %v3531, %v3528
    %s3534 = scalar_lea.vmem [#allocation1], 904
    %s3535 = smov 48
    %v3536 = vld [vmem:[%s3534] ss:$16 sm:%s3535]
    %vm3537 = vcmask 1045508
    %v3538 = vsel %vm3537, %v3536, %v3533
    %s3539 = scalar_lea.vmem [#allocation1], 904
    %s3540 = smov 192
    %v3541 = vld [vmem:[%s3539] ss:$16 sm:%s3540]
    %vm3542 = vcmask 1047558
    %v3543 = vsel %vm3542, %v3541, %v3538
    %3544 = vrot.lane.b32.xlu0 %v3543, 64
    %v3545 = vpop.permute.xlu0 %3544
    %vm3546 = vcmask 589312
    %s3547 = scalar_lea.vmem [#allocation0], 56
    %3548 = vst.msk [vmem:[%s3547] sm:$0xff] %vm3546, %v3545
    %s3549 = scalar_lea.vmem [#allocation1], 7
    %s3550 = smov 3
    %v3551 = vld [vmem:[%s3549] ss:$16 sm:%s3550]
    %s3552 = scalar_lea.vmem [#allocation1], 7
    %s3553 = smov 12
    %v3554 = vld [vmem:[%s3552] ss:$16 sm:%s3553]
    %vm3555 = vcmask 1043458
    %v3556 = vsel %vm3555, %v3554, %v3551
    %s3557 = scalar_lea.vmem [#allocation1], 7
    %s3558 = smov 48
    %v3559 = vld [vmem:[%s3557] ss:$16 sm:%s3558]
    %vm3560 = vcmask 1045508
    %v3561 = vsel %vm3560, %v3559, %v3556
    %s3562 = scalar_lea.vmem [#allocation1], 7
    %s3563 = smov 192
    %v3564 = vld [vmem:[%s3562] ss:$16 sm:%s3563]
    %vm3565 = vcmask 1047558
    %v3566 = vsel %vm3565, %v3564, %v3561
    %3567 = vrot.lane.b32.xlu0 %v3566, 56
    %v3568 = vpop.permute.xlu0 %3567
    %vm3569 = vcmask 523712
    %3570 = vst.msk [vmem:[#allocation0] sm:$0xff] %vm3569, %v3568
    %s3571 = scalar_lea.vmem [#allocation1], 519
    %s3572 = smov 3
    %v3573 = vld [vmem:[%s3571] ss:$16 sm:%s3572]
    %s3574 = scalar_lea.vmem [#allocation1], 519
    %s3575 = smov 12
    %v3576 = vld [vmem:[%s3574] ss:$16 sm:%s3575]
    %vm3577 = vcmask 1043458
    %v3578 = vsel %vm3577, %v3576, %v3573
    %s3579 = scalar_lea.vmem [#allocation1], 519
    %s3580 = smov 48
    %v3581 = vld [vmem:[%s3579] ss:$16 sm:%s3580]
    %vm3582 = vcmask 1045508
    %v3583 = vsel %vm3582, %v3581, %v3578
    %s3584 = scalar_lea.vmem [#allocation1], 519
    %s3585 = smov 192
    %v3586 = vld [vmem:[%s3584] ss:$16 sm:%s3585]
    %vm3587 = vcmask 1047558
    %v3588 = vsel %vm3587, %v3586, %v3583
    %3589 = vrot.lane.b32.xlu0 %v3588, 56
    %v3590 = vpop.permute.xlu0 %3589
    %vm3591 = vcmask 523712
    %s3592 = scalar_lea.vmem [#allocation0], 32
    %3593 = vst.msk [vmem:[%s3592] sm:$0xff] %vm3591, %v3590
    %s3594 = scalar_lea.vmem [#allocation1], 135
    %s3595 = smov 3
    %v3596 = vld [vmem:[%s3594] ss:$16 sm:%s3595]
    %s3597 = scalar_lea.vmem [#allocation1], 135
    %s3598 = smov 12
    %v3599 = vld [vmem:[%s3597] ss:$16 sm:%s3598]
    %vm3600 = vcmask 1043458
    %v3601 = vsel %vm3600, %v3599, %v3596
    %s3602 = scalar_lea.vmem [#allocation1], 135
    %s3603 = smov 48
    %v3604 = vld [vmem:[%s3602] ss:$16 sm:%s3603]
    %vm3605 = vcmask 1045508
    %v3606 = vsel %vm3605, %v3604, %v3601
    %s3607 = scalar_lea.vmem [#allocation1], 135
    %s3608 = smov 192
    %v3609 = vld [vmem:[%s3607] ss:$16 sm:%s3608]
    %vm3610 = vcmask 1047558
    %v3611 = vsel %vm3610, %v3609, %v3606
    %3612 = vrot.lane.b32.xlu0 %v3611, 56
    %v3613 = vpop.permute.xlu0 %3612
    %vm3614 = vcmask 523712
    %s3615 = scalar_lea.vmem [#allocation0], 8
    %3616 = vst.msk [vmem:[%s3615] sm:$0xff] %vm3614, %v3613
    %s3617 = scalar_lea.vmem [#allocation1], 647
    %s3618 = smov 3
    %v3619 = vld [vmem:[%s3617] ss:$16 sm:%s3618]
    %s3620 = scalar_lea.vmem [#allocation1], 647
    %s3621 = smov 12
    %v3622 = vld [vmem:[%s3620] ss:$16 sm:%s3621]
    %vm3623 = vcmask 1043458
    %v3624 = vsel %vm3623, %v3622, %v3619
    %s3625 = scalar_lea.vmem [#allocation1], 647
    %s3626 = smov 48
    %v3627 = vld [vmem:[%s3625] ss:$16 sm:%s3626]
    %vm3628 = vcmask 1045508
    %v3629 = vsel %vm3628, %v3627, %v3624
    %s3630 = scalar_lea.vmem [#allocation1], 647
    %s3631 = smov 192
    %v3632 = vld [vmem:[%s3630] ss:$16 sm:%s3631]
    %vm3633 = vcmask 1047558
    %v3634 = vsel %vm3633, %v3632, %v3629
    %3635 = vrot.lane.b32.xlu0 %v3634, 56
    %v3636 = vpop.permute.xlu0 %3635
    %vm3637 = vcmask 523712
    %s3638 = scalar_lea.vmem [#allocation0], 40
    %3639 = vst.msk [vmem:[%s3638] sm:$0xff] %vm3637, %v3636
    %s3640 = scalar_lea.vmem [#allocation1], 263
    %s3641 = smov 3
    %v3642 = vld [vmem:[%s3640] ss:$16 sm:%s3641]
    %s3643 = scalar_lea.vmem [#allocation1], 263
    %s3644 = smov 12
    %v3645 = vld [vmem:[%s3643] ss:$16 sm:%s3644]
    %vm3646 = vcmask 1043458
    %v3647 = vsel %vm3646, %v3645, %v3642
    %s3648 = scalar_lea.vmem [#allocation1], 263
    %s3649 = smov 48
    %v3650 = vld [vmem:[%s3648] ss:$16 sm:%s3649]
    %vm3651 = vcmask 1045508
    %v3652 = vsel %vm3651, %v3650, %v3647
    %s3653 = scalar_lea.vmem [#allocation1], 263
    %s3654 = smov 192
    %v3655 = vld [vmem:[%s3653] ss:$16 sm:%s3654]
    %vm3656 = vcmask 1047558
    %v3657 = vsel %vm3656, %v3655, %v3652
    %3658 = vrot.lane.b32.xlu0 %v3657, 56
    %v3659 = vpop.permute.xlu0 %3658
    %vm3660 = vcmask 523712
    %s3661 = scalar_lea.vmem [#allocation0], 16
    %3662 = vst.msk [vmem:[%s3661] sm:$0xff] %vm3660, %v3659
    %s3663 = scalar_lea.vmem [#allocation1], 775
    %s3664 = smov 3
    %v3665 = vld [vmem:[%s3663] ss:$16 sm:%s3664]
    %s3666 = scalar_lea.vmem [#allocation1], 775
    %s3667 = smov 12
    %v3668 = vld [vmem:[%s3666] ss:$16 sm:%s3667]
    %vm3669 = vcmask 1043458
    %v3670 = vsel %vm3669, %v3668, %v3665
    %s3671 = scalar_lea.vmem [#allocation1], 775
    %s3672 = smov 48
    %v3673 = vld [vmem:[%s3671] ss:$16 sm:%s3672]
    %vm3674 = vcmask 1045508
    %v3675 = vsel %vm3674, %v3673, %v3670
    %s3676 = scalar_lea.vmem [#allocation1], 775
    %s3677 = smov 192
    %v3678 = vld [vmem:[%s3676] ss:$16 sm:%s3677]
    %vm3679 = vcmask 1047558
    %v3680 = vsel %vm3679, %v3678, %v3675
    %3681 = vrot.lane.b32.xlu0 %v3680, 56
    %v3682 = vpop.permute.xlu0 %3681
    %vm3683 = vcmask 523712
    %s3684 = scalar_lea.vmem [#allocation0], 48
    %3685 = vst.msk [vmem:[%s3684] sm:$0xff] %vm3683, %v3682
    %s3686 = scalar_lea.vmem [#allocation1], 391
    %s3687 = smov 3
    %v3688 = vld [vmem:[%s3686] ss:$16 sm:%s3687]
    %s3689 = scalar_lea.vmem [#allocation1], 391
    %s3690 = smov 12
    %v3691 = vld [vmem:[%s3689] ss:$16 sm:%s3690]
    %vm3692 = vcmask 1043458
    %v3693 = vsel %vm3692, %v3691, %v3688
    %s3694 = scalar_lea.vmem [#allocation1], 391
    %s3695 = smov 48
    %v3696 = vld [vmem:[%s3694] ss:$16 sm:%s3695]
    %vm3697 = vcmask 1045508
    %v3698 = vsel %vm3697, %v3696, %v3693
    %s3699 = scalar_lea.vmem [#allocation1], 391
    %s3700 = smov 192
    %v3701 = vld [vmem:[%s3699] ss:$16 sm:%s3700]
    %vm3702 = vcmask 1047558
    %v3703 = vsel %vm3702, %v3701, %v3698
    %3704 = vrot.lane.b32.xlu0 %v3703, 56
    %v3705 = vpop.permute.xlu0 %3704
    %vm3706 = vcmask 523712
    %s3707 = scalar_lea.vmem [#allocation0], 24
    %3708 = vst.msk [vmem:[%s3707] sm:$0xff] %vm3706, %v3705
    %s3709 = scalar_lea.vmem [#allocation1], 903
    %s3710 = smov 3
    %v3711 = vld [vmem:[%s3709] ss:$16 sm:%s3710]
    %s3712 = scalar_lea.vmem [#allocation1], 903
    %s3713 = smov 12
    %v3714 = vld [vmem:[%s3712] ss:$16 sm:%s3713]
    %vm3715 = vcmask 1043458
    %v3716 = vsel %vm3715, %v3714, %v3711
    %s3717 = scalar_lea.vmem [#allocation1], 903
    %s3718 = smov 48
    %v3719 = vld [vmem:[%s3717] ss:$16 sm:%s3718]
    %vm3720 = vcmask 1045508
    %v3721 = vsel %vm3720, %v3719, %v3716
    %s3722 = scalar_lea.vmem [#allocation1], 903
    %s3723 = smov 192
    %v3724 = vld [vmem:[%s3722] ss:$16 sm:%s3723]
    %vm3725 = vcmask 1047558
    %v3726 = vsel %vm3725, %v3724, %v3721
    %3727 = vrot.lane.b32.xlu0 %v3726, 56
    %v3728 = vpop.permute.xlu0 %3727
    %vm3729 = vcmask 523712
    %s3730 = scalar_lea.vmem [#allocation0], 56
    %3731 = vst.msk [vmem:[%s3730] sm:$0xff] %vm3729, %v3728
    %s3732 = scalar_lea.vmem [#allocation1], 6
    %s3733 = smov 3
    %v3734 = vld [vmem:[%s3732] ss:$16 sm:%s3733]
    %s3735 = scalar_lea.vmem [#allocation1], 6
    %s3736 = smov 12
    %v3737 = vld [vmem:[%s3735] ss:$16 sm:%s3736]
    %vm3738 = vcmask 1043458
    %v3739 = vsel %vm3738, %v3737, %v3734
    %s3740 = scalar_lea.vmem [#allocation1], 6
    %s3741 = smov 48
    %v3742 = vld [vmem:[%s3740] ss:$16 sm:%s3741]
    %vm3743 = vcmask 1045508
    %v3744 = vsel %vm3743, %v3742, %v3739
    %s3745 = scalar_lea.vmem [#allocation1], 6
    %s3746 = smov 192
    %v3747 = vld [vmem:[%s3745] ss:$16 sm:%s3746]
    %vm3748 = vcmask 1047558
    %v3749 = vsel %vm3748, %v3747, %v3744
    %3750 = vrot.lane.b32.xlu0 %v3749, 48
    %v3751 = vpop.permute.xlu0 %3750
    %vm3752 = vcmask 458112
    %3753 = vst.msk [vmem:[#allocation0] sm:$0xff] %vm3752, %v3751
    %s3754 = scalar_lea.vmem [#allocation1], 518
    %s3755 = smov 3
    %v3756 = vld [vmem:[%s3754] ss:$16 sm:%s3755]
    %s3757 = scalar_lea.vmem [#allocation1], 518
    %s3758 = smov 12
    %v3759 = vld [vmem:[%s3757] ss:$16 sm:%s3758]
    %vm3760 = vcmask 1043458
    %v3761 = vsel %vm3760, %v3759, %v3756
    %s3762 = scalar_lea.vmem [#allocation1], 518
    %s3763 = smov 48
    %v3764 = vld [vmem:[%s3762] ss:$16 sm:%s3763]
    %vm3765 = vcmask 1045508
    %v3766 = vsel %vm3765, %v3764, %v3761
    %s3767 = scalar_lea.vmem [#allocation1], 518
    %s3768 = smov 192
    %v3769 = vld [vmem:[%s3767] ss:$16 sm:%s3768]
    %vm3770 = vcmask 1047558
    %v3771 = vsel %vm3770, %v3769, %v3766
    %3772 = vrot.lane.b32.xlu0 %v3771, 48
    %v3773 = vpop.permute.xlu0 %3772
    %vm3774 = vcmask 458112
    %s3775 = scalar_lea.vmem [#allocation0], 32
    %3776 = vst.msk [vmem:[%s3775] sm:$0xff] %vm3774, %v3773
    %s3777 = scalar_lea.vmem [#allocation1], 134
    %s3778 = smov 3
    %v3779 = vld [vmem:[%s3777] ss:$16 sm:%s3778]
    %s3780 = scalar_lea.vmem [#allocation1], 134
    %s3781 = smov 12
    %v3782 = vld [vmem:[%s3780] ss:$16 sm:%s3781]
    %vm3783 = vcmask 1043458
    %v3784 = vsel %vm3783, %v3782, %v3779
    %s3785 = scalar_lea.vmem [#allocation1], 134
    %s3786 = smov 48
    %v3787 = vld [vmem:[%s3785] ss:$16 sm:%s3786]
    %vm3788 = vcmask 1045508
    %v3789 = vsel %vm3788, %v3787, %v3784
    %s3790 = scalar_lea.vmem [#allocation1], 134
    %s3791 = smov 192
    %v3792 = vld [vmem:[%s3790] ss:$16 sm:%s3791]
    %vm3793 = vcmask 1047558
    %v3794 = vsel %vm3793, %v3792, %v3789
    %3795 = vrot.lane.b32.xlu0 %v3794, 48
    %v3796 = vpop.permute.xlu0 %3795
    %vm3797 = vcmask 458112
    %s3798 = scalar_lea.vmem [#allocation0], 8
    %3799 = vst.msk [vmem:[%s3798] sm:$0xff] %vm3797, %v3796
    %s3800 = scalar_lea.vmem [#allocation1], 646
    %s3801 = smov 3
    %v3802 = vld [vmem:[%s3800] ss:$16 sm:%s3801]
    %s3803 = scalar_lea.vmem [#allocation1], 646
    %s3804 = smov 12
    %v3805 = vld [vmem:[%s3803] ss:$16 sm:%s3804]
    %vm3806 = vcmask 1043458
    %v3807 = vsel %vm3806, %v3805, %v3802
    %s3808 = scalar_lea.vmem [#allocation1], 646
    %s3809 = smov 48
    %v3810 = vld [vmem:[%s3808] ss:$16 sm:%s3809]
    %vm3811 = vcmask 1045508
    %v3812 = vsel %vm3811, %v3810, %v3807
    %s3813 = scalar_lea.vmem [#allocation1], 646
    %s3814 = smov 192
    %v3815 = vld [vmem:[%s3813] ss:$16 sm:%s3814]
    %vm3816 = vcmask 1047558
    %v3817 = vsel %vm3816, %v3815, %v3812
    %3818 = vrot.lane.b32.xlu0 %v3817, 48
    %v3819 = vpop.permute.xlu0 %3818
    %vm3820 = vcmask 458112
    %s3821 = scalar_lea.vmem [#allocation0], 40
    %3822 = vst.msk [vmem:[%s3821] sm:$0xff] %vm3820, %v3819
    %s3823 = scalar_lea.vmem [#allocation1], 262
    %s3824 = smov 3
    %v3825 = vld [vmem:[%s3823] ss:$16 sm:%s3824]
    %s3826 = scalar_lea.vmem [#allocation1], 262
    %s3827 = smov 12
    %v3828 = vld [vmem:[%s3826] ss:$16 sm:%s3827]
    %vm3829 = vcmask 1043458
    %v3830 = vsel %vm3829, %v3828, %v3825
    %s3831 = scalar_lea.vmem [#allocation1], 262
    %s3832 = smov 48
    %v3833 = vld [vmem:[%s3831] ss:$16 sm:%s3832]
    %vm3834 = vcmask 1045508
    %v3835 = vsel %vm3834, %v3833, %v3830
    %s3836 = scalar_lea.vmem [#allocation1], 262
    %s3837 = smov 192
    %v3838 = vld [vmem:[%s3836] ss:$16 sm:%s3837]
    %vm3839 = vcmask 1047558
    %v3840 = vsel %vm3839, %v3838, %v3835
    %3841 = vrot.lane.b32.xlu0 %v3840, 48
    %v3842 = vpop.permute.xlu0 %3841
    %vm3843 = vcmask 458112
    %s3844 = scalar_lea.vmem [#allocation0], 16
    %3845 = vst.msk [vmem:[%s3844] sm:$0xff] %vm3843, %v3842
    %s3846 = scalar_lea.vmem [#allocation1], 774
    %s3847 = smov 3
    %v3848 = vld [vmem:[%s3846] ss:$16 sm:%s3847]
    %s3849 = scalar_lea.vmem [#allocation1], 774
    %s3850 = smov 12
    %v3851 = vld [vmem:[%s3849] ss:$16 sm:%s3850]
    %vm3852 = vcmask 1043458
    %v3853 = vsel %vm3852, %v3851, %v3848
    %s3854 = scalar_lea.vmem [#allocation1], 774
    %s3855 = smov 48
    %v3856 = vld [vmem:[%s3854] ss:$16 sm:%s3855]
    %vm3857 = vcmask 1045508
    %v3858 = vsel %vm3857, %v3856, %v3853
    %s3859 = scalar_lea.vmem [#allocation1], 774
    %s3860 = smov 192
    %v3861 = vld [vmem:[%s3859] ss:$16 sm:%s3860]
    %vm3862 = vcmask 1047558
    %v3863 = vsel %vm3862, %v3861, %v3858
    %3864 = vrot.lane.b32.xlu0 %v3863, 48
    %v3865 = vpop.permute.xlu0 %3864
    %vm3866 = vcmask 458112
    %s3867 = scalar_lea.vmem [#allocation0], 48
    %3868 = vst.msk [vmem:[%s3867] sm:$0xff] %vm3866, %v3865
    %s3869 = scalar_lea.vmem [#allocation1], 390
    %s3870 = smov 3
    %v3871 = vld [vmem:[%s3869] ss:$16 sm:%s3870]
    %s3872 = scalar_lea.vmem [#allocation1], 390
    %s3873 = smov 12
    %v3874 = vld [vmem:[%s3872] ss:$16 sm:%s3873]
    %vm3875 = vcmask 1043458
    %v3876 = vsel %vm3875, %v3874, %v3871
    %s3877 = scalar_lea.vmem [#allocation1], 390
    %s3878 = smov 48
    %v3879 = vld [vmem:[%s3877] ss:$16 sm:%s3878]
    %vm3880 = vcmask 1045508
    %v3881 = vsel %vm3880, %v3879, %v3876
    %s3882 = scalar_lea.vmem [#allocation1], 390
    %s3883 = smov 192
    %v3884 = vld [vmem:[%s3882] ss:$16 sm:%s3883]
    %vm3885 = vcmask 1047558
    %v3886 = vsel %vm3885, %v3884, %v3881
    %3887 = vrot.lane.b32.xlu0 %v3886, 48
    %v3888 = vpop.permute.xlu0 %3887
    %vm3889 = vcmask 458112
    %s3890 = scalar_lea.vmem [#allocation0], 24
    %3891 = vst.msk [vmem:[%s3890] sm:$0xff] %vm3889, %v3888
    %s3892 = scalar_lea.vmem [#allocation1], 902
    %s3893 = smov 3
    %v3894 = vld [vmem:[%s3892] ss:$16 sm:%s3893]
    %s3895 = scalar_lea.vmem [#allocation1], 902
    %s3896 = smov 12
    %v3897 = vld [vmem:[%s3895] ss:$16 sm:%s3896]
    %vm3898 = vcmask 1043458
    %v3899 = vsel %vm3898, %v3897, %v3894
    %s3900 = scalar_lea.vmem [#allocation1], 902
    %s3901 = smov 48
    %v3902 = vld [vmem:[%s3900] ss:$16 sm:%s3901]
    %vm3903 = vcmask 1045508
    %v3904 = vsel %vm3903, %v3902, %v3899
    %s3905 = scalar_lea.vmem [#allocation1], 902
    %s3906 = smov 192
    %v3907 = vld [vmem:[%s3905] ss:$16 sm:%s3906]
    %vm3908 = vcmask 1047558
    %v3909 = vsel %vm3908, %v3907, %v3904
    %3910 = vrot.lane.b32.xlu0 %v3909, 48
    %v3911 = vpop.permute.xlu0 %3910
    %vm3912 = vcmask 458112
    %s3913 = scalar_lea.vmem [#allocation0], 56
    %3914 = vst.msk [vmem:[%s3913] sm:$0xff] %vm3912, %v3911
    %s3915 = scalar_lea.vmem [#allocation1], 5
    %s3916 = smov 3
    %v3917 = vld [vmem:[%s3915] ss:$16 sm:%s3916]
    %s3918 = scalar_lea.vmem [#allocation1], 5
    %s3919 = smov 12
    %v3920 = vld [vmem:[%s3918] ss:$16 sm:%s3919]
    %vm3921 = vcmask 1043458
    %v3922 = vsel %vm3921, %v3920, %v3917
    %s3923 = scalar_lea.vmem [#allocation1], 5
    %s3924 = smov 48
    %v3925 = vld [vmem:[%s3923] ss:$16 sm:%s3924]
    %vm3926 = vcmask 1045508
    %v3927 = vsel %vm3926, %v3925, %v3922
    %s3928 = scalar_lea.vmem [#allocation1], 5
    %s3929 = smov 192
    %v3930 = vld [vmem:[%s3928] ss:$16 sm:%s3929]
    %vm3931 = vcmask 1047558
    %v3932 = vsel %vm3931, %v3930, %v3927
    %3933 = vrot.lane.b32.xlu0 %v3932, 40
    %v3934 = vpop.permute.xlu0 %3933
    %vm3935 = vcmask 392512
    %3936 = vst.msk [vmem:[#allocation0] sm:$0xff] %vm3935, %v3934
    %s3937 = scalar_lea.vmem [#allocation1], 517
    %s3938 = smov 3
    %v3939 = vld [vmem:[%s3937] ss:$16 sm:%s3938]
    %s3940 = scalar_lea.vmem [#allocation1], 517
    %s3941 = smov 12
    %v3942 = vld [vmem:[%s3940] ss:$16 sm:%s3941]
    %vm3943 = vcmask 1043458
    %v3944 = vsel %vm3943, %v3942, %v3939
    %s3945 = scalar_lea.vmem [#allocation1], 517
    %s3946 = smov 48
    %v3947 = vld [vmem:[%s3945] ss:$16 sm:%s3946]
    %vm3948 = vcmask 1045508
    %v3949 = vsel %vm3948, %v3947, %v3944
    %s3950 = scalar_lea.vmem [#allocation1], 517
    %s3951 = smov 192
    %v3952 = vld [vmem:[%s3950] ss:$16 sm:%s3951]
    %vm3953 = vcmask 1047558
    %v3954 = vsel %vm3953, %v3952, %v3949
    %3955 = vrot.lane.b32.xlu0 %v3954, 40
    %v3956 = vpop.permute.xlu0 %3955
    %vm3957 = vcmask 392512
    %s3958 = scalar_lea.vmem [#allocation0], 32
    %3959 = vst.msk [vmem:[%s3958] sm:$0xff] %vm3957, %v3956
    %s3960 = scalar_lea.vmem [#allocation1], 133
    %s3961 = smov 3
    %v3962 = vld [vmem:[%s3960] ss:$16 sm:%s3961]
    %s3963 = scalar_lea.vmem [#allocation1], 133
    %s3964 = smov 12
    %v3965 = vld [vmem:[%s3963] ss:$16 sm:%s3964]
    %vm3966 = vcmask 1043458
    %v3967 = vsel %vm3966, %v3965, %v3962
    %s3968 = scalar_lea.vmem [#allocation1], 133
    %s3969 = smov 48
    %v3970 = vld [vmem:[%s3968] ss:$16 sm:%s3969]
    %vm3971 = vcmask 1045508
    %v3972 = vsel %vm3971, %v3970, %v3967
    %s3973 = scalar_lea.vmem [#allocation1], 133
    %s3974 = smov 192
    %v3975 = vld [vmem:[%s3973] ss:$16 sm:%s3974]
    %vm3976 = vcmask 1047558
    %v3977 = vsel %vm3976, %v3975, %v3972
    %3978 = vrot.lane.b32.xlu0 %v3977, 40
    %v3979 = vpop.permute.xlu0 %3978
    %vm3980 = vcmask 392512
    %s3981 = scalar_lea.vmem [#allocation0], 8
    %3982 = vst.msk [vmem:[%s3981] sm:$0xff] %vm3980, %v3979
    %s3983 = scalar_lea.vmem [#allocation1], 645
    %s3984 = smov 3
    %v3985 = vld [vmem:[%s3983] ss:$16 sm:%s3984]
    %s3986 = scalar_lea.vmem [#allocation1], 645
    %s3987 = smov 12
    %v3988 = vld [vmem:[%s3986] ss:$16 sm:%s3987]
    %vm3989 = vcmask 1043458
    %v3990 = vsel %vm3989, %v3988, %v3985
    %s3991 = scalar_lea.vmem [#allocation1], 645
    %s3992 = smov 48
    %v3993 = vld [vmem:[%s3991] ss:$16 sm:%s3992]
    %vm3994 = vcmask 1045508
    %v3995 = vsel %vm3994, %v3993, %v3990
    %s3996 = scalar_lea.vmem [#allocation1], 645
    %s3997 = smov 192
    %v3998 = vld [vmem:[%s3996] ss:$16 sm:%s3997]
    %vm3999 = vcmask 1047558
    %v4000 = vsel %vm3999, %v3998, %v3995
    %4001 = vrot.lane.b32.xlu0 %v4000, 40
    %v4002 = vpop.permute.xlu0 %4001
    %vm4003 = vcmask 392512
    %s4004 = scalar_lea.vmem [#allocation0], 40
    %4005 = vst.msk [vmem:[%s4004] sm:$0xff] %vm4003, %v4002
    %s4006 = scalar_lea.vmem [#allocation1], 261
    %s4007 = smov 3
    %v4008 = vld [vmem:[%s4006] ss:$16 sm:%s4007]
    %s4009 = scalar_lea.vmem [#allocation1], 261
    %s4010 = smov 12
    %v4011 = vld [vmem:[%s4009] ss:$16 sm:%s4010]
    %vm4012 = vcmask 1043458
    %v4013 = vsel %vm4012, %v4011, %v4008
    %s4014 = scalar_lea.vmem [#allocation1], 261
    %s4015 = smov 48
    %v4016 = vld [vmem:[%s4014] ss:$16 sm:%s4015]
    %vm4017 = vcmask 1045508
    %v4018 = vsel %vm4017, %v4016, %v4013
    %s4019 = scalar_lea.vmem [#allocation1], 261
    %s4020 = smov 192
    %v4021 = vld [vmem:[%s4019] ss:$16 sm:%s4020]
    %vm4022 = vcmask 1047558
    %v4023 = vsel %vm4022, %v4021, %v4018
    %4024 = vrot.lane.b32.xlu0 %v4023, 40
    %v4025 = vpop.permute.xlu0 %4024
    %vm4026 = vcmask 392512
    %s4027 = scalar_lea.vmem [#allocation0], 16
    %4028 = vst.msk [vmem:[%s4027] sm:$0xff] %vm4026, %v4025
    %s4029 = scalar_lea.vmem [#allocation1], 773
    %s4030 = smov 3
    %v4031 = vld [vmem:[%s4029] ss:$16 sm:%s4030]
    %s4032 = scalar_lea.vmem [#allocation1], 773
    %s4033 = smov 12
    %v4034 = vld [vmem:[%s4032] ss:$16 sm:%s4033]
    %vm4035 = vcmask 1043458
    %v4036 = vsel %vm4035, %v4034, %v4031
    %s4037 = scalar_lea.vmem [#allocation1], 773
    %s4038 = smov 48
    %v4039 = vld [vmem:[%s4037] ss:$16 sm:%s4038]
    %vm4040 = vcmask 1045508
    %v4041 = vsel %vm4040, %v4039, %v4036
    %s4042 = scalar_lea.vmem [#allocation1], 773
    %s4043 = smov 192
    %v4044 = vld [vmem:[%s4042] ss:$16 sm:%s4043]
    %vm4045 = vcmask 1047558
    %v4046 = vsel %vm4045, %v4044, %v4041
    %4047 = vrot.lane.b32.xlu0 %v4046, 40
    %v4048 = vpop.permute.xlu0 %4047
    %vm4049 = vcmask 392512
    %s4050 = scalar_lea.vmem [#allocation0], 48
    %4051 = vst.msk [vmem:[%s4050] sm:$0xff] %vm4049, %v4048
    %s4052 = scalar_lea.vmem [#allocation1], 389
    %s4053 = smov 3
    %v4054 = vld [vmem:[%s4052] ss:$16 sm:%s4053]
    %s4055 = scalar_lea.vmem [#allocation1], 389
    %s4056 = smov 12
    %v4057 = vld [vmem:[%s4055] ss:$16 sm:%s4056]
    %vm4058 = vcmask 1043458
    %v4059 = vsel %vm4058, %v4057, %v4054
    %s4060 = scalar_lea.vmem [#allocation1], 389
    %s4061 = smov 48
    %v4062 = vld [vmem:[%s4060] ss:$16 sm:%s4061]
    %vm4063 = vcmask 1045508
    %v4064 = vsel %vm4063, %v4062, %v4059
    %s4065 = scalar_lea.vmem [#allocation1], 389
    %s4066 = smov 192
    %v4067 = vld [vmem:[%s4065] ss:$16 sm:%s4066]
    %vm4068 = vcmask 1047558
    %v4069 = vsel %vm4068, %v4067, %v4064
    %4070 = vrot.lane.b32.xlu0 %v4069, 40
    %v4071 = vpop.permute.xlu0 %4070
    %vm4072 = vcmask 392512
    %s4073 = scalar_lea.vmem [#allocation0], 24
    %4074 = vst.msk [vmem:[%s4073] sm:$0xff] %vm4072, %v4071
    %s4075 = scalar_lea.vmem [#allocation1], 901
    %s4076 = smov 3
    %v4077 = vld [vmem:[%s4075] ss:$16 sm:%s4076]
    %s4078 = scalar_lea.vmem [#allocation1], 901
    %s4079 = smov 12
    %v4080 = vld [vmem:[%s4078] ss:$16 sm:%s4079]
    %vm4081 = vcmask 1043458
    %v4082 = vsel %vm4081, %v4080, %v4077
    %s4083 = scalar_lea.vmem [#allocation1], 901
    %s4084 = smov 48
    %v4085 = vld [vmem:[%s4083] ss:$16 sm:%s4084]
    %vm4086 = vcmask 1045508
    %v4087 = vsel %vm4086, %v4085, %v4082
    %s4088 = scalar_lea.vmem [#allocation1], 901
    %s4089 = smov 192
    %v4090 = vld [vmem:[%s4088] ss:$16 sm:%s4089]
    %vm4091 = vcmask 1047558
    %v4092 = vsel %vm4091, %v4090, %v4087
    %4093 = vrot.lane.b32.xlu0 %v4092, 40
    %v4094 = vpop.permute.xlu0 %4093
    %vm4095 = vcmask 392512
    %s4096 = scalar_lea.vmem [#allocation0], 56
    %4097 = vst.msk [vmem:[%s4096] sm:$0xff] %vm4095, %v4094
    %s4098 = scalar_lea.vmem [#allocation1], 4
    %s4099 = smov 3
    %v4100 = vld [vmem:[%s4098] ss:$16 sm:%s4099]
    %s4101 = scalar_lea.vmem [#allocation1], 4
    %s4102 = smov 12
    %v4103 = vld [vmem:[%s4101] ss:$16 sm:%s4102]
    %vm4104 = vcmask 1043458
    %v4105 = vsel %vm4104, %v4103, %v4100
    %s4106 = scalar_lea.vmem [#allocation1], 4
    %s4107 = smov 48
    %v4108 = vld [vmem:[%s4106] ss:$16 sm:%s4107]
    %vm4109 = vcmask 1045508
    %v4110 = vsel %vm4109, %v4108, %v4105
    %s4111 = scalar_lea.vmem [#allocation1], 4
    %s4112 = smov 192
    %v4113 = vld [vmem:[%s4111] ss:$16 sm:%s4112]
    %vm4114 = vcmask 1047558
    %v4115 = vsel %vm4114, %v4113, %v4110
    %4116 = vrot.lane.b32.xlu0 %v4115, 32
    %v4117 = vpop.permute.xlu0 %4116
    %vm4118 = vcmask 326912
    %4119 = vst.msk [vmem:[#allocation0] sm:$0xff] %vm4118, %v4117
    %s4120 = scalar_lea.vmem [#allocation1], 516
    %s4121 = smov 3
    %v4122 = vld [vmem:[%s4120] ss:$16 sm:%s4121]
    %s4123 = scalar_lea.vmem [#allocation1], 516
    %s4124 = smov 12
    %v4125 = vld [vmem:[%s4123] ss:$16 sm:%s4124]
    %vm4126 = vcmask 1043458
    %v4127 = vsel %vm4126, %v4125, %v4122
    %s4128 = scalar_lea.vmem [#allocation1], 516
    %s4129 = smov 48
    %v4130 = vld [vmem:[%s4128] ss:$16 sm:%s4129]
    %vm4131 = vcmask 1045508
    %v4132 = vsel %vm4131, %v4130, %v4127
    %s4133 = scalar_lea.vmem [#allocation1], 516
    %s4134 = smov 192
    %v4135 = vld [vmem:[%s4133] ss:$16 sm:%s4134]
    %vm4136 = vcmask 1047558
    %v4137 = vsel %vm4136, %v4135, %v4132
    %4138 = vrot.lane.b32.xlu0 %v4137, 32
    %v4139 = vpop.permute.xlu0 %4138
    %vm4140 = vcmask 326912
    %s4141 = scalar_lea.vmem [#allocation0], 32
    %4142 = vst.msk [vmem:[%s4141] sm:$0xff] %vm4140, %v4139
    %s4143 = scalar_lea.vmem [#allocation1], 132
    %s4144 = smov 3
    %v4145 = vld [vmem:[%s4143] ss:$16 sm:%s4144]
    %s4146 = scalar_lea.vmem [#allocation1], 132
    %s4147 = smov 12
    %v4148 = vld [vmem:[%s4146] ss:$16 sm:%s4147]
    %vm4149 = vcmask 1043458
    %v4150 = vsel %vm4149, %v4148, %v4145
    %s4151 = scalar_lea.vmem [#allocation1], 132
    %s4152 = smov 48
    %v4153 = vld [vmem:[%s4151] ss:$16 sm:%s4152]
    %vm4154 = vcmask 1045508
    %v4155 = vsel %vm4154, %v4153, %v4150
    %s4156 = scalar_lea.vmem [#allocation1], 132
    %s4157 = smov 192
    %v4158 = vld [vmem:[%s4156] ss:$16 sm:%s4157]
    %vm4159 = vcmask 1047558
    %v4160 = vsel %vm4159, %v4158, %v4155
    %4161 = vrot.lane.b32.xlu0 %v4160, 32
    %v4162 = vpop.permute.xlu0 %4161
    %vm4163 = vcmask 326912
    %s4164 = scalar_lea.vmem [#allocation0], 8
    %4165 = vst.msk [vmem:[%s4164] sm:$0xff] %vm4163, %v4162
    %s4166 = scalar_lea.vmem [#allocation1], 644
    %s4167 = smov 3
    %v4168 = vld [vmem:[%s4166] ss:$16 sm:%s4167]
    %s4169 = scalar_lea.vmem [#allocation1], 644
    %s4170 = smov 12
    %v4171 = vld [vmem:[%s4169] ss:$16 sm:%s4170]
    %vm4172 = vcmask 1043458
    %v4173 = vsel %vm4172, %v4171, %v4168
    %s4174 = scalar_lea.vmem [#allocation1], 644
    %s4175 = smov 48
    %v4176 = vld [vmem:[%s4174] ss:$16 sm:%s4175]
    %vm4177 = vcmask 1045508
    %v4178 = vsel %vm4177, %v4176, %v4173
    %s4179 = scalar_lea.vmem [#allocation1], 644
    %s4180 = smov 192
    %v4181 = vld [vmem:[%s4179] ss:$16 sm:%s4180]
    %vm4182 = vcmask 1047558
    %v4183 = vsel %vm4182, %v4181, %v4178
    %4184 = vrot.lane.b32.xlu0 %v4183, 32
    %v4185 = vpop.permute.xlu0 %4184
    %vm4186 = vcmask 326912
    %s4187 = scalar_lea.vmem [#allocation0], 40
    %4188 = vst.msk [vmem:[%s4187] sm:$0xff] %vm4186, %v4185
    %s4189 = scalar_lea.vmem [#allocation1], 260
    %s4190 = smov 3
    %v4191 = vld [vmem:[%s4189] ss:$16 sm:%s4190]
    %s4192 = scalar_lea.vmem [#allocation1], 260
    %s4193 = smov 12
    %v4194 = vld [vmem:[%s4192] ss:$16 sm:%s4193]
    %vm4195 = vcmask 1043458
    %v4196 = vsel %vm4195, %v4194, %v4191
    %s4197 = scalar_lea.vmem [#allocation1], 260
    %s4198 = smov 48
    %v4199 = vld [vmem:[%s4197] ss:$16 sm:%s4198]
    %vm4200 = vcmask 1045508
    %v4201 = vsel %vm4200, %v4199, %v4196
    %s4202 = scalar_lea.vmem [#allocation1], 260
    %s4203 = smov 192
    %v4204 = vld [vmem:[%s4202] ss:$16 sm:%s4203]
    %vm4205 = vcmask 1047558
    %v4206 = vsel %vm4205, %v4204, %v4201
    %4207 = vrot.lane.b32.xlu0 %v4206, 32
    %v4208 = vpop.permute.xlu0 %4207
    %vm4209 = vcmask 326912
    %s4210 = scalar_lea.vmem [#allocation0], 16
    %4211 = vst.msk [vmem:[%s4210] sm:$0xff] %vm4209, %v4208
    %s4212 = scalar_lea.vmem [#allocation1], 772
    %s4213 = smov 3
    %v4214 = vld [vmem:[%s4212] ss:$16 sm:%s4213]
    %s4215 = scalar_lea.vmem [#allocation1], 772
    %s4216 = smov 12
    %v4217 = vld [vmem:[%s4215] ss:$16 sm:%s4216]
    %vm4218 = vcmask 1043458
    %v4219 = vsel %vm4218, %v4217, %v4214
    %s4220 = scalar_lea.vmem [#allocation1], 772
    %s4221 = smov 48
    %v4222 = vld [vmem:[%s4220] ss:$16 sm:%s4221]
    %vm4223 = vcmask 1045508
    %v4224 = vsel %vm4223, %v4222, %v4219
    %s4225 = scalar_lea.vmem [#allocation1], 772
    %s4226 = smov 192
    %v4227 = vld [vmem:[%s4225] ss:$16 sm:%s4226]
    %vm4228 = vcmask 1047558
    %v4229 = vsel %vm4228, %v4227, %v4224
    %4230 = vrot.lane.b32.xlu0 %v4229, 32
    %v4231 = vpop.permute.xlu0 %4230
    %vm4232 = vcmask 326912
    %s4233 = scalar_lea.vmem [#allocation0], 48
    %4234 = vst.msk [vmem:[%s4233] sm:$0xff] %vm4232, %v4231
    %s4235 = scalar_lea.vmem [#allocation1], 388
    %s4236 = smov 3
    %v4237 = vld [vmem:[%s4235] ss:$16 sm:%s4236]
    %s4238 = scalar_lea.vmem [#allocation1], 388
    %s4239 = smov 12
    %v4240 = vld [vmem:[%s4238] ss:$16 sm:%s4239]
    %vm4241 = vcmask 1043458
    %v4242 = vsel %vm4241, %v4240, %v4237
    %s4243 = scalar_lea.vmem [#allocation1], 388
    %s4244 = smov 48
    %v4245 = vld [vmem:[%s4243] ss:$16 sm:%s4244]
    %vm4246 = vcmask 1045508
    %v4247 = vsel %vm4246, %v4245, %v4242
    %s4248 = scalar_lea.vmem [#allocation1], 388
    %s4249 = smov 192
    %v4250 = vld [vmem:[%s4248] ss:$16 sm:%s4249]
    %vm4251 = vcmask 1047558
    %v4252 = vsel %vm4251, %v4250, %v4247
    %4253 = vrot.lane.b32.xlu0 %v4252, 32
    %v4254 = vpop.permute.xlu0 %4253
    %vm4255 = vcmask 326912
    %s4256 = scalar_lea.vmem [#allocation0], 24
    %4257 = vst.msk [vmem:[%s4256] sm:$0xff] %vm4255, %v4254
    %s4258 = scalar_lea.vmem [#allocation1], 900
    %s4259 = smov 3
    %v4260 = vld [vmem:[%s4258] ss:$16 sm:%s4259]
    %s4261 = scalar_lea.vmem [#allocation1], 900
    %s4262 = smov 12
    %v4263 = vld [vmem:[%s4261] ss:$16 sm:%s4262]
    %vm4264 = vcmask 1043458
    %v4265 = vsel %vm4264, %v4263, %v4260
    %s4266 = scalar_lea.vmem [#allocation1], 900
    %s4267 = smov 48
    %v4268 = vld [vmem:[%s4266] ss:$16 sm:%s4267]
    %vm4269 = vcmask 1045508
    %v4270 = vsel %vm4269, %v4268, %v4265
    %s4271 = scalar_lea.vmem [#allocation1], 900
    %s4272 = smov 192
    %v4273 = vld [vmem:[%s4271] ss:$16 sm:%s4272]
    %vm4274 = vcmask 1047558
    %v4275 = vsel %vm4274, %v4273, %v4270
    %4276 = vrot.lane.b32.xlu0 %v4275, 32
    %v4277 = vpop.permute.xlu0 %4276
    %vm4278 = vcmask 326912
    %s4279 = scalar_lea.vmem [#allocation0], 56
    %4280 = vst.msk [vmem:[%s4279] sm:$0xff] %vm4278, %v4277
    %s4281 = scalar_lea.vmem [#allocation1], 3
    %s4282 = smov 3
    %v4283 = vld [vmem:[%s4281] ss:$16 sm:%s4282]
    %s4284 = scalar_lea.vmem [#allocation1], 3
    %s4285 = smov 12
    %v4286 = vld [vmem:[%s4284] ss:$16 sm:%s4285]
    %vm4287 = vcmask 1043458
    %v4288 = vsel %vm4287, %v4286, %v4283
    %s4289 = scalar_lea.vmem [#allocation1], 3
    %s4290 = smov 48
    %v4291 = vld [vmem:[%s4289] ss:$16 sm:%s4290]
    %vm4292 = vcmask 1045508
    %v4293 = vsel %vm4292, %v4291, %v4288
    %s4294 = scalar_lea.vmem [#allocation1], 3
    %s4295 = smov 192
    %v4296 = vld [vmem:[%s4294] ss:$16 sm:%s4295]
    %vm4297 = vcmask 1047558
    %v4298 = vsel %vm4297, %v4296, %v4293
    %4299 = vrot.lane.b32.xlu0 %v4298, 24
    %v4300 = vpop.permute.xlu0 %4299
    %vm4301 = vcmask 261312
    %4302 = vst.msk [vmem:[#allocation0] sm:$0xff] %vm4301, %v4300
    %s4303 = scalar_lea.vmem [#allocation1], 515
    %s4304 = smov 3
    %v4305 = vld [vmem:[%s4303] ss:$16 sm:%s4304]
    %s4306 = scalar_lea.vmem [#allocation1], 515
    %s4307 = smov 12
    %v4308 = vld [vmem:[%s4306] ss:$16 sm:%s4307]
    %vm4309 = vcmask 1043458
    %v4310 = vsel %vm4309, %v4308, %v4305
    %s4311 = scalar_lea.vmem [#allocation1], 515
    %s4312 = smov 48
    %v4313 = vld [vmem:[%s4311] ss:$16 sm:%s4312]
    %vm4314 = vcmask 1045508
    %v4315 = vsel %vm4314, %v4313, %v4310
    %s4316 = scalar_lea.vmem [#allocation1], 515
    %s4317 = smov 192
    %v4318 = vld [vmem:[%s4316] ss:$16 sm:%s4317]
    %vm4319 = vcmask 1047558
    %v4320 = vsel %vm4319, %v4318, %v4315
    %4321 = vrot.lane.b32.xlu0 %v4320, 24
    %v4322 = vpop.permute.xlu0 %4321
    %vm4323 = vcmask 261312
    %s4324 = scalar_lea.vmem [#allocation0], 32
    %4325 = vst.msk [vmem:[%s4324] sm:$0xff] %vm4323, %v4322
    %s4326 = scalar_lea.vmem [#allocation1], 131
    %s4327 = smov 3
    %v4328 = vld [vmem:[%s4326] ss:$16 sm:%s4327]
    %s4329 = scalar_lea.vmem [#allocation1], 131
    %s4330 = smov 12
    %v4331 = vld [vmem:[%s4329] ss:$16 sm:%s4330]
    %vm4332 = vcmask 1043458
    %v4333 = vsel %vm4332, %v4331, %v4328
    %s4334 = scalar_lea.vmem [#allocation1], 131
    %s4335 = smov 48
    %v4336 = vld [vmem:[%s4334] ss:$16 sm:%s4335]
    %vm4337 = vcmask 1045508
    %v4338 = vsel %vm4337, %v4336, %v4333
    %s4339 = scalar_lea.vmem [#allocation1], 131
    %s4340 = smov 192
    %v4341 = vld [vmem:[%s4339] ss:$16 sm:%s4340]
    %vm4342 = vcmask 1047558
    %v4343 = vsel %vm4342, %v4341, %v4338
    %4344 = vrot.lane.b32.xlu0 %v4343, 24
    %v4345 = vpop.permute.xlu0 %4344
    %vm4346 = vcmask 261312
    %s4347 = scalar_lea.vmem [#allocation0], 8
    %4348 = vst.msk [vmem:[%s4347] sm:$0xff] %vm4346, %v4345
    %s4349 = scalar_lea.vmem [#allocation1], 643
    %s4350 = smov 3
    %v4351 = vld [vmem:[%s4349] ss:$16 sm:%s4350]
    %s4352 = scalar_lea.vmem [#allocation1], 643
    %s4353 = smov 12
    %v4354 = vld [vmem:[%s4352] ss:$16 sm:%s4353]
    %vm4355 = vcmask 1043458
    %v4356 = vsel %vm4355, %v4354, %v4351
    %s4357 = scalar_lea.vmem [#allocation1], 643
    %s4358 = smov 48
    %v4359 = vld [vmem:[%s4357] ss:$16 sm:%s4358]
    %vm4360 = vcmask 1045508
    %v4361 = vsel %vm4360, %v4359, %v4356
    %s4362 = scalar_lea.vmem [#allocation1], 643
    %s4363 = smov 192
    %v4364 = vld [vmem:[%s4362] ss:$16 sm:%s4363]
    %vm4365 = vcmask 1047558
    %v4366 = vsel %vm4365, %v4364, %v4361
    %4367 = vrot.lane.b32.xlu0 %v4366, 24
    %v4368 = vpop.permute.xlu0 %4367
    %vm4369 = vcmask 261312
    %s4370 = scalar_lea.vmem [#allocation0], 40
    %4371 = vst.msk [vmem:[%s4370] sm:$0xff] %vm4369, %v4368
    %s4372 = scalar_lea.vmem [#allocation1], 259
    %s4373 = smov 3
    %v4374 = vld [vmem:[%s4372] ss:$16 sm:%s4373]
    %s4375 = scalar_lea.vmem [#allocation1], 259
    %s4376 = smov 12
    %v4377 = vld [vmem:[%s4375] ss:$16 sm:%s4376]
    %vm4378 = vcmask 1043458
    %v4379 = vsel %vm4378, %v4377, %v4374
    %s4380 = scalar_lea.vmem [#allocation1], 259
    %s4381 = smov 48
    %v4382 = vld [vmem:[%s4380] ss:$16 sm:%s4381]
    %vm4383 = vcmask 1045508
    %v4384 = vsel %vm4383, %v4382, %v4379
    %s4385 = scalar_lea.vmem [#allocation1], 259
    %s4386 = smov 192
    %v4387 = vld [vmem:[%s4385] ss:$16 sm:%s4386]
    %vm4388 = vcmask 1047558
    %v4389 = vsel %vm4388, %v4387, %v4384
    %4390 = vrot.lane.b32.xlu0 %v4389, 24
    %v4391 = vpop.permute.xlu0 %4390
    %vm4392 = vcmask 261312
    %s4393 = scalar_lea.vmem [#allocation0], 16
    %4394 = vst.msk [vmem:[%s4393] sm:$0xff] %vm4392, %v4391
    %s4395 = scalar_lea.vmem [#allocation1], 771
    %s4396 = smov 3
    %v4397 = vld [vmem:[%s4395] ss:$16 sm:%s4396]
    %s4398 = scalar_lea.vmem [#allocation1], 771
    %s4399 = smov 12
    %v4400 = vld [vmem:[%s4398] ss:$16 sm:%s4399]
    %vm4401 = vcmask 1043458
    %v4402 = vsel %vm4401, %v4400, %v4397
    %s4403 = scalar_lea.vmem [#allocation1], 771
    %s4404 = smov 48
    %v4405 = vld [vmem:[%s4403] ss:$16 sm:%s4404]
    %vm4406 = vcmask 1045508
    %v4407 = vsel %vm4406, %v4405, %v4402
    %s4408 = scalar_lea.vmem [#allocation1], 771
    %s4409 = smov 192
    %v4410 = vld [vmem:[%s4408] ss:$16 sm:%s4409]
    %vm4411 = vcmask 1047558
    %v4412 = vsel %vm4411, %v4410, %v4407
    %4413 = vrot.lane.b32.xlu0 %v4412, 24
    %v4414 = vpop.permute.xlu0 %4413
    %vm4415 = vcmask 261312
    %s4416 = scalar_lea.vmem [#allocation0], 48
    %4417 = vst.msk [vmem:[%s4416] sm:$0xff] %vm4415, %v4414
    %s4418 = scalar_lea.vmem [#allocation1], 387
    %s4419 = smov 3
    %v4420 = vld [vmem:[%s4418] ss:$16 sm:%s4419]
    %s4421 = scalar_lea.vmem [#allocation1], 387
    %s4422 = smov 12
    %v4423 = vld [vmem:[%s4421] ss:$16 sm:%s4422]
    %vm4424 = vcmask 1043458
    %v4425 = vsel %vm4424, %v4423, %v4420
    %s4426 = scalar_lea.vmem [#allocation1], 387
    %s4427 = smov 48
    %v4428 = vld [vmem:[%s4426] ss:$16 sm:%s4427]
    %vm4429 = vcmask 1045508
    %v4430 = vsel %vm4429, %v4428, %v4425
    %s4431 = scalar_lea.vmem [#allocation1], 387
    %s4432 = smov 192
    %v4433 = vld [vmem:[%s4431] ss:$16 sm:%s4432]
    %vm4434 = vcmask 1047558
    %v4435 = vsel %vm4434, %v4433, %v4430
    %4436 = vrot.lane.b32.xlu0 %v4435, 24
    %v4437 = vpop.permute.xlu0 %4436
    %vm4438 = vcmask 261312
    %s4439 = scalar_lea.vmem [#allocation0], 24
    %4440 = vst.msk [vmem:[%s4439] sm:$0xff] %vm4438, %v4437
    %s4441 = scalar_lea.vmem [#allocation1], 899
    %s4442 = smov 3
    %v4443 = vld [vmem:[%s4441] ss:$16 sm:%s4442]
    %s4444 = scalar_lea.vmem [#allocation1], 899
    %s4445 = smov 12
    %v4446 = vld [vmem:[%s4444] ss:$16 sm:%s4445]
    %vm4447 = vcmask 1043458
    %v4448 = vsel %vm4447, %v4446, %v4443
    %s4449 = scalar_lea.vmem [#allocation1], 899
    %s4450 = smov 48
    %v4451 = vld [vmem:[%s4449] ss:$16 sm:%s4450]
    %vm4452 = vcmask 1045508
    %v4453 = vsel %vm4452, %v4451, %v4448
    %s4454 = scalar_lea.vmem [#allocation1], 899
    %s4455 = smov 192
    %v4456 = vld [vmem:[%s4454] ss:$16 sm:%s4455]
    %vm4457 = vcmask 1047558
    %v4458 = vsel %vm4457, %v4456, %v4453
    %4459 = vrot.lane.b32.xlu0 %v4458, 24
    %v4460 = vpop.permute.xlu0 %4459
    %vm4461 = vcmask 261312
    %s4462 = scalar_lea.vmem [#allocation0], 56
    %4463 = vst.msk [vmem:[%s4462] sm:$0xff] %vm4461, %v4460
    %s4464 = scalar_lea.vmem [#allocation1], 2
    %s4465 = smov 3
    %v4466 = vld [vmem:[%s4464] ss:$16 sm:%s4465]
    %s4467 = scalar_lea.vmem [#allocation1], 2
    %s4468 = smov 12
    %v4469 = vld [vmem:[%s4467] ss:$16 sm:%s4468]
    %vm4470 = vcmask 1043458
    %v4471 = vsel %vm4470, %v4469, %v4466
    %s4472 = scalar_lea.vmem [#allocation1], 2
    %s4473 = smov 48
    %v4474 = vld [vmem:[%s4472] ss:$16 sm:%s4473]
    %vm4475 = vcmask 1045508
    %v4476 = vsel %vm4475, %v4474, %v4471
    %s4477 = scalar_lea.vmem [#allocation1], 2
    %s4478 = smov 192
    %v4479 = vld [vmem:[%s4477] ss:$16 sm:%s4478]
    %vm4480 = vcmask 1047558
    %v4481 = vsel %vm4480, %v4479, %v4476
    %4482 = vrot.lane.b32.xlu0 %v4481, 16
    %v4483 = vpop.permute.xlu0 %4482
    %vm4484 = vcmask 195712
    %4485 = vst.msk [vmem:[#allocation0] sm:$0xff] %vm4484, %v4483
    %s4486 = scalar_lea.vmem [#allocation1], 514
    %s4487 = smov 3
    %v4488 = vld [vmem:[%s4486] ss:$16 sm:%s4487]
    %s4489 = scalar_lea.vmem [#allocation1], 514
    %s4490 = smov 12
    %v4491 = vld [vmem:[%s4489] ss:$16 sm:%s4490]
    %vm4492 = vcmask 1043458
    %v4493 = vsel %vm4492, %v4491, %v4488
    %s4494 = scalar_lea.vmem [#allocation1], 514
    %s4495 = smov 48
    %v4496 = vld [vmem:[%s4494] ss:$16 sm:%s4495]
    %vm4497 = vcmask 1045508
    %v4498 = vsel %vm4497, %v4496, %v4493
    %s4499 = scalar_lea.vmem [#allocation1], 514
    %s4500 = smov 192
    %v4501 = vld [vmem:[%s4499] ss:$16 sm:%s4500]
    %vm4502 = vcmask 1047558
    %v4503 = vsel %vm4502, %v4501, %v4498
    %4504 = vrot.lane.b32.xlu0 %v4503, 16
    %v4505 = vpop.permute.xlu0 %4504
    %vm4506 = vcmask 195712
    %s4507 = scalar_lea.vmem [#allocation0], 32
    %4508 = vst.msk [vmem:[%s4507] sm:$0xff] %vm4506, %v4505
    %s4509 = scalar_lea.vmem [#allocation1], 130
    %s4510 = smov 3
    %v4511 = vld [vmem:[%s4509] ss:$16 sm:%s4510]
    %s4512 = scalar_lea.vmem [#allocation1], 130
    %s4513 = smov 12
    %v4514 = vld [vmem:[%s4512] ss:$16 sm:%s4513]
    %vm4515 = vcmask 1043458
    %v4516 = vsel %vm4515, %v4514, %v4511
    %s4517 = scalar_lea.vmem [#allocation1], 130
    %s4518 = smov 48
    %v4519 = vld [vmem:[%s4517] ss:$16 sm:%s4518]
    %vm4520 = vcmask 1045508
    %v4521 = vsel %vm4520, %v4519, %v4516
    %s4522 = scalar_lea.vmem [#allocation1], 130
    %s4523 = smov 192
    %v4524 = vld [vmem:[%s4522] ss:$16 sm:%s4523]
    %vm4525 = vcmask 1047558
    %v4526 = vsel %vm4525, %v4524, %v4521
    %4527 = vrot.lane.b32.xlu0 %v4526, 16
    %v4528 = vpop.permute.xlu0 %4527
    %vm4529 = vcmask 195712
    %s4530 = scalar_lea.vmem [#allocation0], 8
    %4531 = vst.msk [vmem:[%s4530] sm:$0xff] %vm4529, %v4528
    %s4532 = scalar_lea.vmem [#allocation1], 642
    %s4533 = smov 3
    %v4534 = vld [vmem:[%s4532] ss:$16 sm:%s4533]
    %s4535 = scalar_lea.vmem [#allocation1], 642
    %s4536 = smov 12
    %v4537 = vld [vmem:[%s4535] ss:$16 sm:%s4536]
    %vm4538 = vcmask 1043458
    %v4539 = vsel %vm4538, %v4537, %v4534
    %s4540 = scalar_lea.vmem [#allocation1], 642
    %s4541 = smov 48
    %v4542 = vld [vmem:[%s4540] ss:$16 sm:%s4541]
    %vm4543 = vcmask 1045508
    %v4544 = vsel %vm4543, %v4542, %v4539
    %s4545 = scalar_lea.vmem [#allocation1], 642
    %s4546 = smov 192
    %v4547 = vld [vmem:[%s4545] ss:$16 sm:%s4546]
    %vm4548 = vcmask 1047558
    %v4549 = vsel %vm4548, %v4547, %v4544
    %4550 = vrot.lane.b32.xlu0 %v4549, 16
    %v4551 = vpop.permute.xlu0 %4550
    %vm4552 = vcmask 195712
    %s4553 = scalar_lea.vmem [#allocation0], 40
    %4554 = vst.msk [vmem:[%s4553] sm:$0xff] %vm4552, %v4551
    %s4555 = scalar_lea.vmem [#allocation1], 258
    %s4556 = smov 3
    %v4557 = vld [vmem:[%s4555] ss:$16 sm:%s4556]
    %s4558 = scalar_lea.vmem [#allocation1], 258
    %s4559 = smov 12
    %v4560 = vld [vmem:[%s4558] ss:$16 sm:%s4559]
    %vm4561 = vcmask 1043458
    %v4562 = vsel %vm4561, %v4560, %v4557
    %s4563 = scalar_lea.vmem [#allocation1], 258
    %s4564 = smov 48
    %v4565 = vld [vmem:[%s4563] ss:$16 sm:%s4564]
    %vm4566 = vcmask 1045508
    %v4567 = vsel %vm4566, %v4565, %v4562
    %s4568 = scalar_lea.vmem [#allocation1], 258
    %s4569 = smov 192
    %v4570 = vld [vmem:[%s4568] ss:$16 sm:%s4569]
    %vm4571 = vcmask 1047558
    %v4572 = vsel %vm4571, %v4570, %v4567
    %4573 = vrot.lane.b32.xlu0 %v4572, 16
    %v4574 = vpop.permute.xlu0 %4573
    %vm4575 = vcmask 195712
    %s4576 = scalar_lea.vmem [#allocation0], 16
    %4577 = vst.msk [vmem:[%s4576] sm:$0xff] %vm4575, %v4574
    %s4578 = scalar_lea.vmem [#allocation1], 770
    %s4579 = smov 3
    %v4580 = vld [vmem:[%s4578] ss:$16 sm:%s4579]
    %s4581 = scalar_lea.vmem [#allocation1], 770
    %s4582 = smov 12
    %v4583 = vld [vmem:[%s4581] ss:$16 sm:%s4582]
    %vm4584 = vcmask 1043458
    %v4585 = vsel %vm4584, %v4583, %v4580
    %s4586 = scalar_lea.vmem [#allocation1], 770
    %s4587 = smov 48
    %v4588 = vld [vmem:[%s4586] ss:$16 sm:%s4587]
    %vm4589 = vcmask 1045508
    %v4590 = vsel %vm4589, %v4588, %v4585
    %s4591 = scalar_lea.vmem [#allocation1], 770
    %s4592 = smov 192
    %v4593 = vld [vmem:[%s4591] ss:$16 sm:%s4592]
    %vm4594 = vcmask 1047558
    %v4595 = vsel %vm4594, %v4593, %v4590
    %4596 = vrot.lane.b32.xlu0 %v4595, 16
    %v4597 = vpop.permute.xlu0 %4596
    %vm4598 = vcmask 195712
    %s4599 = scalar_lea.vmem [#allocation0], 48
    %4600 = vst.msk [vmem:[%s4599] sm:$0xff] %vm4598, %v4597
    %s4601 = scalar_lea.vmem [#allocation1], 386
    %s4602 = smov 3
    %v4603 = vld [vmem:[%s4601] ss:$16 sm:%s4602]
    %s4604 = scalar_lea.vmem [#allocation1], 386
    %s4605 = smov 12
    %v4606 = vld [vmem:[%s4604] ss:$16 sm:%s4605]
    %vm4607 = vcmask 1043458
    %v4608 = vsel %vm4607, %v4606, %v4603
    %s4609 = scalar_lea.vmem [#allocation1], 386
    %s4610 = smov 48
    %v4611 = vld [vmem:[%s4609] ss:$16 sm:%s4610]
    %vm4612 = vcmask 1045508
    %v4613 = vsel %vm4612, %v4611, %v4608
    %s4614 = scalar_lea.vmem [#allocation1], 386
    %s4615 = smov 192
    %v4616 = vld [vmem:[%s4614] ss:$16 sm:%s4615]
    %vm4617 = vcmask 1047558
    %v4618 = vsel %vm4617, %v4616, %v4613
    %4619 = vrot.lane.b32.xlu0 %v4618, 16
    %v4620 = vpop.permute.xlu0 %4619
    %vm4621 = vcmask 195712
    %s4622 = scalar_lea.vmem [#allocation0], 24
    %4623 = vst.msk [vmem:[%s4622] sm:$0xff] %vm4621, %v4620
    %s4624 = scalar_lea.vmem [#allocation1], 898
    %s4625 = smov 3
    %v4626 = vld [vmem:[%s4624] ss:$16 sm:%s4625]
    %s4627 = scalar_lea.vmem [#allocation1], 898
    %s4628 = smov 12
    %v4629 = vld [vmem:[%s4627] ss:$16 sm:%s4628]
    %vm4630 = vcmask 1043458
    %v4631 = vsel %vm4630, %v4629, %v4626
    %s4632 = scalar_lea.vmem [#allocation1], 898
    %s4633 = smov 48
    %v4634 = vld [vmem:[%s4632] ss:$16 sm:%s4633]
    %vm4635 = vcmask 1045508
    %v4636 = vsel %vm4635, %v4634, %v4631
    %s4637 = scalar_lea.vmem [#allocation1], 898
    %s4638 = smov 192
    %v4639 = vld [vmem:[%s4637] ss:$16 sm:%s4638]
    %vm4640 = vcmask 1047558
    %v4641 = vsel %vm4640, %v4639, %v4636
    %4642 = vrot.lane.b32.xlu0 %v4641, 16
    %v4643 = vpop.permute.xlu0 %4642
    %vm4644 = vcmask 195712
    %s4645 = scalar_lea.vmem [#allocation0], 56
    %4646 = vst.msk [vmem:[%s4645] sm:$0xff] %vm4644, %v4643
    %s4647 = scalar_lea.vmem [#allocation1], 1
    %s4648 = smov 3
    %v4649 = vld [vmem:[%s4647] ss:$16 sm:%s4648]
    %s4650 = scalar_lea.vmem [#allocation1], 1
    %s4651 = smov 12
    %v4652 = vld [vmem:[%s4650] ss:$16 sm:%s4651]
    %vm4653 = vcmask 1043458
    %v4654 = vsel %vm4653, %v4652, %v4649
    %s4655 = scalar_lea.vmem [#allocation1], 1
    %s4656 = smov 48
    %v4657 = vld [vmem:[%s4655] ss:$16 sm:%s4656]
    %vm4658 = vcmask 1045508
    %v4659 = vsel %vm4658, %v4657, %v4654
    %s4660 = scalar_lea.vmem [#allocation1], 1
    %s4661 = smov 192
    %v4662 = vld [vmem:[%s4660] ss:$16 sm:%s4661]
    %vm4663 = vcmask 1047558
    %v4664 = vsel %vm4663, %v4662, %v4659
    %4665 = vrot.lane.b32.xlu0 %v4664, 8
    %v4666 = vpop.permute.xlu0 %4665
    %vm4667 = vcmask 130112
    %4668 = vst.msk [vmem:[#allocation0] sm:$0xff] %vm4667, %v4666
    %s4669 = scalar_lea.vmem [#allocation1], 513
    %s4670 = smov 3
    %v4671 = vld [vmem:[%s4669] ss:$16 sm:%s4670]
    %s4672 = scalar_lea.vmem [#allocation1], 513
    %s4673 = smov 12
    %v4674 = vld [vmem:[%s4672] ss:$16 sm:%s4673]
    %vm4675 = vcmask 1043458
    %v4676 = vsel %vm4675, %v4674, %v4671
    %s4677 = scalar_lea.vmem [#allocation1], 513
    %s4678 = smov 48
    %v4679 = vld [vmem:[%s4677] ss:$16 sm:%s4678]
    %vm4680 = vcmask 1045508
    %v4681 = vsel %vm4680, %v4679, %v4676
    %s4682 = scalar_lea.vmem [#allocation1], 513
    %s4683 = smov 192
    %v4684 = vld [vmem:[%s4682] ss:$16 sm:%s4683]
    %vm4685 = vcmask 1047558
    %v4686 = vsel %vm4685, %v4684, %v4681
    %4687 = vrot.lane.b32.xlu0 %v4686, 8
    %v4688 = vpop.permute.xlu0 %4687
    %vm4689 = vcmask 130112
    %s4690 = scalar_lea.vmem [#allocation0], 32
    %4691 = vst.msk [vmem:[%s4690] sm:$0xff] %vm4689, %v4688
    %s4692 = scalar_lea.vmem [#allocation1], 129
    %s4693 = smov 3
    %v4694 = vld [vmem:[%s4692] ss:$16 sm:%s4693]
    %s4695 = scalar_lea.vmem [#allocation1], 129
    %s4696 = smov 12
    %v4697 = vld [vmem:[%s4695] ss:$16 sm:%s4696]
    %vm4698 = vcmask 1043458
    %v4699 = vsel %vm4698, %v4697, %v4694
    %s4700 = scalar_lea.vmem [#allocation1], 129
    %s4701 = smov 48
    %v4702 = vld [vmem:[%s4700] ss:$16 sm:%s4701]
    %vm4703 = vcmask 1045508
    %v4704 = vsel %vm4703, %v4702, %v4699
    %s4705 = scalar_lea.vmem [#allocation1], 129
    %s4706 = smov 192
    %v4707 = vld [vmem:[%s4705] ss:$16 sm:%s4706]
    %vm4708 = vcmask 1047558
    %v4709 = vsel %vm4708, %v4707, %v4704
    %4710 = vrot.lane.b32.xlu0 %v4709, 8
    %v4711 = vpop.permute.xlu0 %4710
    %vm4712 = vcmask 130112
    %s4713 = scalar_lea.vmem [#allocation0], 8
    %4714 = vst.msk [vmem:[%s4713] sm:$0xff] %vm4712, %v4711
    %s4715 = scalar_lea.vmem [#allocation1], 641
    %s4716 = smov 3
    %v4717 = vld [vmem:[%s4715] ss:$16 sm:%s4716]
    %s4718 = scalar_lea.vmem [#allocation1], 641
    %s4719 = smov 12
    %v4720 = vld [vmem:[%s4718] ss:$16 sm:%s4719]
    %vm4721 = vcmask 1043458
    %v4722 = vsel %vm4721, %v4720, %v4717
    %s4723 = scalar_lea.vmem [#allocation1], 641
    %s4724 = smov 48
    %v4725 = vld [vmem:[%s4723] ss:$16 sm:%s4724]
    %vm4726 = vcmask 1045508
    %v4727 = vsel %vm4726, %v4725, %v4722
    %s4728 = scalar_lea.vmem [#allocation1], 641
    %s4729 = smov 192
    %v4730 = vld [vmem:[%s4728] ss:$16 sm:%s4729]
    %vm4731 = vcmask 1047558
    %v4732 = vsel %vm4731, %v4730, %v4727
    %4733 = vrot.lane.b32.xlu0 %v4732, 8
    %v4734 = vpop.permute.xlu0 %4733
    %vm4735 = vcmask 130112
    %s4736 = scalar_lea.vmem [#allocation0], 40
    %4737 = vst.msk [vmem:[%s4736] sm:$0xff] %vm4735, %v4734
    %s4738 = scalar_lea.vmem [#allocation1], 257
    %s4739 = smov 3
    %v4740 = vld [vmem:[%s4738] ss:$16 sm:%s4739]
    %s4741 = scalar_lea.vmem [#allocation1], 257
    %s4742 = smov 12
    %v4743 = vld [vmem:[%s4741] ss:$16 sm:%s4742]
    %vm4744 = vcmask 1043458
    %v4745 = vsel %vm4744, %v4743, %v4740
    %s4746 = scalar_lea.vmem [#allocation1], 257
    %s4747 = smov 48
    %v4748 = vld [vmem:[%s4746] ss:$16 sm:%s4747]
    %vm4749 = vcmask 1045508
    %v4750 = vsel %vm4749, %v4748, %v4745
    %s4751 = scalar_lea.vmem [#allocation1], 257
    %s4752 = smov 192
    %v4753 = vld [vmem:[%s4751] ss:$16 sm:%s4752]
    %vm4754 = vcmask 1047558
    %v4755 = vsel %vm4754, %v4753, %v4750
    %4756 = vrot.lane.b32.xlu0 %v4755, 8
    %v4757 = vpop.permute.xlu0 %4756
    %vm4758 = vcmask 130112
    %s4759 = scalar_lea.vmem [#allocation0], 16
    %4760 = vst.msk [vmem:[%s4759] sm:$0xff] %vm4758, %v4757
    %s4761 = scalar_lea.vmem [#allocation1], 769
    %s4762 = smov 3
    %v4763 = vld [vmem:[%s4761] ss:$16 sm:%s4762]
    %s4764 = scalar_lea.vmem [#allocation1], 769
    %s4765 = smov 12
    %v4766 = vld [vmem:[%s4764] ss:$16 sm:%s4765]
    %vm4767 = vcmask 1043458
    %v4768 = vsel %vm4767, %v4766, %v4763
    %s4769 = scalar_lea.vmem [#allocation1], 769
    %s4770 = smov 48
    %v4771 = vld [vmem:[%s4769] ss:$16 sm:%s4770]
    %vm4772 = vcmask 1045508
    %v4773 = vsel %vm4772, %v4771, %v4768
    %s4774 = scalar_lea.vmem [#allocation1], 769
    %s4775 = smov 192
    %v4776 = vld [vmem:[%s4774] ss:$16 sm:%s4775]
    %vm4777 = vcmask 1047558
    %v4778 = vsel %vm4777, %v4776, %v4773
    %4779 = vrot.lane.b32.xlu0 %v4778, 8
    %v4780 = vpop.permute.xlu0 %4779
    %vm4781 = vcmask 130112
    %s4782 = scalar_lea.vmem [#allocation0], 48
    %4783 = vst.msk [vmem:[%s4782] sm:$0xff] %vm4781, %v4780
    %s4784 = scalar_lea.vmem [#allocation1], 385
    %s4785 = smov 3
    %v4786 = vld [vmem:[%s4784] ss:$16 sm:%s4785]
    %s4787 = scalar_lea.vmem [#allocation1], 385
    %s4788 = smov 12
    %v4789 = vld [vmem:[%s4787] ss:$16 sm:%s4788]
    %vm4790 = vcmask 1043458
    %v4791 = vsel %vm4790, %v4789, %v4786
    %s4792 = scalar_lea.vmem [#allocation1], 385
    %s4793 = smov 48
    %v4794 = vld [vmem:[%s4792] ss:$16 sm:%s4793]
    %vm4795 = vcmask 1045508
    %v4796 = vsel %vm4795, %v4794, %v4791
    %s4797 = scalar_lea.vmem [#allocation1], 385
    %s4798 = smov 192
    %v4799 = vld [vmem:[%s4797] ss:$16 sm:%s4798]
    %vm4800 = vcmask 1047558
    %v4801 = vsel %vm4800, %v4799, %v4796
    %4802 = vrot.lane.b32.xlu0 %v4801, 8
    %v4803 = vpop.permute.xlu0 %4802
    %vm4804 = vcmask 130112
    %s4805 = scalar_lea.vmem [#allocation0], 24
    %4806 = vst.msk [vmem:[%s4805] sm:$0xff] %vm4804, %v4803
    %s4807 = scalar_lea.vmem [#allocation1], 897
    %s4808 = smov 3
    %v4809 = vld [vmem:[%s4807] ss:$16 sm:%s4808]
    %s4810 = scalar_lea.vmem [#allocation1], 897
    %s4811 = smov 12
    %v4812 = vld [vmem:[%s4810] ss:$16 sm:%s4811]
    %vm4813 = vcmask 1043458
    %v4814 = vsel %vm4813, %v4812, %v4809
    %s4815 = scalar_lea.vmem [#allocation1], 897
    %s4816 = smov 48
    %v4817 = vld [vmem:[%s4815] ss:$16 sm:%s4816]
    %vm4818 = vcmask 1045508
    %v4819 = vsel %vm4818, %v4817, %v4814
    %s4820 = scalar_lea.vmem [#allocation1], 897
    %s4821 = smov 192
    %v4822 = vld [vmem:[%s4820] ss:$16 sm:%s4821]
    %vm4823 = vcmask 1047558
    %v4824 = vsel %vm4823, %v4822, %v4819
    %4825 = vrot.lane.b32.xlu0 %v4824, 8
    %v4826 = vpop.permute.xlu0 %4825
    %vm4827 = vcmask 130112
    %s4828 = scalar_lea.vmem [#allocation0], 56
    %4829 = vst.msk [vmem:[%s4828] sm:$0xff] %vm4827, %v4826
    %s4831 = ssub.s32 256, 1
    %v4832 = vld [vmem:[#allocation0] sm:%s4831]
    %v4833 = vpack.c.bf16 0.0, %v4832
    %s4835 = ssub.s32 16, 1
    %4836 = vst [vmem:[%s1] sm:%s4835] %v4833
    %s4837 = scalar_lea.vmem [#allocation0], 8
    %v4838 = vld [vmem:[%s4837] sm:%s4831]
    %v4839 = vpack.c.bf16 0.0, %v4838
    %s4841 = ssub.s32 16, 1
    %s4842 = scalar_lea.vmem %s1, 4
    %4843 = vst [vmem:[%s4842] sm:%s4841] %v4839
    %s4844 = scalar_lea.vmem [#allocation0], 16
    %v4845 = vld [vmem:[%s4844] sm:%s4831]
    %v4846 = vpack.c.bf16 0.0, %v4845
    %s4848 = ssub.s32 16, 1
    %s4849 = scalar_lea.vmem %s1, 8
    %4850 = vst [vmem:[%s4849] sm:%s4848] %v4846
    %s4851 = scalar_lea.vmem [#allocation0], 24
    %v4852 = vld [vmem:[%s4851] sm:%s4831]
    %v4853 = vpack.c.bf16 0.0, %v4852
    %s4855 = ssub.s32 16, 1
    %s4856 = scalar_lea.vmem %s1, 12
    %4857 = vst [vmem:[%s4856] sm:%s4855] %v4853
    %s4858 = scalar_lea.vmem [#allocation0], 32
    %v4859 = vld [vmem:[%s4858] sm:%s4831]
    %v4860 = vpack.c.bf16 0.0, %v4859
    %s4862 = ssub.s32 16, 1
    %s4863 = scalar_lea.vmem %s1, 16
    %4864 = vst [vmem:[%s4863] sm:%s4862] %v4860
    %s4865 = scalar_lea.vmem [#allocation0], 40
    %v4866 = vld [vmem:[%s4865] sm:%s4831]
    %v4867 = vpack.c.bf16 0.0, %v4866
    %s4869 = ssub.s32 16, 1
    %s4870 = scalar_lea.vmem %s1, 20
    %4871 = vst [vmem:[%s4870] sm:%s4869] %v4867
    %s4872 = scalar_lea.vmem [#allocation0], 48
    %v4873 = vld [vmem:[%s4872] sm:%s4831]
    %v4874 = vpack.c.bf16 0.0, %v4873
    %s4876 = ssub.s32 16, 1
    %s4877 = scalar_lea.vmem %s1, 24
    %4878 = vst [vmem:[%s4877] sm:%s4876] %v4874
    %s4879 = scalar_lea.vmem [#allocation0], 56
    %v4880 = vld [vmem:[%s4879] sm:%s4831]
    %v4881 = vpack.c.bf16 0.0, %v4880
    %s4883 = ssub.s32 16, 1
    %s4884 = scalar_lea.vmem %s1, 28
    %4885 = vst [vmem:[%s4884] sm:%s4883] %v4881

// kernel: tile.19
$region0: #{tile.19}
  %s0 = inlined_call_operand.vmem [shape: f32[16,8,8], index: 0, kind: input, shape index: {}]
  %s1 = inlined_call_operand.vmem [shape: f32[128,8], index: 1, kind: output, shape index: {}]
  %s2 = smov 3
  %v3 = vld [vmem:[%s0] ss:$16 sm:%s2]
  %s4 = smov 12
  %v5 = vld [vmem:[%s0] ss:$16 sm:%s4]
  %vm6 = vcmask 1043458
  %v7 = vsel %vm6, %v5, %v3
  %s8 = smov 48
  %v9 = vld [vmem:[%s0] ss:$16 sm:%s8]
  %vm10 = vcmask 1045508
  %v11 = vsel %vm10, %v9, %v7
  %s12 = smov 192
  %v13 = vld [vmem:[%s0] ss:$16 sm:%s12]
  %vm14 = vcmask 1047558
  %v15 = vsel %vm14, %v13, %v11
  %vm16 = vcmask 64512
  %17 = vst.msk [vmem:[%s1] sm:$0xff] %vm16, %v15
  %s18 = scalar_lea.vmem %s0, 15
  %s19 = smov 3
  %v20 = vld [vmem:[%s18] ss:$16 sm:%s19]
  %s21 = scalar_lea.vmem %s0, 15
  %s22 = smov 12
  %v23 = vld [vmem:[%s21] ss:$16 sm:%s22]
  %vm24 = vcmask 1043458
  %v25 = vsel %vm24, %v23, %v20
  %s26 = scalar_lea.vmem %s0, 15
  %s27 = smov 48
  %v28 = vld [vmem:[%s26] ss:$16 sm:%s27]
  %vm29 = vcmask 1045508
  %v30 = vsel %vm29, %v28, %v25
  %s31 = scalar_lea.vmem %s0, 15
  %s32 = smov 192
  %v33 = vld [vmem:[%s31] ss:$16 sm:%s32]
  %vm34 = vcmask 1047558
  %v35 = vsel %vm34, %v33, %v30
  %36 = vrot.lane.b32.xlu0 %v35, 120
  %v37 = vpop.permute.xlu0 %36
  %vm38 = vcmask 1048512
  %39 = vst.msk [vmem:[%s1] sm:$0xff] %vm38, %v37
  %s40 = scalar_lea.vmem %s0, 14
  %s41 = smov 3
  %v42 = vld [vmem:[%s40] ss:$16 sm:%s41]
  %s43 = scalar_lea.vmem %s0, 14
  %s44 = smov 12
  %v45 = vld [vmem:[%s43] ss:$16 sm:%s44]
  %vm46 = vcmask 1043458
  %v47 = vsel %vm46, %v45, %v42
  %s48 = scalar_lea.vmem %s0, 14
  %s49 = smov 48
  %v50 = vld [vmem:[%s48] ss:$16 sm:%s49]
  %vm51 = vcmask 1045508
  %v52 = vsel %vm51, %v50, %v47
  %s53 = scalar_lea.vmem %s0, 14
  %s54 = smov 192
  %v55 = vld [vmem:[%s53] ss:$16 sm:%s54]
  %vm56 = vcmask 1047558
  %v57 = vsel %vm56, %v55, %v52
  %58 = vrot.lane.b32.xlu0 %v57, 112
  %v59 = vpop.permute.xlu0 %58
  %vm60 = vcmask 982912
  %61 = vst.msk [vmem:[%s1] sm:$0xff] %vm60, %v59
  %s62 = scalar_lea.vmem %s0, 13
  %s63 = smov 3
  %v64 = vld [vmem:[%s62] ss:$16 sm:%s63]
  %s65 = scalar_lea.vmem %s0, 13
  %s66 = smov 12
  %v67 = vld [vmem:[%s65] ss:$16 sm:%s66]
  %vm68 = vcmask 1043458
  %v69 = vsel %vm68, %v67, %v64
  %s70 = scalar_lea.vmem %s0, 13
  %s71 = smov 48
  %v72 = vld [vmem:[%s70] ss:$16 sm:%s71]
  %vm73 = vcmask 1045508
  %v74 = vsel %vm73, %v72, %v69
  %s75 = scalar_lea.vmem %s0, 13
  %s76 = smov 192
  %v77 = vld [vmem:[%s75] ss:$16 sm:%s76]
  %vm78 = vcmask 1047558
  %v79 = vsel %vm78, %v77, %v74
  %80 = vrot.lane.b32.xlu0 %v79, 104
  %v81 = vpop.permute.xlu0 %80
  %vm82 = vcmask 917312
  %83 = vst.msk [vmem:[%s1] sm:$0xff] %vm82, %v81
  %s84 = scalar_lea.vmem %s0, 12
  %s85 = smov 3
  %v86 = vld [vmem:[%s84] ss:$16 sm:%s85]
  %s87 = scalar_lea.vmem %s0, 12
  %s88 = smov 12
  %v89 = vld [vmem:[%s87] ss:$16 sm:%s88]
  %vm90 = vcmask 1043458
  %v91 = vsel %vm90, %v89, %v86
  %s92 = scalar_lea.vmem %s0, 12
  %s93 = smov 48
  %v94 = vld [vmem:[%s92] ss:$16 sm:%s93]
  %vm95 = vcmask 1045508
  %v96 = vsel %vm95, %v94, %v91
  %s97 = scalar_lea.vmem %s0, 12
  %s98 = smov 192
  %v99 = vld [vmem:[%s97] ss:$16 sm:%s98]
  %vm100 = vcmask 1047558
  %v101 = vsel %vm100, %v99, %v96
  %102 = vrot.lane.b32.xlu0 %v101, 96
  %v103 = vpop.permute.xlu0 %102
  %vm104 = vcmask 851712
  %105 = vst.msk [vmem:[%s1] sm:$0xff] %vm104, %v103
  %s106 = scalar_lea.vmem %s0, 11
  %s107 = smov 3
  %v108 = vld [vmem:[%s106] ss:$16 sm:%s107]
  %s109 = scalar_lea.vmem %s0, 11
  %s110 = smov 12
  %v111 = vld [vmem:[%s109] ss:$16 sm:%s110]
  %vm112 = vcmask 1043458
  %v113 = vsel %vm112, %v111, %v108
  %s114 = scalar_lea.vmem %s0, 11
  %s115 = smov 48
  %v116 = vld [vmem:[%s114] ss:$16 sm:%s115]
  %vm117 = vcmask 1045508
  %v118 = vsel %vm117, %v116, %v113
  %s119 = scalar_lea.vmem %s0, 11
  %s120 = smov 192
  %v121 = vld [vmem:[%s119] ss:$16 sm:%s120]
  %vm122 = vcmask 1047558
  %v123 = vsel %vm122, %v121, %v118
  %124 = vrot.lane.b32.xlu0 %v123, 88
  %v125 = vpop.permute.xlu0 %124
  %vm126 = vcmask 786112
  %127 = vst.msk [vmem:[%s1] sm:$0xff] %vm126, %v125
  %s128 = scalar_lea.vmem %s0, 10
  %s129 = smov 3
  %v130 = vld [vmem:[%s128] ss:$16 sm:%s129]
  %s131 = scalar_lea.vmem %s0, 10
  %s132 = smov 12
  %v133 = vld [vmem:[%s131] ss:$16 sm:%s132]
  %vm134 = vcmask 1043458
  %v135 = vsel %vm134, %v133, %v130
  %s136 = scalar_lea.vmem %s0, 10
  %s137 = smov 48
  %v138 = vld [vmem:[%s136] ss:$16 sm:%s137]
  %vm139 = vcmask 1045508
  %v140 = vsel %vm139, %v138, %v135
  %s141 = scalar_lea.vmem %s0, 10
  %s142 = smov 192
  %v143 = vld [vmem:[%s141] ss:$16 sm:%s142]
  %vm144 = vcmask 1047558
  %v145 = vsel %vm144, %v143, %v140
  %146 = vrot.lane.b32.xlu0 %v145, 80
  %v147 = vpop.permute.xlu0 %146
  %vm148 = vcmask 720512
  %149 = vst.msk [vmem:[%s1] sm:$0xff] %vm148, %v147
  %s150 = scalar_lea.vmem %s0, 9
  %s151 = smov 3
  %v152 = vld [vmem:[%s150] ss:$16 sm:%s151]
  %s153 = scalar_lea.vmem %s0, 9
  %s154 = smov 12
  %v155 = vld [vmem:[%s153] ss:$16 sm:%s154]
  %vm156 = vcmask 1043458
  %v157 = vsel %vm156, %v155, %v152
  %s158 = scalar_lea.vmem %s0, 9
  %s159 = smov 48
  %v160 = vld [vmem:[%s158] ss:$16 sm:%s159]
  %vm161 = vcmask 1045508
  %v162 = vsel %vm161, %v160, %v157
  %s163 = scalar_lea.vmem %s0, 9
  %s164 = smov 192
  %v165 = vld [vmem:[%s163] ss:$16 sm:%s164]
  %vm166 = vcmask 1047558
  %v167 = vsel %vm166, %v165, %v162
  %168 = vrot.lane.b32.xlu0 %v167, 72
  %v169 = vpop.permute.xlu0 %168
  %vm170 = vcmask 654912
  %171 = vst.msk [vmem:[%s1] sm:$0xff] %vm170, %v169
  %s172 = scalar_lea.vmem %s0, 8
  %s173 = smov 3
  %v174 = vld [vmem:[%s172] ss:$16 sm:%s173]
  %s175 = scalar_lea.vmem %s0, 8
  %s176 = smov 12
  %v177 = vld [vmem:[%s175] ss:$16 sm:%s176]
  %vm178 = vcmask 1043458
  %v179 = vsel %vm178, %v177, %v174
  %s180 = scalar_lea.vmem %s0, 8
  %s181 = smov 48
  %v182 = vld [vmem:[%s180] ss:$16 sm:%s181]
  %vm183 = vcmask 1045508
  %v184 = vsel %vm183, %v182, %v179
  %s185 = scalar_lea.vmem %s0, 8
  %s186 = smov 192
  %v187 = vld [vmem:[%s185] ss:$16 sm:%s186]
  %vm188 = vcmask 1047558
  %v189 = vsel %vm188, %v187, %v184
  %190 = vrot.lane.b32.xlu0 %v189, 64
  %v191 = vpop.permute.xlu0 %190
  %vm192 = vcmask 589312
  %193 = vst.msk [vmem:[%s1] sm:$0xff] %vm192, %v191
  %s194 = scalar_lea.vmem %s0, 7
  %s195 = smov 3
  %v196 = vld [vmem:[%s194] ss:$16 sm:%s195]
  %s197 = scalar_lea.vmem %s0, 7
  %s198 = smov 12
  %v199 = vld [vmem:[%s197] ss:$16 sm:%s198]
  %vm200 = vcmask 1043458
  %v201 = vsel %vm200, %v199, %v196
  %s202 = scalar_lea.vmem %s0, 7
  %s203 = smov 48
  %v204 = vld [vmem:[%s202] ss:$16 sm:%s203]
  %vm205 = vcmask 1045508
  %v206 = vsel %vm205, %v204, %v201
  %s207 = scalar_lea.vmem %s0, 7
  %s208 = smov 192
  %v209 = vld [vmem:[%s207] ss:$16 sm:%s208]
  %vm210 = vcmask 1047558
  %v211 = vsel %vm210, %v209, %v206
  %212 = vrot.lane.b32.xlu0 %v211, 56
  %v213 = vpop.permute.xlu0 %212
  %vm214 = vcmask 523712
  %215 = vst.msk [vmem:[%s1] sm:$0xff] %vm214, %v213
  %s216 = scalar_lea.vmem %s0, 6
  %s217 = smov 3
  %v218 = vld [vmem:[%s216] ss:$16 sm:%s217]
  %s219 = scalar_lea.vmem %s0, 6
  %s220 = smov 12
  %v221 = vld [vmem:[%s219] ss:$16 sm:%s220]
  %vm222 = vcmask 1043458
  %v223 = vsel %vm222, %v221, %v218
  %s224 = scalar_lea.vmem %s0, 6
  %s225 = smov 48
  %v226 = vld [vmem:[%s224] ss:$16 sm:%s225]
  %vm227 = vcmask 1045508
  %v228 = vsel %vm227, %v226, %v223
  %s229 = scalar_lea.vmem %s0, 6
  %s230 = smov 192
  %v231 = vld [vmem:[%s229] ss:$16 sm:%s230]
  %vm232 = vcmask 1047558
  %v233 = vsel %vm232, %v231, %v228
  %234 = vrot.lane.b32.xlu0 %v233, 48
  %v235 = vpop.permute.xlu0 %234
  %vm236 = vcmask 458112
  %237 = vst.msk [vmem:[%s1] sm:$0xff] %vm236, %v235
  %s238 = scalar_lea.vmem %s0, 5
  %s239 = smov 3
  %v240 = vld [vmem:[%s238] ss:$16 sm:%s239]
  %s241 = scalar_lea.vmem %s0, 5
  %s242 = smov 12
  %v243 = vld [vmem:[%s241] ss:$16 sm:%s242]
  %vm244 = vcmask 1043458
  %v245 = vsel %vm244, %v243, %v240
  %s246 = scalar_lea.vmem %s0, 5
  %s247 = smov 48
  %v248 = vld [vmem:[%s246] ss:$16 sm:%s247]
  %vm249 = vcmask 1045508
  %v250 = vsel %vm249, %v248, %v245
  %s251 = scalar_lea.vmem %s0, 5
  %s252 = smov 192
  %v253 = vld [vmem:[%s251] ss:$16 sm:%s252]
  %vm254 = vcmask 1047558
  %v255 = vsel %vm254, %v253, %v250
  %256 = vrot.lane.b32.xlu0 %v255, 40
  %v257 = vpop.permute.xlu0 %256
  %vm258 = vcmask 392512
  %259 = vst.msk [vmem:[%s1] sm:$0xff] %vm258, %v257
  %s260 = scalar_lea.vmem %s0, 4
  %s261 = smov 3
  %v262 = vld [vmem:[%s260] ss:$16 sm:%s261]
  %s263 = scalar_lea.vmem %s0, 4
  %s264 = smov 12
  %v265 = vld [vmem:[%s263] ss:$16 sm:%s264]
  %vm266 = vcmask 1043458
  %v267 = vsel %vm266, %v265, %v262
  %s268 = scalar_lea.vmem %s0, 4
  %s269 = smov 48
  %v270 = vld [vmem:[%s268] ss:$16 sm:%s269]
  %vm271 = vcmask 1045508
  %v272 = vsel %vm271, %v270, %v267
  %s273 = scalar_lea.vmem %s0, 4
  %s274 = smov 192
  %v275 = vld [vmem:[%s273] ss:$16 sm:%s274]
  %vm276 = vcmask 1047558
  %v277 = vsel %vm276, %v275, %v272
  %278 = vrot.lane.b32.xlu0 %v277, 32
  %v279 = vpop.permute.xlu0 %278
  %vm280 = vcmask 326912
  %281 = vst.msk [vmem:[%s1] sm:$0xff] %vm280, %v279
  %s282 = scalar_lea.vmem %s0, 3
  %s283 = smov 3
  %v284 = vld [vmem:[%s282] ss:$16 sm:%s283]
  %s285 = scalar_lea.vmem %s0, 3
  %s286 = smov 12
  %v287 = vld [vmem:[%s285] ss:$16 sm:%s286]
  %vm288 = vcmask 1043458
  %v289 = vsel %vm288, %v287, %v284
  %s290 = scalar_lea.vmem %s0, 3
  %s291 = smov 48
  %v292 = vld [vmem:[%s290] ss:$16 sm:%s291]
  %vm293 = vcmask 1045508
  %v294 = vsel %vm293, %v292, %v289
  %s295 = scalar_lea.vmem %s0, 3
  %s296 = smov 192
  %v297 = vld [vmem:[%s295] ss:$16 sm:%s296]
  %vm298 = vcmask 1047558
  %v299 = vsel %vm298, %v297, %v294
  %300 = vrot.lane.b32.xlu0 %v299, 24
  %v301 = vpop.permute.xlu0 %300
  %vm302 = vcmask 261312
  %303 = vst.msk [vmem:[%s1] sm:$0xff] %vm302, %v301
  %s304 = scalar_lea.vmem %s0, 2
  %s305 = smov 3
  %v306 = vld [vmem:[%s304] ss:$16 sm:%s305]
  %s307 = scalar_lea.vmem %s0, 2
  %s308 = smov 12
  %v309 = vld [vmem:[%s307] ss:$16 sm:%s308]
  %vm310 = vcmask 1043458
  %v311 = vsel %vm310, %v309, %v306
  %s312 = scalar_lea.vmem %s0, 2
  %s313 = smov 48
  %v314 = vld [vmem:[%s312] ss:$16 sm:%s313]
  %vm315 = vcmask 1045508
  %v316 = vsel %vm315, %v314, %v311
  %s317 = scalar_lea.vmem %s0, 2
  %s318 = smov 192
  %v319 = vld [vmem:[%s317] ss:$16 sm:%s318]
  %vm320 = vcmask 1047558
  %v321 = vsel %vm320, %v319, %v316
  %322 = vrot.lane.b32.xlu0 %v321, 16
  %v323 = vpop.permute.xlu0 %322
  %vm324 = vcmask 195712
  %325 = vst.msk [vmem:[%s1] sm:$0xff] %vm324, %v323
  %s326 = scalar_lea.vmem %s0, 1
  %s327 = smov 3
  %v328 = vld [vmem:[%s326] ss:$16 sm:%s327]
  %s329 = scalar_lea.vmem %s0, 1
  %s330 = smov 12
  %v331 = vld [vmem:[%s329] ss:$16 sm:%s330]
  %vm332 = vcmask 1043458
  %v333 = vsel %vm332, %v331, %v328
  %s334 = scalar_lea.vmem %s0, 1
  %s335 = smov 48
  %v336 = vld [vmem:[%s334] ss:$16 sm:%s335]
  %vm337 = vcmask 1045508
  %v338 = vsel %vm337, %v336, %v333
  %s339 = scalar_lea.vmem %s0, 1
  %s340 = smov 192
  %v341 = vld [vmem:[%s339] ss:$16 sm:%s340]
  %vm342 = vcmask 1047558
  %v343 = vsel %vm342, %v341, %v338
  %344 = vrot.lane.b32.xlu0 %v343, 8
  %v345 = vpop.permute.xlu0 %344
  %vm346 = vcmask 130112
  %347 = vst.msk [vmem:[%s1] sm:$0xff] %vm346, %v345

// kernel: tile.13
$region0: #{tile.13}
  #allocation0 [shape = 's32[1]{0}', space=sflag, size = 0x4, scoped, tag = 'scoped memory for tile.13']
  %s0 = inlined_call_operand.vmem [shape: f32[8], index: 0, kind: input, shape index: {}]
  %s1 = inlined_call_operand.vmem [shape: f32[16,8], index: 1, kind: output, shape index: {}]
  // Predicated region
  $region2: #{tile.13} parent=0 // pred_check
    _
  $region3: #{tile.13} parent=0 // pred_check_branch
    %3 = sbr.rel (0) target = $region5
  $region4: #{tile.13} parent=0 // pred_region
    _
  $region5: #{tile.13} parent=0 // pred_fallthru
    _
  %v4 = vld [vmem:[%s0] ss:$0 sm:$0xff]
  %5 = vst [vmem:[%s1] sm:$0xff] %v4
  %s6 = scalar_lea.vmem %s1, 8
  %7 = vst [vmem:[%s6] sm:$0xff] %v4

// kernel: tile.14
$region0: #{tile.14}
  %s0 = inlined_call_operand.vmem [shape: f32[16,8], index: 0, kind: input, shape index: {}]
  %s1 = inlined_call_operand.vmem [shape: f32[1,128], index: 1, kind: output, shape index: {}]
  $region1: #{tile.14} parent=0
    #allocation0 [shape = 'u8[4096]{0}', space=vmem, size = 0x1000, scoped, tag = 'scoped mem for output reshape']
    %v2 = vld [vmem:[%s0] sm:$0x1]
    %vm3 = vcmask 64512
    %4 = vst.msk [vmem:[#allocation0] sm:$0x1] %vm3, %v2
    %s5 = scalar_lea.vmem %s0, 15
    %v6 = vld [vmem:[%s5] sm:$0x1]
    %7 = vrot.lane.b32.xlu0 %v6, 120
    %v8 = vpop.permute.xlu0 %7
    %vm9 = vcmask 1048512
    %10 = vst.msk [vmem:[#allocation0] sm:$0x1] %vm9, %v8
    %s11 = scalar_lea.vmem %s0, 14
    %v12 = vld [vmem:[%s11] sm:$0x1]
    %13 = vrot.lane.b32.xlu0 %v12, 112
    %v14 = vpop.permute.xlu0 %13
    %vm15 = vcmask 982912
    %16 = vst.msk [vmem:[#allocation0] sm:$0x1] %vm15, %v14
    %s17 = scalar_lea.vmem %s0, 13
    %v18 = vld [vmem:[%s17] sm:$0x1]
    %19 = vrot.lane.b32.xlu0 %v18, 104
    %v20 = vpop.permute.xlu0 %19
    %vm21 = vcmask 917312
    %22 = vst.msk [vmem:[#allocation0] sm:$0x1] %vm21, %v20
    %s23 = scalar_lea.vmem %s0, 12
    %v24 = vld [vmem:[%s23] sm:$0x1]
    %25 = vrot.lane.b32.xlu0 %v24, 96
    %v26 = vpop.permute.xlu0 %25
    %vm27 = vcmask 851712
    %28 = vst.msk [vmem:[#allocation0] sm:$0x1] %vm27, %v26
    %s29 = scalar_lea.vmem %s0, 11
    %v30 = vld [vmem:[%s29] sm:$0x1]
    %31 = vrot.lane.b32.xlu0 %v30, 88
    %v32 = vpop.permute.xlu0 %31
    %vm33 = vcmask 786112
    %34 = vst.msk [vmem:[#allocation0] sm:$0x1] %vm33, %v32
    %s35 = scalar_lea.vmem %s0, 10
    %v36 = vld [vmem:[%s35] sm:$0x1]
    %37 = vrot.lane.b32.xlu0 %v36, 80
    %v38 = vpop.permute.xlu0 %37
    %vm39 = vcmask 720512
    %40 = vst.msk [vmem:[#allocation0] sm:$0x1] %vm39, %v38
    %s41 = scalar_lea.vmem %s0, 9
    %v42 = vld [vmem:[%s41] sm:$0x1]
    %43 = vrot.lane.b32.xlu0 %v42, 72
    %v44 = vpop.permute.xlu0 %43
    %vm45 = vcmask 654912
    %46 = vst.msk [vmem:[#allocation0] sm:$0x1] %vm45, %v44
    %s47 = scalar_lea.vmem %s0, 8
    %v48 = vld [vmem:[%s47] sm:$0x1]
    %49 = vrot.lane.b32.xlu0 %v48, 64
    %v50 = vpop.permute.xlu0 %49
    %vm51 = vcmask 589312
    %52 = vst.msk [vmem:[#allocation0] sm:$0x1] %vm51, %v50
    %s53 = scalar_lea.vmem %s0, 7
    %v54 = vld [vmem:[%s53] sm:$0x1]
    %55 = vrot.lane.b32.xlu0 %v54, 56
    %v56 = vpop.permute.xlu0 %55
    %vm57 = vcmask 523712
    %58 = vst.msk [vmem:[#allocation0] sm:$0x1] %vm57, %v56
    %s59 = scalar_lea.vmem %s0, 6
    %v60 = vld [vmem:[%s59] sm:$0x1]
    %61 = vrot.lane.b32.xlu0 %v60, 48
    %v62 = vpop.permute.xlu0 %61
    %vm63 = vcmask 458112
    %64 = vst.msk [vmem:[#allocation0] sm:$0x1] %vm63, %v62
    %s65 = scalar_lea.vmem %s0, 5
    %v66 = vld [vmem:[%s65] sm:$0x1]
    %67 = vrot.lane.b32.xlu0 %v66, 40
    %v68 = vpop.permute.xlu0 %67
    %vm69 = vcmask 392512
    %70 = vst.msk [vmem:[#allocation0] sm:$0x1] %vm69, %v68
    %s71 = scalar_lea.vmem %s0, 4
    %v72 = vld [vmem:[%s71] sm:$0x1]
    %73 = vrot.lane.b32.xlu0 %v72, 32
    %v74 = vpop.permute.xlu0 %73
    %vm75 = vcmask 326912
    %76 = vst.msk [vmem:[#allocation0] sm:$0x1] %vm75, %v74
    %s77 = scalar_lea.vmem %s0, 3
    %v78 = vld [vmem:[%s77] sm:$0x1]
    %79 = vrot.lane.b32.xlu0 %v78, 24
    %v80 = vpop.permute.xlu0 %79
    %vm81 = vcmask 261312
    %82 = vst.msk [vmem:[#allocation0] sm:$0x1] %vm81, %v80
    %s83 = scalar_lea.vmem %s0, 2
    %v84 = vld [vmem:[%s83] sm:$0x1]
    %85 = vrot.lane.b32.xlu0 %v84, 16
    %v86 = vpop.permute.xlu0 %85
    %vm87 = vcmask 195712
    %88 = vst.msk [vmem:[#allocation0] sm:$0x1] %vm87, %v86
    %s89 = scalar_lea.vmem %s0, 1
    %v90 = vld [vmem:[%s89] sm:$0x1]
    %91 = vrot.lane.b32.xlu0 %v90, 8
    %v92 = vpop.permute.xlu0 %91
    %vm93 = vcmask 130112
    %94 = vst.msk [vmem:[#allocation0] sm:$0x1] %vm93, %v92
    %s96 = ssub.s32 2, 1
    %v97 = vld [vmem:[#allocation0] sm:%s96]
    %s99 = ssub.s32 2, 1
    %100 = vst [vmem:[%s1] sm:%s99] %v97

// kernel: residual_forward.1
$region0: #{residual_forward.1}
  #allocation0 [shape = 'u32[]', space=smem, size = 0x4, offset = 0x4, fixed_abs, tag = 'smem constant byte address 0x4 - core index']
  #allocation1 [shape = 'u32[72,128]{1,0:T(1,128)}', space=vmem, size = 0x9000, scoped, tag = 'internal scratch']
  #allocation2 [shape = 'f32[2,18,128]{2,1,0:T(8,128)}', space=vmem, size = 0x6000, scoped, tag = 'scratch operand']
  %s0 = inlined_call_operand.vmem [shape: f32[2,18,64], index: 0, kind: input, shape index: {}]
  %s1 = inlined_call_operand.vmem [shape: bf16[192,256], index: 1, kind: input, shape index: {}]
  %s2 = inlined_call_operand.vmem [shape: bf16[384,128], index: 2, kind: input, shape index: {}]
  %s3 = inlined_call_operand.vmem [shape: f32[1,8], index: 3, kind: input, shape index: {}]
  %s4 = inlined_call_operand.vmem [shape: f32[1,8], index: 4, kind: input, shape index: {}]
  %s5 = inlined_call_operand.vmem [shape: f32[1,8], index: 5, kind: input, shape index: {}]
  %s6 = inlined_call_operand.vmem [shape: f32[1,8], index: 6, kind: input, shape index: {}]
  %s7 = inlined_call_operand.vmem [shape: f32[1,128], index: 7, kind: input, shape index: {}]
  %s8 = inlined_call_operand.vmem [shape: f32[128,8], index: 8, kind: input, shape index: {}]
  %s9 = inlined_call_operand.vmem [shape: f32[8,128], index: 9, kind: input, shape index: {}]
  %s10 = inlined_call_operand.vmem [shape: f32[32,128], index: 10, kind: output, shape index: {}]
  %s11 = sld [smem:[#allocation0]]
  $region50: #{residual_forward.1} parent=0
    _
  %s13 = ssub.s32 1, %s11
  %s14 = scalar_select 0, %s13, %s11
  // Predicated region
  $region2: #{residual_forward.1} parent=0 // pred_check
    _
  $region3: #{residual_forward.1} parent=0 // pred_check_branch
    %16 = sbr.rel (0) target = $region5
  $region4: #{residual_forward.1} parent=0 // pred_region
    _
  $region5: #{residual_forward.1} parent=0 // pred_fallthru
    _
  // Predicated region
  $region6: #{residual_forward.1} parent=0 // pred_check
    _
  $region7: #{residual_forward.1} parent=0 // pred_check_branch
    %18 = sbr.rel (0) target = $region9
  $region8: #{residual_forward.1} parent=0 // pred_region
    _
  $region9: #{residual_forward.1} parent=0 // pred_fallthru
    _
  // Predicated region
  $region10: #{residual_forward.1} parent=0 // pred_check
    _
  $region11: #{residual_forward.1} parent=0 // pred_check_branch
    %20 = sbr.rel (0) target = $region13
  $region12: #{residual_forward.1} parent=0 // pred_region
    _
  $region13: #{residual_forward.1} parent=0 // pred_fallthru
    _
  // Predicated region
  $region14: #{residual_forward.1} parent=0 // pred_check
    _
  $region15: #{residual_forward.1} parent=0 // pred_check_branch
    %22 = sbr.rel (0) target = $region17
  $region16: #{residual_forward.1} parent=0 // pred_region
    _
  $region17: #{residual_forward.1} parent=0 // pred_fallthru
    _
  // Predicated region
  $region18: #{residual_forward.1} parent=0 // pred_check
    _
  $region19: #{residual_forward.1} parent=0 // pred_check_branch
    %24 = sbr.rel (0) target = $region21
  $region20: #{residual_forward.1} parent=0 // pred_region
    _
  $region21: #{residual_forward.1} parent=0 // pred_fallthru
    _
  // Predicated region
  $region22: #{residual_forward.1} parent=0 // pred_check
    _
  $region23: #{residual_forward.1} parent=0 // pred_check_branch
    %26 = sbr.rel (0) target = $region25
  $region24: #{residual_forward.1} parent=0 // pred_region
    _
  $region25: #{residual_forward.1} parent=0 // pred_fallthru
    _
  // Predicated region
  $region26: #{residual_forward.1} parent=0 // pred_check
    _
  $region27: #{residual_forward.1} parent=0 // pred_check_branch
    %28 = sbr.rel (0) target = $region29
  $region28: #{residual_forward.1} parent=0 // pred_region
    _
  $region29: #{residual_forward.1} parent=0 // pred_fallthru
    _
  // Predicated region
  $region30: #{residual_forward.1} parent=0 // pred_check
    _
  $region31: #{residual_forward.1} parent=0 // pred_check_branch
    %30 = sbr.rel (0) target = $region33
  $region32: #{residual_forward.1} parent=0 // pred_region
    _
  $region33: #{residual_forward.1} parent=0 // pred_fallthru
    _
  // Predicated region
  $region34: #{residual_forward.1} parent=0 // pred_check
    _
  $region35: #{residual_forward.1} parent=0 // pred_check_branch
    %32 = sbr.rel (0) target = $region37
  $region36: #{residual_forward.1} parent=0 // pred_region
    _
  $region37: #{residual_forward.1} parent=0 // pred_fallthru
    _
  // Predicated region
  $region38: #{residual_forward.1} parent=0 // pred_check
    _
  $region39: #{residual_forward.1} parent=0 // pred_check_branch
    %34 = sbr.rel (0) target = $region41
  $region40: #{residual_forward.1} parent=0 // pred_region
    _
  $region41: #{residual_forward.1} parent=0 // pred_fallthru
    _
  %v36 = vld [vmem:[%s0] sm:$0xff]
  %v37 = vld [vmem:[%s0 + $0x8] sm:$0xff]
  %v38 = vld [vmem:[%s0 + $0x18] sm:$0xff]
  %v39 = vld [vmem:[%s0 + $0x20] sm:$0xff]
  %v40 = vld [vmem:[%s0 + $0x1] sm:$0xff]
  %v41 = vld [vmem:[%s0 + $0x9] sm:$0xff]
  %v42 = vld [vmem:[%s0 + $0x19] sm:$0xff]
  %v43 = vld [vmem:[%s0 + $0x21] sm:$0xff]
  %v44 = vld [vmem:[%s0 + $0x2] sm:$0xff]
  %v45 = vld [vmem:[%s0 + $0xa] sm:$0xff]
  %v46 = vld [vmem:[%s0 + $0x1a] sm:$0xff]
  %v47 = vld [vmem:[%s0 + $0x22] sm:$0xff]
  %52 = vrot.lane.b32.xlu0 %v40, 64
  %v53 = vpop.permute.xlu0 %52
  %54 = vrot.lane.b32.xlu0 %v41, 64
  %v55 = vpop.permute.xlu0 %54
  %56 = vrot.lane.b32.xlu0 %v42, 64
  %v57 = vpop.permute.xlu0 %56
  %58 = vrot.lane.b32.xlu0 %v43, 64
  %v59 = vpop.permute.xlu0 %58
  %vm64 = vcmask 523264
  %v65 = vsel %vm64, %v36, %v53
  %v66 = vsel %vm64, %v37, %v55
  %v67 = vsel %vm64, %v38, %v57
  %v68 = vsel %vm64, %v39, %v59
  %v69 = vpack.c.bf16 %v66, %v65
  %v70 = vpack.c.bf16 %v45, %v44
  %v71 = vpack.c.bf16 %v68, %v67
  %v72 = vpack.c.bf16 %v47, %v46
  %v73 = vld [vmem:[%s1] sm:$0xff]
  %v74 = vld [vmem:[%s1 + $0x8] sm:$0xff]
  %v75 = vld [vmem:[%s1 + $0x10] sm:$0xff]
  %v76 = vld [vmem:[%s1 + $0x18] sm:$0xff]
  %v77 = vld [vmem:[%s1 + $0x20] sm:$0xff]
  %v78 = vld [vmem:[%s1 + $0x28] sm:$0xff]
  %v79 = vld [vmem:[%s1 + $0x30] sm:$0xff]
  %v80 = vld [vmem:[%s1 + $0x38] sm:$0xff]
  %v81 = vld [vmem:[%s1 + $0x40] sm:$0xff]
  %v82 = vld [vmem:[%s1 + $0x48] sm:$0xff]
  %v83 = vld [vmem:[%s1 + $0x50] sm:$0xff]
  %v84 = vld [vmem:[%s1 + $0x58] sm:$0xff]
  %v85 = vld [vmem:[%s1 + $0x60] sm:$0xff]
  %v86 = vld [vmem:[%s1 + $0x68] sm:$0xff]
  %v87 = vld [vmem:[%s1 + $0x70] sm:$0xff]
  %v88 = vld [vmem:[%s1 + $0x78] sm:$0xff]
  %v89 = vld [vmem:[%s1 + $0x80] sm:$0xff]
  %v90 = vld [vmem:[%s1 + $0x88] sm:$0xff]
  %v91 = vld [vmem:[%s1 + $0x90] sm:$0xff]
  %v92 = vld [vmem:[%s1 + $0x98] sm:$0xff]
  %v93 = vld [vmem:[%s1 + $0xa0] sm:$0xff]
  %v94 = vld [vmem:[%s1 + $0xa8] sm:$0xff]
  %v95 = vld [vmem:[%s1 + $0xb0] sm:$0xff]
  %v96 = vld [vmem:[%s1 + $0xb8] sm:$0xff]
  %v121 = vunpack.c.l.b16 %v73
  %v122 = vunpack.c.h.b16 %v73
  %v123 = vunpack.c.l.b16 %v74
  %v124 = vunpack.c.h.b16 %v74
  %v125 = vunpack.c.l.b16 %v75
  %v126 = vunpack.c.h.b16 %v75
  %v127 = vunpack.c.l.b16 %v76
  %v128 = vunpack.c.h.b16 %v76
  %v129 = vunpack.c.l.b16 %v77
  %v130 = vunpack.c.h.b16 %v77
  %v131 = vunpack.c.l.b16 %v78
  %v132 = vunpack.c.h.b16 %v78
  %v133 = vunpack.c.l.b16 %v79
  %v134 = vunpack.c.h.b16 %v79
  %v135 = vunpack.c.l.b16 %v80
  %v136 = vunpack.c.h.b16 %v80
  %v137 = vunpack.c.l.b16 %v81
  %v138 = vunpack.c.h.b16 %v81
  %v139 = vunpack.c.l.b16 %v82
  %v140 = vunpack.c.h.b16 %v82
  %v141 = vunpack.c.l.b16 %v83
  %v142 = vunpack.c.h.b16 %v83
  %v143 = vunpack.c.l.b16 %v84
  %v144 = vunpack.c.h.b16 %v84
  %v145 = vunpack.c.l.b16 %v85
  %v146 = vunpack.c.h.b16 %v85
  %v147 = vunpack.c.l.b16 %v86
  %v148 = vunpack.c.h.b16 %v86
  %v149 = vunpack.c.l.b16 %v87
  %v150 = vunpack.c.h.b16 %v87
  %v151 = vunpack.c.l.b16 %v88
  %v152 = vunpack.c.h.b16 %v88
  %v153 = vunpack.c.l.b16 %v89
  %v154 = vunpack.c.h.b16 %v89
  %v155 = vunpack.c.l.b16 %v90
  %v156 = vunpack.c.h.b16 %v90
  %v157 = vunpack.c.l.b16 %v91
  %v158 = vunpack.c.h.b16 %v91
  %v159 = vunpack.c.l.b16 %v92
  %v160 = vunpack.c.h.b16 %v92
  %v161 = vunpack.c.l.b16 %v93
  %v162 = vunpack.c.h.b16 %v93
  %v163 = vunpack.c.l.b16 %v94
  %v164 = vunpack.c.h.b16 %v94
  %v165 = vunpack.c.l.b16 %v95
  %v166 = vunpack.c.h.b16 %v95
  %v167 = vunpack.c.l.b16 %v96
  %v168 = vunpack.c.h.b16 %v96
  %v169 = vpack.c.b16 %v123, %v121
  %v170 = vpack.c.b16 %v124, %v122
  %v171 = vpack.c.b16 %v127, %v125
  %v172 = vpack.c.b16 %v128, %v126
  %v173 = vpack.c.b16 %v131, %v129
  %v174 = vpack.c.b16 %v132, %v130
  %v175 = vpack.c.b16 %v135, %v133
  %v176 = vpack.c.b16 %v136, %v134
  %v177 = vpack.c.b16 %v139, %v137
  %v178 = vpack.c.b16 %v140, %v138
  %v179 = vpack.c.b16 %v143, %v141
  %v180 = vpack.c.b16 %v144, %v142
  %v181 = vpack.c.b16 %v147, %v145
  %v182 = vpack.c.b16 %v148, %v146
  %v183 = vpack.c.b16 %v151, %v149
  %v184 = vpack.c.b16 %v152, %v150
  %v185 = vpack.c.b16 %v155, %v153
  %v186 = vpack.c.b16 %v156, %v154
  %v187 = vpack.c.b16 %v159, %v157
  %v188 = vpack.c.b16 %v160, %v158
  %v189 = vpack.c.b16 %v163, %v161
  %v190 = vpack.c.b16 %v164, %v162
  %v191 = vpack.c.b16 %v167, %v165
  %v192 = vpack.c.b16 %v168, %v166
  %v218 = vsel %vm64, %v70, 0
  %v221 = vsel %vm64, %v72, 0
  %223 = vmatpush.bf16.msra.mxu0 %v183
  %224 = vmatpush.bf16.msra.mxu0 %v181
  %225 = vmatpush.bf16.msra.mxu0 %v179
  %226 = vmatpush.bf16.msra.mxu0 %v177
  %227 = vmatpush.bf16.msra.mxu0 %v175
  %228 = vmatpush.bf16.msra.mxu0 %v173
  %229 = vmatpush.bf16.msra.mxu0 %v171
  %230 = vmatpush.bf16.msra.mxu0 %v169
  %231 = vmatmul.bf16.gmra.mxu0 %v69
  %v232 = vpop.f32.mrf.mxu0
  %v233 = vadd.f32 0.0, %v232
  %v234 = vpop.f32.mrf.mxu0
  %v235 = vadd.f32 0.0, %v234
  %236 = vmatmul.bf16.gmra.mxu0 %v71
  %v237 = vpop.f32.mrf.mxu0
  %v238 = vadd.f32 0.0, %v237
  %v239 = vpop.f32.mrf.mxu0
  %v240 = vadd.f32 0.0, %v239
  %241 = vdwg.mxu0
  %242 = vmatpush.bf16.msra.mxu0 0
  %243 = vmatpush.bf16.msra.mxu0 0
  %244 = vmatpush.bf16.msra.mxu0 0
  %245 = vmatpush.bf16.msra.mxu0 0
  %246 = vmatpush.bf16.msra.mxu0 %v191
  %247 = vmatpush.bf16.msra.mxu0 %v189
  %248 = vmatpush.bf16.msra.mxu0 %v187
  %249 = vmatpush.bf16.msra.mxu0 %v185
  %250 = vmatmul.bf16.gmra.mxu0 %v218
  %v251 = vpop.f32.mrf.mxu0
  %v252 = vadd.f32 %v233, %v251
  %v253 = vpop.f32.mrf.mxu0
  %v254 = vadd.f32 %v235, %v253
  %255 = vmatmul.bf16.gmra.mxu0 %v221
  %v256 = vpop.f32.mrf.mxu0
  %v257 = vadd.f32 %v238, %v256
  %v258 = vpop.f32.mrf.mxu0
  %v259 = vadd.f32 %v240, %v258
  %260 = vdwg.mxu0
  %261 = vmatpush.bf16.msra.mxu0 %v184
  %262 = vmatpush.bf16.msra.mxu0 %v182
  %263 = vmatpush.bf16.msra.mxu0 %v180
  %264 = vmatpush.bf16.msra.mxu0 %v178
  %265 = vmatpush.bf16.msra.mxu0 %v176
  %266 = vmatpush.bf16.msra.mxu0 %v174
  %267 = vmatpush.bf16.msra.mxu0 %v172
  %268 = vmatpush.bf16.msra.mxu0 %v170
  %269 = vmatmul.bf16.gmra.mxu0 %v69
  %v270 = vpop.f32.mrf.mxu0
  %v271 = vadd.f32 0.0, %v270
  %v272 = vpop.f32.mrf.mxu0
  %v273 = vadd.f32 0.0, %v272
  %274 = vmatmul.bf16.gmra.mxu0 %v71
  %v275 = vpop.f32.mrf.mxu0
  %v276 = vadd.f32 0.0, %v275
  %v277 = vpop.f32.mrf.mxu0
  %v278 = vadd.f32 0.0, %v277
  %279 = vdwg.mxu0
  %280 = vmatpush.bf16.msra.mxu0 0
  %281 = vmatpush.bf16.msra.mxu0 0
  %282 = vmatpush.bf16.msra.mxu0 0
  %283 = vmatpush.bf16.msra.mxu0 0
  %284 = vmatpush.bf16.msra.mxu0 %v192
  %285 = vmatpush.bf16.msra.mxu0 %v190
  %286 = vmatpush.bf16.msra.mxu0 %v188
  %287 = vmatpush.bf16.msra.mxu0 %v186
  %288 = vmatmul.bf16.gmra.mxu0 %v218
  %v289 = vpop.f32.mrf.mxu0
  %v290 = vadd.f32 %v271, %v289
  %v291 = vpop.f32.mrf.mxu0
  %v292 = vadd.f32 %v273, %v291
  %293 = vmatmul.bf16.gmra.mxu0 %v221
  %v294 = vpop.f32.mrf.mxu0
  %v295 = vadd.f32 %v276, %v294
  %v296 = vpop.f32.mrf.mxu0
  %v297 = vadd.f32 %v278, %v296
  %298 = vdwg.mxu0
  %v299 = vld [vmem:[%s7] sm:$0x1]
  %v301 = vperm.slane %v299, 0
  %v303 = vadd.f32 %v290, %v301
  %v304 = vadd.f32 %v292, %v301
  %v305 = vadd.f32 %v295, %v301
  %v306 = vadd.f32 %v297, %v301
  %v307 = vmul.f32 %v252, %v252
  %v308 = vmul.f32 %v254, %v254
  %v309 = vmul.f32 %v257, %v257
  %v310 = vmul.f32 %v259, %v259
  %v311 = vld [vmem:[%s8] sm:$0xff]
  %v312 = vld [vmem:[%s8 + $0x8] sm:$0xff]
  %v313 = vld [vmem:[%s8 + $0x10] sm:$0xff]
  %v314 = vld [vmem:[%s8 + $0x18] sm:$0xff]
  %v315 = vld [vmem:[%s8 + $0x20] sm:$0xff]
  %v316 = vld [vmem:[%s8 + $0x28] sm:$0xff]
  %v317 = vld [vmem:[%s8 + $0x30] sm:$0xff]
  %v318 = vld [vmem:[%s8 + $0x38] sm:$0xff]
  %v319 = vld [vmem:[%s8 + $0x40] sm:$0xff]
  %v320 = vld [vmem:[%s8 + $0x48] sm:$0xff]
  %v321 = vld [vmem:[%s8 + $0x50] sm:$0xff]
  %v322 = vld [vmem:[%s8 + $0x58] sm:$0xff]
  %v323 = vld [vmem:[%s8 + $0x60] sm:$0xff]
  %v324 = vld [vmem:[%s8 + $0x68] sm:$0xff]
  %v325 = vld [vmem:[%s8 + $0x70] sm:$0xff]
  %v326 = vld [vmem:[%s8 + $0x78] sm:$0xff]
  %327 = vmatpush.msra.mxu0 %v326
  %328 = vmatpush.msra.mxu0 %v325
  %329 = vmatpush.msra.mxu0 %v324
  %330 = vmatpush.msra.mxu0 %v323
  %331 = vmatpush.msra.mxu0 %v322
  %332 = vmatpush.msra.mxu0 %v321
  %333 = vmatpush.msra.mxu0 %v320
  %334 = vmatpush.msra.mxu0 %v319
  %335 = vmatpush.msra.mxu0 %v318
  %336 = vmatpush.msra.mxu0 %v317
  %337 = vmatpush.msra.mxu0 %v316
  %338 = vmatpush.msra.mxu0 %v315
  %339 = vmatpush.msra.mxu0 %v314
  %340 = vmatpush.msra.mxu0 %v313
  %341 = vmatpush.msra.mxu0 %v312
  %342 = vmatpush.msra.mxu0 %v311
  %343 = vmatmul.f32.gmra.mxu0 %v252
  %v344 = vpop.f32.mrf.mxu0
  %v345 = vadd.f32 0.0, %v344
  %346 = vmatmul.f32.gmra.mxu0 %v254
  %v347 = vpop.f32.mrf.mxu0
  %v348 = vadd.f32 0.0, %v347
  %349 = vmatmul.f32.gmra.mxu0 %v257
  %v350 = vpop.f32.mrf.mxu0
  %v351 = vadd.f32 0.0, %v350
  %352 = vmatmul.f32.gmra.mxu0 %v259
  %v353 = vpop.f32.mrf.mxu0
  %v354 = vadd.f32 0.0, %v353
  %355 = vmatmul.f32.gmra.mxu0 %v307
  %v356 = vpop.f32.mrf.mxu0
  %v357 = vadd.f32 0.0, %v356
  %358 = vmatmul.f32.gmra.mxu0 %v308
  %v359 = vpop.f32.mrf.mxu0
  %v360 = vadd.f32 0.0, %v359
  %361 = vmatmul.f32.gmra.mxu0 %v309
  %v362 = vpop.f32.mrf.mxu0
  %v363 = vadd.f32 0.0, %v362
  %364 = vmatmul.f32.gmra.mxu0 %v310
  %v365 = vpop.f32.mrf.mxu0
  %v366 = vadd.f32 0.0, %v365
  %367 = vdwg.mxu0
  %vm368 = vcmask 64512
  %v369 = vsel %vm368, %v345, 0.0
  %v370 = vsel %vm368, %v348, 0.0
  %v371 = vadd.f32 %v369, %v370
  %v372 = vsel %vm368, %v351, 0.0
  %v373 = vadd.f32 %v371, %v372
  %v374 = vsel %vm368, %v354, 0.0
  %v375 = vadd.f32 %v373, %v374
  %v376 = vrot.slane %v375, 4
  %v377 = vadd.f32 %v375, %v376
  %v378 = vrot.slane %v377, 2
  %v379 = vadd.f32 %v377, %v378
  %v380 = vrot.slane %v379, 1
  %v381 = vadd.f32 %v379, %v380
  %v382 = vmul.f32 %v381, 0.001953125
  %v383 = vsel %vm368, %v357, 0.0
  %v384 = vsel %vm368, %v360, 0.0
  %v385 = vadd.f32 %v383, %v384
  %v386 = vsel %vm368, %v363, 0.0
  %v387 = vadd.f32 %v385, %v386
  %v388 = vsel %vm368, %v366, 0.0
  %v389 = vadd.f32 %v387, %v388
  %v390 = vrot.slane %v389, 4
  %v391 = vadd.f32 %v389, %v390
  %v392 = vrot.slane %v391, 2
  %v393 = vadd.f32 %v391, %v392
  %v394 = vrot.slane %v393, 1
  %v395 = vadd.f32 %v393, %v394
  %v396 = vmul.f32 %v395, 0.001953125
  %v397 = vmul.f32 %v382, %v382
  %v398 = vsub.f32 %v396, %v397
  %v399 = vld [vmem:[%s3] sm:$0x1]
  %v400 = vadd.f32 %v398, 1e-05
  %v401 = vrsqrt.pop %v400
  %v402 = vmul.f32 %v401, %v400
  %v403 = vmul.f32 %v402, %v401
  %v404 = vmul.f32 0.5, %v403
  %v405 = vsub.f32 1.5, %v404
  %v406 = vmul.f32 %v401, %v405
  %vm407 = vweird.f32 %v400
  %vm408 = vweird.f32 %v401
  %vm409 = vmor %vm407, %vm408
  %v410 = vsel %vm409, %v401, %v406
  %v411 = vmul.f32 %v399, %v410
  %v412 = vld [vmem:[%s4] sm:$0x1]
  %v413 = vmul.f32 %v382, %v411
  %v414 = vsub.f32 %v412, %v413
  %v416 = vperm.slane %v414, 0
  %vm418 = vcmask 1040384
  %v419 = vsel %vm418, %v411, %v416
  %v420 = vld [vmem:[%s9] sm:$0xff]
  %v422 = vsel %vm368, %v419, 0
  %424 = vmatpush.msra.mxu0 0.0
  %425 = vmatpush.msra.mxu0 0.0
  %426 = vmatpush.msra.mxu0 0.0
  %427 = vmatpush.msra.mxu0 0.0
  %428 = vmatpush.msra.mxu0 0.0
  %429 = vmatpush.msra.mxu0 0.0
  %430 = vmatpush.msra.mxu0 0.0
  %431 = vmatpush.msra.mxu0 0.0
  %432 = vmatpush.msra.mxu0 0.0
  %433 = vmatpush.msra.mxu0 0.0
  %434 = vmatpush.msra.mxu0 0.0
  %435 = vmatpush.msra.mxu0 0.0
  %436 = vmatpush.msra.mxu0 0.0
  %437 = vmatpush.msra.mxu0 0.0
  %438 = vmatpush.msra.mxu0 0.0
  %439 = vmatpush.msra.mxu0 %v420
  %440 = vmatmul.f32.gmra.mxu0 %v422
  %v441 = vpop.f32.mrf.mxu0
  %v442 = vadd.f32 0.0, %v441
  %443 = vdwg.mxu0
  %v444 = vperm.slane %v442, 0
  %v445 = vmul.f32 %v252, %v444
  %v446 = vmul.f32 %v254, %v444
  %v447 = vmul.f32 %v257, %v444
  %v448 = vmul.f32 %v259, %v444
  %v449 = vperm.slane %v442, 1
  %v450 = vadd.f32 %v445, %v449
  %v451 = vadd.f32 %v446, %v449
  %v452 = vadd.f32 %v447, %v449
  %v453 = vadd.f32 %v448, %v449
  %v454 = vmax.f32 %v450, 0.0
  %v455 = vmax.f32 %v451, 0.0
  %v456 = vmax.f32 %v452, 0.0
  %v457 = vmax.f32 %v453, 0.0
  %458 = vst [vmem:[#allocation2] sm:$0x1] 0.0
  %459 = vst [vmem:[#allocation2 + $0x18] sm:$0x1] 0.0
  %460 = vst [vmem:[#allocation2 + $0x11] sm:$0x1] 0.0
  %461 = vst [vmem:[#allocation2 + $0x29] sm:$0x1] 0.0
  %462 = vst [vmem:[#allocation2 + $0x1] sm:$0xff] %v454
  %463 = vst [vmem:[#allocation2 + $0x9] sm:$0xff] %v455
  %464 = vst [vmem:[#allocation2 + $0x19] sm:$0xff] %v456
  %465 = vst [vmem:[#allocation2 + $0x21] sm:$0xff] %v457
  %v466 = vld [vmem:[#allocation2] sm:$0xff]
  %v467 = vld [vmem:[#allocation2 + $0x8] sm:$0xff]
  %v468 = vld [vmem:[#allocation2 + $0x18] sm:$0xff]
  %v469 = vld [vmem:[#allocation2 + $0x20] sm:$0xff]
  %v470 = vld [vmem:[#allocation2 + $0x1] sm:$0xff]
  %v471 = vld [vmem:[#allocation2 + $0x9] sm:$0xff]
  %v472 = vld [vmem:[#allocation2 + $0x19] sm:$0xff]
  %v473 = vld [vmem:[#allocation2 + $0x21] sm:$0xff]
  %v474 = vld [vmem:[#allocation2 + $0x2] sm:$0xff]
  %v475 = vld [vmem:[#allocation2 + $0xa] sm:$0xff]
  %v476 = vld [vmem:[#allocation2 + $0x1a] sm:$0xff]
  %v477 = vld [vmem:[#allocation2 + $0x22] sm:$0xff]
  %v478 = vpack.c.bf16 %v467, %v466
  %v479 = vpack.c.bf16 %v471, %v470
  %v480 = vpack.c.bf16 %v475, %v474
  %v481 = vpack.c.bf16 %v469, %v468
  %v482 = vpack.c.bf16 %v473, %v472
  %v483 = vpack.c.bf16 %v477, %v476
  %v484 = vld [vmem:[%s2] sm:$0xf]
  %v485 = vld [vmem:[%s2 + $0x4] sm:$0xf]
  %v486 = vld [vmem:[%s2 + $0x8] sm:$0xf]
  %v487 = vld [vmem:[%s2 + $0xc] sm:$0xf]
  %v488 = vld [vmem:[%s2 + $0x10] sm:$0xf]
  %v489 = vld [vmem:[%s2 + $0x14] sm:$0xf]
  %v490 = vld [vmem:[%s2 + $0x18] sm:$0xf]
  %v491 = vld [vmem:[%s2 + $0x1c] sm:$0xf]
  %v492 = vld [vmem:[%s2 + $0x20] sm:$0xf]
  %v493 = vld [vmem:[%s2 + $0x24] sm:$0xf]
  %v494 = vld [vmem:[%s2 + $0x28] sm:$0xf]
  %v495 = vld [vmem:[%s2 + $0x2c] sm:$0xf]
  %v496 = vld [vmem:[%s2 + $0x30] sm:$0xf]
  %v497 = vld [vmem:[%s2 + $0x34] sm:$0xf]
  %v498 = vld [vmem:[%s2 + $0x38] sm:$0xf]
  %v499 = vld [vmem:[%s2 + $0x3c] sm:$0xf]
  %v500 = vld [vmem:[%s2 + $0x40] sm:$0xf]
  %v501 = vld [vmem:[%s2 + $0x44] sm:$0xf]
  %v502 = vld [vmem:[%s2 + $0x48] sm:$0xf]
  %v503 = vld [vmem:[%s2 + $0x4c] sm:$0xf]
  %v504 = vld [vmem:[%s2 + $0x50] sm:$0xf]
  %v505 = vld [vmem:[%s2 + $0x54] sm:$0xf]
  %v506 = vld [vmem:[%s2 + $0x58] sm:$0xf]
  %v507 = vld [vmem:[%s2 + $0x5c] sm:$0xf]
  %v508 = vld [vmem:[%s2 + $0x60] sm:$0xf]
  %v509 = vld [vmem:[%s2 + $0x64] sm:$0xf]
  %v510 = vld [vmem:[%s2 + $0x68] sm:$0xf]
  %v511 = vld [vmem:[%s2 + $0x6c] sm:$0xf]
  %v512 = vld [vmem:[%s2 + $0x70] sm:$0xf]
  %v513 = vld [vmem:[%s2 + $0x74] sm:$0xf]
  %v514 = vld [vmem:[%s2 + $0x78] sm:$0xf]
  %v515 = vld [vmem:[%s2 + $0x7c] sm:$0xf]
  %v516 = vld [vmem:[%s2 + $0x80] sm:$0xf]
  %v517 = vld [vmem:[%s2 + $0x84] sm:$0xf]
  %v518 = vld [vmem:[%s2 + $0x88] sm:$0xf]
  %v519 = vld [vmem:[%s2 + $0x8c] sm:$0xf]
  %v520 = vld [vmem:[%s2 + $0x90] sm:$0xf]
  %v521 = vld [vmem:[%s2 + $0x94] sm:$0xf]
  %v522 = vld [vmem:[%s2 + $0x98] sm:$0xf]
  %v523 = vld [vmem:[%s2 + $0x9c] sm:$0xf]
  %v524 = vld [vmem:[%s2 + $0xa0] sm:$0xf]
  %v525 = vld [vmem:[%s2 + $0xa4] sm:$0xf]
  %v526 = vld [vmem:[%s2 + $0xa8] sm:$0xf]
  %v527 = vld [vmem:[%s2 + $0xac] sm:$0xf]
  %v528 = vld [vmem:[%s2 + $0xb0] sm:$0xf]
  %v529 = vld [vmem:[%s2 + $0xb4] sm:$0xf]
  %v530 = vld [vmem:[%s2 + $0xb8] sm:$0xf]
  %v531 = vld [vmem:[%s2 + $0xbc] sm:$0xf]
  %v580 = vunpack.c.l.b16 %v484
  %v581 = vunpack.c.l.b16 %v485
  %v582 = vunpack.c.l.b16 %v486
  %v583 = vunpack.c.l.b16 %v487
  %v584 = vunpack.c.l.b16 %v488
  %v585 = vunpack.c.l.b16 %v489
  %v586 = vunpack.c.l.b16 %v490
  %v587 = vunpack.c.l.b16 %v491
  %v588 = vunpack.c.l.b16 %v492
  %v589 = vunpack.c.l.b16 %v493
  %v590 = vunpack.c.l.b16 %v494
  %v591 = vunpack.c.l.b16 %v495
  %v592 = vunpack.c.l.b16 %v496
  %v593 = vunpack.c.l.b16 %v497
  %v594 = vunpack.c.l.b16 %v498
  %v595 = vunpack.c.l.b16 %v499
  %v596 = vunpack.c.l.b16 %v500
  %v597 = vunpack.c.l.b16 %v501
  %v598 = vunpack.c.l.b16 %v502
  %v599 = vunpack.c.l.b16 %v503
  %v600 = vunpack.c.l.b16 %v504
  %v601 = vunpack.c.l.b16 %v505
  %v602 = vunpack.c.l.b16 %v506
  %v603 = vunpack.c.l.b16 %v507
  %v604 = vunpack.c.l.b16 %v508
  %v605 = vunpack.c.l.b16 %v509
  %v606 = vunpack.c.l.b16 %v510
  %v607 = vunpack.c.l.b16 %v511
  %v608 = vunpack.c.l.b16 %v512
  %v609 = vunpack.c.l.b16 %v513
  %v610 = vunpack.c.l.b16 %v514
  %v611 = vunpack.c.l.b16 %v515
  %v612 = vunpack.c.l.b16 %v516
  %v613 = vunpack.c.l.b16 %v517
  %v614 = vunpack.c.l.b16 %v518
  %v615 = vunpack.c.l.b16 %v519
  %v616 = vunpack.c.l.b16 %v520
  %v617 = vunpack.c.l.b16 %v521
  %v618 = vunpack.c.l.b16 %v522
  %v619 = vunpack.c.l.b16 %v523
  %v620 = vunpack.c.l.b16 %v524
  %v621 = vunpack.c.l.b16 %v525
  %v622 = vunpack.c.l.b16 %v526
  %v623 = vunpack.c.l.b16 %v527
  %v624 = vunpack.c.l.b16 %v528
  %v625 = vunpack.c.l.b16 %v529
  %v626 = vunpack.c.l.b16 %v530
  %v627 = vunpack.c.l.b16 %v531
  %v628 = vpack.c.b16 %v581, %v580
  %v629 = vpack.c.b16 %v583, %v582
  %v630 = vpack.c.b16 %v585, %v584
  %v631 = vpack.c.b16 %v587, %v586
  %v632 = vpack.c.b16 %v589, %v588
  %v633 = vpack.c.b16 %v591, %v590
  %v634 = vpack.c.b16 %v593, %v592
  %v635 = vpack.c.b16 %v595, %v594
  %v636 = vpack.c.b16 %v597, %v596
  %v637 = vpack.c.b16 %v599, %v598
  %v638 = vpack.c.b16 %v601, %v600
  %v639 = vpack.c.b16 %v603, %v602
  %v640 = vpack.c.b16 %v605, %v604
  %v641 = vpack.c.b16 %v607, %v606
  %v642 = vpack.c.b16 %v609, %v608
  %v643 = vpack.c.b16 %v611, %v610
  %v644 = vpack.c.b16 %v613, %v612
  %v645 = vpack.c.b16 %v615, %v614
  %v646 = vpack.c.b16 %v617, %v616
  %v647 = vpack.c.b16 %v619, %v618
  %v648 = vpack.c.b16 %v621, %v620
  %v649 = vpack.c.b16 %v623, %v622
  %v650 = vpack.c.b16 %v625, %v624
  %v651 = vpack.c.b16 %v627, %v626
  %676 = vmatpush.bf16.msra.mxu0 %v635
  %677 = vmatpush.bf16.msra.mxu0 %v634
  %678 = vmatpush.bf16.msra.mxu0 %v633
  %679 = vmatpush.bf16.msra.mxu0 %v632
  %680 = vmatpush.bf16.msra.mxu0 %v631
  %681 = vmatpush.bf16.msra.mxu0 %v630
  %682 = vmatpush.bf16.msra.mxu0 %v629
  %683 = vmatpush.bf16.msra.mxu0 %v628
  %684 = vmatmul.bf16.gmra.mxu0 %v478
  %v685 = vpop.f32.mrf.mxu0
  %v686 = vadd.f32 0.0, %v685
  %v687 = vpop.f32.mrf.mxu0
  %v688 = vadd.f32 0.0, %v687
  %689 = vmatmul.bf16.gmra.mxu0 %v481
  %v690 = vpop.f32.mrf.mxu0
  %v691 = vadd.f32 0.0, %v690
  %v692 = vpop.f32.mrf.mxu0
  %v693 = vadd.f32 0.0, %v692
  %694 = vdwg.mxu0
  %695 = vmatpush.bf16.msra.mxu0 %v643
  %696 = vmatpush.bf16.msra.mxu0 %v642
  %697 = vmatpush.bf16.msra.mxu0 %v641
  %698 = vmatpush.bf16.msra.mxu0 %v640
  %699 = vmatpush.bf16.msra.mxu0 %v639
  %700 = vmatpush.bf16.msra.mxu0 %v638
  %701 = vmatpush.bf16.msra.mxu0 %v637
  %702 = vmatpush.bf16.msra.mxu0 %v636
  %703 = vmatmul.bf16.gmra.mxu0 %v479
  %v704 = vpop.f32.mrf.mxu0
  %v705 = vadd.f32 %v686, %v704
  %v706 = vpop.f32.mrf.mxu0
  %v707 = vadd.f32 %v688, %v706
  %708 = vmatmul.bf16.gmra.mxu0 %v482
  %v709 = vpop.f32.mrf.mxu0
  %v710 = vadd.f32 %v691, %v709
  %v711 = vpop.f32.mrf.mxu0
  %v712 = vadd.f32 %v693, %v711
  %713 = vdwg.mxu0
  %714 = vmatpush.bf16.msra.mxu0 %v651
  %715 = vmatpush.bf16.msra.mxu0 %v650
  %716 = vmatpush.bf16.msra.mxu0 %v649
  %717 = vmatpush.bf16.msra.mxu0 %v648
  %718 = vmatpush.bf16.msra.mxu0 %v647
  %719 = vmatpush.bf16.msra.mxu0 %v646
  %720 = vmatpush.bf16.msra.mxu0 %v645
  %721 = vmatpush.bf16.msra.mxu0 %v644
  %722 = vmatmul.bf16.gmra.mxu0 %v480
  %v723 = vpop.f32.mrf.mxu0
  %v724 = vadd.f32 %v705, %v723
  %v725 = vpop.f32.mrf.mxu0
  %v726 = vadd.f32 %v707, %v725
  %727 = vmatmul.bf16.gmra.mxu0 %v483
  %v728 = vpop.f32.mrf.mxu0
  %v729 = vadd.f32 %v710, %v728
  %v730 = vpop.f32.mrf.mxu0
  %v731 = vadd.f32 %v712, %v730
  %732 = vdwg.mxu0
  %v733 = vmul.f32 %v724, %v724
  %v734 = vmul.f32 %v726, %v726
  %v735 = vmul.f32 %v729, %v729
  %v736 = vmul.f32 %v731, %v731
  %v737 = vld [vmem:[%s8] sm:$0xff]
  %v738 = vld [vmem:[%s8 + $0x8] sm:$0xff]
  %v739 = vld [vmem:[%s8 + $0x10] sm:$0xff]
  %v740 = vld [vmem:[%s8 + $0x18] sm:$0xff]
  %v741 = vld [vmem:[%s8 + $0x20] sm:$0xff]
  %v742 = vld [vmem:[%s8 + $0x28] sm:$0xff]
  %v743 = vld [vmem:[%s8 + $0x30] sm:$0xff]
  %v744 = vld [vmem:[%s8 + $0x38] sm:$0xff]
  %v745 = vld [vmem:[%s8 + $0x40] sm:$0xff]
  %v746 = vld [vmem:[%s8 + $0x48] sm:$0xff]
  %v747 = vld [vmem:[%s8 + $0x50] sm:$0xff]
  %v748 = vld [vmem:[%s8 + $0x58] sm:$0xff]
  %v749 = vld [vmem:[%s8 + $0x60] sm:$0xff]
  %v750 = vld [vmem:[%s8 + $0x68] sm:$0xff]
  %v751 = vld [vmem:[%s8 + $0x70] sm:$0xff]
  %v752 = vld [vmem:[%s8 + $0x78] sm:$0xff]
  %753 = vmatpush.msra.mxu0 %v752
  %754 = vmatpush.msra.mxu0 %v751
  %755 = vmatpush.msra.mxu0 %v750
  %756 = vmatpush.msra.mxu0 %v749
  %757 = vmatpush.msra.mxu0 %v748
  %758 = vmatpush.msra.mxu0 %v747
  %759 = vmatpush.msra.mxu0 %v746
  %760 = vmatpush.msra.mxu0 %v745
  %761 = vmatpush.msra.mxu0 %v744
  %762 = vmatpush.msra.mxu0 %v743
  %763 = vmatpush.msra.mxu0 %v742
  %764 = vmatpush.msra.mxu0 %v741
  %765 = vmatpush.msra.mxu0 %v740
  %766 = vmatpush.msra.mxu0 %v739
  %767 = vmatpush.msra.mxu0 %v738
  %768 = vmatpush.msra.mxu0 %v737
  %769 = vmatmul.f32.gmra.mxu0 %v724
  %v770 = vpop.f32.mrf.mxu0
  %v771 = vadd.f32 0.0, %v770
  %772 = vmatmul.f32.gmra.mxu0 %v726
  %v773 = vpop.f32.mrf.mxu0
  %v774 = vadd.f32 0.0, %v773
  %775 = vmatmul.f32.gmra.mxu0 %v729
  %v776 = vpop.f32.mrf.mxu0
  %v777 = vadd.f32 0.0, %v776
  %778 = vmatmul.f32.gmra.mxu0 %v731
  %v779 = vpop.f32.mrf.mxu0
  %v780 = vadd.f32 0.0, %v779
  %781 = vmatmul.f32.gmra.mxu0 %v733
  %v782 = vpop.f32.mrf.mxu0
  %v783 = vadd.f32 0.0, %v782
  %784 = vmatmul.f32.gmra.mxu0 %v734
  %v785 = vpop.f32.mrf.mxu0
  %v786 = vadd.f32 0.0, %v785
  %787 = vmatmul.f32.gmra.mxu0 %v735
  %v788 = vpop.f32.mrf.mxu0
  %v789 = vadd.f32 0.0, %v788
  %790 = vmatmul.f32.gmra.mxu0 %v736
  %v791 = vpop.f32.mrf.mxu0
  %v792 = vadd.f32 0.0, %v791
  %793 = vdwg.mxu0
  %v794 = vsel %vm368, %v771, 0.0
  %v795 = vsel %vm368, %v774, 0.0
  %v796 = vadd.f32 %v794, %v795
  %v797 = vsel %vm368, %v777, 0.0
  %v798 = vadd.f32 %v796, %v797
  %v799 = vsel %vm368, %v780, 0.0
  %v800 = vadd.f32 %v798, %v799
  %v801 = vrot.slane %v800, 4
  %v802 = vadd.f32 %v800, %v801
  %v803 = vrot.slane %v802, 2
  %v804 = vadd.f32 %v802, %v803
  %v805 = vrot.slane %v804, 1
  %v806 = vadd.f32 %v804, %v805
  %v807 = vmul.f32 %v806, 0.001953125
  %v808 = vsel %vm368, %v783, 0.0
  %v809 = vsel %vm368, %v786, 0.0
  %v810 = vadd.f32 %v808, %v809
  %v811 = vsel %vm368, %v789, 0.0
  %v812 = vadd.f32 %v810, %v811
  %v813 = vsel %vm368, %v792, 0.0
  %v814 = vadd.f32 %v812, %v813
  %v815 = vrot.slane %v814, 4
  %v816 = vadd.f32 %v814, %v815
  %v817 = vrot.slane %v816, 2
  %v818 = vadd.f32 %v816, %v817
  %v819 = vrot.slane %v818, 1
  %v820 = vadd.f32 %v818, %v819
  %v821 = vmul.f32 %v820, 0.001953125
  %v822 = vmul.f32 %v807, %v807
  %v823 = vsub.f32 %v821, %v822
  %v824 = vld [vmem:[%s5] sm:$0x1]
  %v825 = vadd.f32 %v823, 1e-05
  %v826 = vrsqrt.pop %v825
  %v827 = vmul.f32 %v826, %v825
  %v828 = vmul.f32 %v827, %v826
  %v829 = vmul.f32 0.5, %v828
  %v830 = vsub.f32 1.5, %v829
  %v831 = vmul.f32 %v826, %v830
  %vm832 = vweird.f32 %v825
  %vm833 = vweird.f32 %v826
  %vm834 = vmor %vm832, %vm833
  %v835 = vsel %vm834, %v826, %v831
  %v836 = vmul.f32 %v824, %v835
  %v837 = vld [vmem:[%s6] sm:$0x1]
  %v838 = vmul.f32 %v807, %v836
  %v839 = vsub.f32 %v837, %v838
  %v841 = vperm.slane %v839, 0
  %v843 = vsel %vm418, %v836, %v841
  %v844 = vld [vmem:[%s9] sm:$0xff]
  %v846 = vsel %vm368, %v843, 0
  %848 = vmatpush.msra.mxu0 0.0
  %849 = vmatpush.msra.mxu0 0.0
  %850 = vmatpush.msra.mxu0 0.0
  %851 = vmatpush.msra.mxu0 0.0
  %852 = vmatpush.msra.mxu0 0.0
  %853 = vmatpush.msra.mxu0 0.0
  %854 = vmatpush.msra.mxu0 0.0
  %855 = vmatpush.msra.mxu0 0.0
  %856 = vmatpush.msra.mxu0 0.0
  %857 = vmatpush.msra.mxu0 0.0
  %858 = vmatpush.msra.mxu0 0.0
  %859 = vmatpush.msra.mxu0 0.0
  %860 = vmatpush.msra.mxu0 0.0
  %861 = vmatpush.msra.mxu0 0.0
  %862 = vmatpush.msra.mxu0 0.0
  %863 = vmatpush.msra.mxu0 %v844
  %864 = vmatmul.f32.gmra.mxu0 %v846
  %v865 = vpop.f32.mrf.mxu0
  %v866 = vadd.f32 0.0, %v865
  %867 = vdwg.mxu0
  %v868 = vperm.slane %v866, 0
  %v869 = vmul.f32 %v724, %v868
  %v870 = vmul.f32 %v726, %v868
  %v871 = vmul.f32 %v729, %v868
  %v872 = vmul.f32 %v731, %v868
  %v873 = vperm.slane %v866, 1
  %v874 = vadd.f32 %v869, %v873
  %v875 = vadd.f32 %v870, %v873
  %v876 = vadd.f32 %v871, %v873
  %v877 = vadd.f32 %v872, %v873
  %v878 = vadd.f32 %v874, %v303
  %v879 = vadd.f32 %v875, %v304
  %v880 = vadd.f32 %v876, %v305
  %v881 = vadd.f32 %v877, %v306
  %v882 = vmax.f32 %v878, 0.0
  %v883 = vmax.f32 %v879, 0.0
  %v884 = vmax.f32 %v880, 0.0
  %v885 = vmax.f32 %v881, 0.0
  %886 = vst [vmem:[%s10] sm:$0xff] %v882
  %887 = vst [vmem:[%s10 + $0x8] sm:$0xff] %v883
  %888 = vst [vmem:[%s10 + $0x10] sm:$0xff] %v884
  %889 = vst [vmem:[%s10 + $0x18] sm:$0xff] %v885
  // Predicated region
  $region42: #{residual_forward.1} parent=0 // pred_check
    _
  $region43: #{residual_forward.1} parent=0 // pred_check_branch
    %891 = sbr.rel (0) target = $region45
  $region44: #{residual_forward.1} parent=0 // pred_region
    _
  $region45: #{residual_forward.1} parent=0 // pred_fallthru
    _
  // Predicated region
  $region46: #{residual_forward.1} parent=0 // pred_check
    _
  $region47: #{residual_forward.1} parent=0 // pred_check_branch
    %893 = sbr.rel (0) target = $region49
  $region48: #{residual_forward.1} parent=0 // pred_region
    _
  $region49: #{residual_forward.1} parent=0 // pred_fallthru
    _

</llo_original>
